<compile_context>
chip_gen: v7x
topology: tpu7x:2x2x1
jax: 0.10.0
libtpu: 0.0.40
codegen_flags: <defaults>
</compile_context>

<pallas_src>
import functools

import jax
import jax.numpy as jnp
from jax.experimental import pallas as pl
from jax.experimental.pallas import tpu as pltpu  # noqa: F401 (TPU backend)

IN_EPS = 1e-3    # nn.InstanceNorm2d(eps=0.001)
LN_EPS = 1e-5    # LayerNorm default
BN_EPS = 1e-5    # nn.BatchNorm2d default (folded at pack time)
NEG_INF = -1e30  # cross-batch attention mask value


# ---------------------------------------------------------------------------
# Fused kernel: full GCGT forward for the whole batch in one invocation.
# ---------------------------------------------------------------------------
def _gcgt_kernel(q_ref, v_ref, p_ref, o_ref, *, offs, C, N, K, B, H):
    f32 = jnp.float32
    BK = B * K
    dh = C // H

    q = q_ref[...]                                   # (C, B*N) channel-major
    v = v_ref[...]

    # ---------------- slab slicing helpers (all offsets are static) --------
    def pslice(name, r0, r1, c0, c1):
        base = offs[name][0]
        return p_ref[base + r0:base + r1, c0:c1]

    def lin_cm(x, name):                 # block (Cout, Cin+1) = [W | b]; x (Cin, M)
        _, r, c = offs[name]
        w = pslice(name, 0, r, 0, c - 1)
        b = pslice(name, 0, r, c - 1, c)
        return jnp.dot(w, x, preferred_element_type=f32) + b

    def lin_tok(x, name):                # block (Cin+1, Cout) = [W; b]; x (M, Cin)
        _, r, c = offs[name]
        w = pslice(name, 0, r - 1, 0, c)
        b = pslice(name, r - 1, r, 0, c)
        return jnp.dot(x, w, preferred_element_type=f32) + b

    def convbn_tok(x, name, relu):       # block (Cin+3, Cout) = [W; b; s; sh]
        _, r, c = offs[name]
        w = pslice(name, 0, r - 3, 0, c)
        b = pslice(name, r - 3, r - 2, 0, c)
        s = pslice(name, r - 2, r - 1, 0, c)
        sh = pslice(name, r - 1, r, 0, c)
        y = (jnp.dot(x, w, preferred_element_type=f32) + b) * s + sh
        return jnp.maximum(y, 0.0) if relu else y

    def convbn_cm(x, name, relu):        # block (Cout, Cin+3) = [W | b | s | sh]
        _, r, c = offs[name]
        w = pslice(name, 0, r, 0, c - 3)
        b = pslice(name, 0, r, c - 3, c - 2)
        s = pslice(name, 0, r, c - 2, c - 1)
        sh = pslice(name, 0, r, c - 1, c)
        y = (jnp.dot(w, x, preferred_element_type=f32) + b) * s + sh
        return jnp.maximum(y, 0.0) if relu else y

    def bn_relu_cm(x, name):             # block (C, 2) = [scale | shift]
        s = pslice(name, 0, C, 0, 1)
        sh = pslice(name, 0, C, 1, 2)
        return jnp.maximum(x * s + sh, 0.0)

    def bn_relu_tok(x, name):            # block (2, C) = [scale; shift]
        s = pslice(name, 0, 1, 0, C)
        sh = pslice(name, 1, 2, 0, C)
        return jnp.maximum(x * s + sh, 0.0)

    # ---------------- small math helpers -----------------------------------
    def inorm_cols(x, n):                # InstanceNorm over columns, per B-half
        parts = []
        for b in range(B):
            xb = x[:, b * n:(b + 1) * n]
            mu = jnp.mean(xb, axis=1, keepdims=True)
            var = jnp.mean(jnp.square(xb - mu), axis=1, keepdims=True)
            parts.append((xb - mu) * jax.lax.rsqrt(var + IN_EPS))
        return jnp.concatenate(parts, axis=1)

    def inorm_rows(x, n):                # InstanceNorm over rows, per B-block
        parts = []
        for b in range(B):
            xb = x[b * n:(b + 1) * n, :]
            mu = jnp.mean(xb, axis=0, keepdims=True)
            var = jnp.mean(jnp.square(xb - mu), axis=0, keepdims=True)
            parts.append((xb - mu) * jax.lax.rsqrt(var + IN_EPS))
        return jnp.concatenate(parts, axis=0)

    def softmax_rows(e):                 # softmax over the last axis
        m = jnp.max(e, axis=-1, keepdims=True)
        p = jnp.exp(e - m)
        return p * pl.reciprocal(jnp.sum(p, axis=-1, keepdims=True), approx=True)

    def sigmoid(x):
        return pl.reciprocal(1.0 + jnp.exp(-x), approx=True)

    # ---- conv_group clustering (point space, channel-major, lane dense) ----
    qn = inorm_cols(q, N)                # hoisted: reused by conv_group1 & 3
    vn = inorm_cols(v, N)

    e1 = lin_cm(bn_relu_cm(qn, "cg0_bn"), "cg0_w")   # (K, B*N)
    e2 = lin_cm(bn_relu_cm(vn, "cg1_bn"), "cg1_w")   # (K, B*N)

    # clustered_q / clustered_v produced directly token-major (B*K, C) via NT
    # contractions over N (no transposes).
    cq_parts, cv_parts = [], []
    for b in range(B):
        s1b = softmax_rows(e1[:, b * N:(b + 1) * N])            # (K, N)
        s2b = softmax_rows(e2[:, b * N:(b + 1) * N])
        qb = q[:, b * N:(b + 1) * N]                             # (C, N)
        vb = v[:, b * N:(b + 1) * N]
        cq_parts.append(jax.lax.dot_general(
            s1b, qb, (((1,), (1,)), ((), ())), preferred_element_type=f32))
        cv_parts.append(jax.lax.dot_general(
            s2b, vb, (((1,), (1,)), ((), ())), preferred_element_type=f32))
    cq = jnp.concatenate(cq_parts, axis=0)           # (B*K, C) token-major
    cv = jnp.concatenate(cv_parts, axis=0)

    # ---- side branch: conv1 -> (+ conv2) -> conv3, residual with cq --------
    side = lin_tok(bn_relu_tok(inorm_rows(cq, K), "c1_bn"), "c1_w")   # (BK, C)
    # conv2 acts on the K "channels" (rows here); block-diagonal over batch.
    c2s = pslice("c2_v", 0, BK, 0, 1)
    c2sh = pslice("c2_v", 0, BK, 1, 2)
    c2b = pslice("c2_v", 0, BK, 2, 3)
    w2bd = pslice("c2_w", 0, BK, 0, BK)
    y = jnp.maximum(side * c2s + c2sh, 0.0)
    side = side + jnp.dot(w2bd, y, preferred_element_type=f32) + c2b
    side = lin_tok(bn_relu_tok(inorm_rows(side, K), "c3_bn"), "c3_w")
    side = cq + side

    # ---- transformer (cross attention, post-norm, ReLU FFN) ----------------
    # TODO(synk): TransformerLayer is not defined in the provided source; this
    #             is a post-norm MHA cross-attention + ReLU FFN approximation.
    q_tok = lin_tok(cq, "tr_q")                      # (BK, C); 1/sqrt(dh) folded
    kv = lin_tok(cv, "tr_kv")                        # (BK, 2C) merged K|V
    k_tok = kv[:, :C]
    v_tok = kv[:, C:]
    # block-diagonal mask so tokens only attend within their batch element
    ri = jax.lax.broadcasted_iota(jnp.int32, (BK, BK), 0)
    ci = jax.lax.broadcasted_iota(jnp.int32, (BK, BK), 1)
    same_batch = None
    for b in range(B):
        in_b = ((ri >= b * K) & (ri < (b + 1) * K)
                & (ci >= b * K) & (ci < (b + 1) * K))
        same_batch = in_b if same_batch is None else (same_batch | in_b)

    ctx_parts = []
    for h in range(H):
        lo = h * dh
        qh = q_tok[:, lo:lo + dh]
        kh = k_tok[:, lo:lo + dh]
        vh = v_tok[:, lo:lo + dh]
        logits = jax.lax.dot_general(qh, kh, (((1,), (1,)), ((), ())),
                                     preferred_element_type=f32)      # (BK, BK)
        p = softmax_rows(jnp.where(same_batch, logits, NEG_INF))
        ctx_parts.append(jnp.dot(p, vh, preferred_element_type=f32))  # (BK, dh)
    ctx = jnp.concatenate(ctx_parts, axis=1)          # (BK, C)
    attn = lin_tok(ctx, "tr_o")                       # single Wo matmul

    def layer_norm(z, row):                           # LN over feature dim (cols)
        g = pslice("tr_ln", row, row + 1, 0, C)
        bb = pslice("tr_ln", row + 1, row + 2, 0, C)
        mu = jnp.mean(z, axis=1, keepdims=True)
        var = jnp.mean(jnp.square(z - mu), axis=1, keepdims=True)
        return (z - mu) * jax.lax.rsqrt(var + LN_EPS) * g + bb

    z = layer_norm(cq + attn, 0)
    ff = jnp.maximum(lin_tok(z, "tr_f1"), 0.0)
    feat = layer_norm(z + lin_tok(ff, "tr_f2"), 2)
    feature = cq + feat                               # (BK, C)

    # ---- AFF1 (cluster space, token-major) ---------------------------------
    def aff_tok(x, res, pre):
        xa = x + res                                  # (BK, C)
        xl = convbn_tok(convbn_tok(xa, pre + "l1", True), pre + "l2", False)
        g = jnp.concatenate(
            [jnp.mean(xa[b * K:(b + 1) * K, :], axis=0, keepdims=True)
             for b in range(B)], axis=0)              # (B, C)
        xg = convbn_tok(convbn_tok(g, pre + "g1", True), pre + "g2", False)
        xg_full = jnp.concatenate(
            [jnp.broadcast_to(xg[b:b + 1, :], (K, C)) for b in range(B)], axis=0)
        wei = sigmoid(xl + xg_full)
        return 2.0 * (res + wei * (x - res))          # = 2*x*wei + 2*res*(1-wei)

    fuse = aff_tok(feature, side, "a1")               # (BK, C)

    # ---- back-project clusters -> points (cluster->point boundary) ---------
    fuse_cm = fuse.T                                  # single (32, 32) transpose
    e3 = lin_cm(bn_relu_cm(qn, "cg2_bn"), "cg2_w")    # (K, B*N), reuses qn
    m3 = jnp.max(e3, axis=0, keepdims=True)           # softmax over clusters
    p3 = jnp.exp(e3 - m3)
    s3 = p3 * pl.reciprocal(jnp.sum(p3, axis=0, keepdims=True), approx=True)
    fuse_n = jnp.concatenate(
        [jnp.dot(fuse_cm[:, b * K:(b + 1) * K], s3[:, b * N:(b + 1) * N],
                 preferred_element_type=f32) for b in range(B)], axis=1)  # (C, B*N)

    # ---- AFF2 (point space, channel-major, lane dense) ---------------------
    def aff_cm(x, res, pre):
        xa = x + res                                  # (C, B*N)
        xl = convbn_cm(convbn_cm(xa, pre + "l1", True), pre + "l2", False)
        g = jnp.concatenate(
            [jnp.mean(xa[:, b * N:(b + 1) * N], axis=1, keepdims=True)
             for b in range(B)], axis=1)              # (C, B)
        xg = convbn_cm(convbn_cm(g, pre + "g1", True), pre + "g2", False)
        xg_full = jnp.concatenate(
            [jnp.broadcast_to(xg[:, b:b + 1], (C, N)) for b in range(B)], axis=1)
        wei = sigmoid(xl + xg_full)
        return 2.0 * (res + wei * (x - res))

    o_ref[...] = aff_cm(fuse_n, q, "a2")              # (C, B*N) full-lane store


# ---------------------------------------------------------------------------
# Wrapper: lane-dense layout plumbing + single pallas_call.
# ---------------------------------------------------------------------------
def gcgt_forward(q, v, slab, *, offs, num_heads, clusters):
    B, C, N, _ = q.shape
    # channel-major lane-dense layout (C, B*N): layout plumbing only.
    q_cm = jnp.transpose(q[..., 0], (1, 0, 2)).reshape(C, B * N).astype(jnp.float32)
    v_cm = jnp.transpose(v[..., 0], (1, 0, 2)).reshape(C, B * N).astype(jnp.float32)
    kern = functools.partial(_gcgt_kernel, offs=offs, C=C, N=N,
                             K=clusters, B=B, H=num_heads)
    out_cm = pl.pallas_call(
        kern,
        out_shape=jax.ShapeDtypeStruct((C, B * N), jnp.float32),
    )(q_cm, v_cm, slab)
    return jnp.transpose(out_cm.reshape(C, B, N), (1, 0, 2))[..., None]


# ---------------------------------------------------------------------------
# Parameter construction: fold BN, re-orient for the kernel layouts, pack
# everything into one (rows, 128) f32 slab + static offset table.
# ---------------------------------------------------------------------------
class KeyGen:
    def __init__(self, key):
        self.key = key

    def __call__(self):
        self.key, sub = jax.random.split(self.key)
        return sub


class _SlabPacker:
    def __init__(self, width=128):
        self.width = width
        self.rows = 0
        self.offsets = {}
        self.blocks = []

    def add(self, name, arr):
        arr = jnp.asarray(arr, jnp.float32)
        r, c = arr.shape
        assert c <= self.width, (name, arr.shape)
        rp = ((r + 7) // 8) * 8                       # sublane-aligned blocks
        block = jnp.zeros((rp, self.width), jnp.float32).at[:r, :c].set(arr)
        self.offsets[name] = (self.rows, r, c)
        self.blocks.append(block)
        self.rows += rp

    def finish(self):
        return jnp.concatenate(self.blocks, axis=0), self.offsets


def build_params(key, C, K, Ci, FFN, H, B):
    kg = KeyGen(key)
    f32 = jnp.float32

    def normal(shape, s):
        return (s * jax.random.normal(kg(), shape)).astype(f32)

    def bn_fold(ch):
        # BatchNorm2d folded in eval mode (running_mean=0, running_var=1).
        gamma = 1.0 + 0.1 * jax.random.normal(kg(), (ch,))
        beta = 0.1 * jax.random.normal(kg(), (ch,))
        return (gamma / jnp.sqrt(1.0 + BN_EPS)).astype(f32), beta.astype(f32)

    pk = _SlabPacker()

    # conv_group1/2/3: IN -> BN(C) -> ReLU -> Conv(C->K); applied channel-major.
    for i in range(3):
        s, sh = bn_fold(C)
        pk.add(f"cg{i}_bn", jnp.stack([s, sh], axis=1))                  # (C, 2)
        w, b = normal((K, C), 0.1), normal((K,), 0.05)
        pk.add(f"cg{i}_w", jnp.concatenate([w, b[:, None]], axis=1))     # (K, C+1)

    # conv1 / conv3: IN -> BN(C) -> ReLU -> Conv(C->C); applied token-major.
    for n in ("c1", "c3"):
        s, sh = bn_fold(C)
        pk.add(f"{n}_bn", jnp.stack([s, sh], axis=0))                    # (2, C)
        w, b = normal((C, C), 0.1), normal((C,), 0.05)
        pk.add(f"{n}_w", jnp.concatenate([w.T, b[None, :]], axis=0))     # (C+1, C)

    # conv2: BN(K) -> ReLU -> Conv(K->K) on the transposed (K, C) view;
    # block-diagonal over the batch so one matmul covers both elements.
    s, sh = bn_fold(K)
    w, b = normal((K, K), 0.1), normal((K,), 0.05)
    pk.add("c2_w", jnp.kron(jnp.eye(B, dtype=f32), w))                   # (BK, BK)
    pk.add("c2_v", jnp.stack([jnp.tile(s, B), jnp.tile(sh, B),
                              jnp.tile(b, B)], axis=1))                  # (BK, 3)

    # Transformer (assumed): weights in nn.Linear (out, in) layout, re-oriented
    # to token-major (in, out) with biases as trailing rows; K|V merged and the
    # 1/sqrt(dh) scale folded into Wq / bq.
    scale = (C // H) ** -0.5
    wq, bq = normal((C, C), 0.1), normal((C,), 0.05)
    wk, bk = normal((C, C), 0.1), normal((C,), 0.05)
    wv, bv = normal((C, C), 0.1), normal((C,), 0.05)
    wo, bo = normal((C, C), 0.1), normal((C,), 0.05)
    pk.add("tr_q", jnp.concatenate([wq.T, bq[None, :]], axis=0) * scale)
    pk.add("tr_kv", jnp.concatenate(
        [jnp.concatenate([wk.T, wv.T], axis=1),
         jnp.concatenate([bk, bv])[None, :]], axis=0))                   # (C+1, 2C)
    pk.add("tr_o", jnp.concatenate([wo.T, bo[None, :]], axis=0))
    ln = []
    for _ in range(2):
        ln.append((1.0 + 0.1 * jax.random.normal(kg(), (C,))).astype(f32))
        ln.append((0.1 * jax.random.normal(kg(), (C,))).astype(f32))
    pk.add("tr_ln", jnp.stack(ln, axis=0))                               # (4, C)
    w1, b1 = normal((FFN, C), 0.1), normal((FFN,), 0.05)
    w2, b2 = normal((C, FFN), 0.1), normal((C,), 0.05)
    pk.add("tr_f1", jnp.concatenate([w1.T, b1[None, :]], axis=0))        # (C+1, FFN)
    pk.add("tr_f2", jnp.concatenate([w2.T, b2[None, :]], axis=0))        # (FFN+1, C)

    # AFF1 (cluster space, token-major) / AFF2 (point space, channel-major):
    # Conv(C->Ci) -> BN -> ReLU -> Conv(Ci->C) -> BN per (local, global) branch.
    for j, tok_major in ((1, True), (2, False)):
        for br in ("l", "g"):
            w1a, b1a = normal((Ci, C), 0.1), normal((Ci,), 0.05)
            s1a, o1a = bn_fold(Ci)
            w2a, b2a = normal((C, Ci), 0.1), normal((C,), 0.05)
            s2a, o2a = bn_fold(C)
            if tok_major:   # rows [W^T; b; scale; shift]
                pk.add(f"a{j}{br}1", jnp.concatenate(
                    [w1a.T, b1a[None], s1a[None], o1a[None]], axis=0))   # (C+3, Ci)
                pk.add(f"a{j}{br}2", jnp.concatenate(
                    [w2a.T, b2a[None], s2a[None], o2a[None]], axis=0))   # (Ci+3, C)
            else:           # cols [W | b | scale | shift]
                pk.add(f"a{j}{br}1", jnp.concatenate(
                    [w1a, b1a[:, None], s1a[:, None], o1a[:, None]], axis=1))
                pk.add(f"a{j}{br}2", jnp.concatenate(
                    [w2a, b2a[:, None], s2a[:, None], o2a[:, None]], axis=1))

    return pk.finish()


if __name__ == "__main__":
    B, C, N, K = 2, 32, 64, 16          # batch, channels, points, clusters
    H, FFN = 4, 64
    Ci = C // 4

    key = jax.random.PRNGKey(0)
    k_params, k_q, k_v = jax.random.split(key, 3)
    slab, offsets = build_params(k_params, C, K, Ci, FFN, H, B)
    q = jax.random.normal(k_q, (B, C, N, 1), dtype=jnp.float32)
    v = jax.random.normal(k_v, (B, C, N, 1), dtype=jnp.float32)

    fwd = jax.jit(functools.partial(gcgt_forward, offs=offsets,
                                    num_heads=H, clusters=K))
    out = jax.block_until_ready(fwd(q, v, slab))
    assert out.shape == (B, C, N, 1), out.shape
    assert bool(jnp.all(jnp.isfinite(out)))
    print("KERNEL_OK")
</pallas_src>

<mosaic_0001>
module attributes {stable_mosaic.version = 11 : i64} {
  func.func @_gcgt_kernel(%arg0: memref<32x128xf32, #tpu.memory_space<vmem>>, %arg1: memref<32x128xf32, #tpu.memory_space<vmem>>, %arg2: memref<736x128xf32, #tpu.memory_space<vmem>>, %arg3: memref<32x128xf32, #tpu.memory_space<vmem>>) attributes {dimension_semantics = [], scalar_prefetch = 0 : i64, scratch_operands = 0 : i64, tpu.core_type = #tpu.core_type<tc>} {
    %c0 = arith.constant 0 : index
    %c0_0 = arith.constant 0 : index
    %0 = vector.load %arg0[%c0, %c0_0] : memref<32x128xf32, #tpu.memory_space<vmem>>, vector<32x128xf32>
    %c0_1 = arith.constant 0 : index
    %c0_2 = arith.constant 0 : index
    %1 = vector.load %arg1[%c0_1, %c0_2] : memref<32x128xf32, #tpu.memory_space<vmem>>, vector<32x128xf32>
    %2 = vector.extract_strided_slice %0 {offsets = [0, 0], sizes = [32, 64], strides = [1, 1]} : vector<32x128xf32> to vector<32x64xf32>
    %cst = arith.constant dense<0.000000e+00> : vector<32xf32>
    %3 = vector.multi_reduction <add>, %2, %cst [1] : vector<32x64xf32> to vector<32xf32>
    %4 = vector.shape_cast %3 : vector<32xf32> to vector<32x1xf32>
    %cst_3 = arith.constant 6.400000e+01 : f32
    %5 = vector.broadcast %cst_3 : f32 to vector<32x1xf32>
    %6 = arith.divf %4, %5 : vector<32x1xf32>
    %7 = vector.broadcast %6 : vector<32x1xf32> to vector<32x64xf32>
    %8 = arith.subf %2, %7 : vector<32x64xf32>
    %9 = arith.mulf %8, %8 : vector<32x64xf32>
    %cst_4 = arith.constant dense<0.000000e+00> : vector<32xf32>
    %10 = vector.multi_reduction <add>, %9, %cst_4 [1] : vector<32x64xf32> to vector<32xf32>
    %11 = vector.shape_cast %10 : vector<32xf32> to vector<32x1xf32>
    %cst_5 = arith.constant 6.400000e+01 : f32
    %12 = vector.broadcast %cst_5 : f32 to vector<32x1xf32>
    %13 = arith.divf %11, %12 : vector<32x1xf32>
    %14 = vector.broadcast %6 : vector<32x1xf32> to vector<32x64xf32>
    %15 = arith.subf %2, %14 : vector<32x64xf32>
    %cst_6 = arith.constant 1.000000e-03 : f32
    %16 = vector.broadcast %cst_6 : f32 to vector<32x1xf32>
    %17 = arith.addf %13, %16 : vector<32x1xf32>
    %18 = math.rsqrt %17 : vector<32x1xf32>
    %19 = vector.broadcast %18 : vector<32x1xf32> to vector<32x64xf32>
    %20 = arith.mulf %15, %19 : vector<32x64xf32>
    %21 = vector.extract_strided_slice %0 {offsets = [0, 64], sizes = [32, 64], strides = [1, 1]} : vector<32x128xf32> to vector<32x64xf32>
    %cst_7 = arith.constant dense<0.000000e+00> : vector<32xf32>
    %22 = vector.multi_reduction <add>, %21, %cst_7 [1] : vector<32x64xf32> to vector<32xf32>
    %23 = vector.shape_cast %22 : vector<32xf32> to vector<32x1xf32>
    %cst_8 = arith.constant 6.400000e+01 : f32
    %24 = vector.broadcast %cst_8 : f32 to vector<32x1xf32>
    %25 = arith.divf %23, %24 : vector<32x1xf32>
    %26 = vector.broadcast %25 : vector<32x1xf32> to vector<32x64xf32>
    %27 = arith.subf %21, %26 : vector<32x64xf32>
    %28 = arith.mulf %27, %27 : vector<32x64xf32>
    %cst_9 = arith.constant dense<0.000000e+00> : vector<32xf32>
    %29 = vector.multi_reduction <add>, %28, %cst_9 [1] : vector<32x64xf32> to vector<32xf32>
    %30 = vector.shape_cast %29 : vector<32xf32> to vector<32x1xf32>
    %cst_10 = arith.constant 6.400000e+01 : f32
    %31 = vector.broadcast %cst_10 : f32 to vector<32x1xf32>
    %32 = arith.divf %30, %31 : vector<32x1xf32>
    %33 = vector.broadcast %25 : vector<32x1xf32> to vector<32x64xf32>
    %34 = arith.subf %21, %33 : vector<32x64xf32>
    %cst_11 = arith.constant 1.000000e-03 : f32
    %35 = vector.broadcast %cst_11 : f32 to vector<32x1xf32>
    %36 = arith.addf %32, %35 : vector<32x1xf32>
    %37 = math.rsqrt %36 : vector<32x1xf32>
    %38 = vector.broadcast %37 : vector<32x1xf32> to vector<32x64xf32>
    %39 = arith.mulf %34, %38 : vector<32x64xf32>
    %40 = tpu.concatenate %20, %39 in 1 : vector<32x64xf32>, vector<32x64xf32> -> vector<32x128xf32>
    %41 = vector.extract_strided_slice %1 {offsets = [0, 0], sizes = [32, 64], strides = [1, 1]} : vector<32x128xf32> to vector<32x64xf32>
    %cst_12 = arith.constant dense<0.000000e+00> : vector<32xf32>
    %42 = vector.multi_reduction <add>, %41, %cst_12 [1] : vector<32x64xf32> to vector<32xf32>
    %43 = vector.shape_cast %42 : vector<32xf32> to vector<32x1xf32>
    %cst_13 = arith.constant 6.400000e+01 : f32
    %44 = vector.broadcast %cst_13 : f32 to vector<32x1xf32>
    %45 = arith.divf %43, %44 : vector<32x1xf32>
    %46 = vector.broadcast %45 : vector<32x1xf32> to vector<32x64xf32>
    %47 = arith.subf %41, %46 : vector<32x64xf32>
    %48 = arith.mulf %47, %47 : vector<32x64xf32>
    %cst_14 = arith.constant dense<0.000000e+00> : vector<32xf32>
    %49 = vector.multi_reduction <add>, %48, %cst_14 [1] : vector<32x64xf32> to vector<32xf32>
    %50 = vector.shape_cast %49 : vector<32xf32> to vector<32x1xf32>
    %cst_15 = arith.constant 6.400000e+01 : f32
    %51 = vector.broadcast %cst_15 : f32 to vector<32x1xf32>
    %52 = arith.divf %50, %51 : vector<32x1xf32>
    %53 = vector.broadcast %45 : vector<32x1xf32> to vector<32x64xf32>
    %54 = arith.subf %41, %53 : vector<32x64xf32>
    %cst_16 = arith.constant 1.000000e-03 : f32
    %55 = vector.broadcast %cst_16 : f32 to vector<32x1xf32>
    %56 = arith.addf %52, %55 : vector<32x1xf32>
    %57 = math.rsqrt %56 : vector<32x1xf32>
    %58 = vector.broadcast %57 : vector<32x1xf32> to vector<32x64xf32>
    %59 = arith.mulf %54, %58 : vector<32x64xf32>
    %60 = vector.extract_strided_slice %1 {offsets = [0, 64], sizes = [32, 64], strides = [1, 1]} : vector<32x128xf32> to vector<32x64xf32>
    %cst_17 = arith.constant dense<0.000000e+00> : vector<32xf32>
    %61 = vector.multi_reduction <add>, %60, %cst_17 [1] : vector<32x64xf32> to vector<32xf32>
    %62 = vector.shape_cast %61 : vector<32xf32> to vector<32x1xf32>
    %cst_18 = arith.constant 6.400000e+01 : f32
    %63 = vector.broadcast %cst_18 : f32 to vector<32x1xf32>
    %64 = arith.divf %62, %63 : vector<32x1xf32>
    %65 = vector.broadcast %64 : vector<32x1xf32> to vector<32x64xf32>
    %66 = arith.subf %60, %65 : vector<32x64xf32>
    %67 = arith.mulf %66, %66 : vector<32x64xf32>
    %cst_19 = arith.constant dense<0.000000e+00> : vector<32xf32>
    %68 = vector.multi_reduction <add>, %67, %cst_19 [1] : vector<32x64xf32> to vector<32xf32>
    %69 = vector.shape_cast %68 : vector<32xf32> to vector<32x1xf32>
    %cst_20 = arith.constant 6.400000e+01 : f32
    %70 = vector.broadcast %cst_20 : f32 to vector<32x1xf32>
    %71 = arith.divf %69, %70 : vector<32x1xf32>
    %72 = vector.broadcast %64 : vector<32x1xf32> to vector<32x64xf32>
    %73 = arith.subf %60, %72 : vector<32x64xf32>
    %cst_21 = arith.constant 1.000000e-03 : f32
    %74 = vector.broadcast %cst_21 : f32 to vector<32x1xf32>
    %75 = arith.addf %71, %74 : vector<32x1xf32>
    %76 = math.rsqrt %75 : vector<32x1xf32>
    %77 = vector.broadcast %76 : vector<32x1xf32> to vector<32x64xf32>
    %78 = arith.mulf %73, %77 : vector<32x64xf32>
    %79 = tpu.concatenate %59, %78 in 1 : vector<32x64xf32>, vector<32x64xf32> -> vector<32x128xf32>
    %c0_22 = arith.constant 0 : index
    %c0_23 = arith.constant 0 : index
    %80 = vector.load %arg2[%c0_22, %c0_23] : memref<736x128xf32, #tpu.memory_space<vmem>>, vector<32x1xf32>
    %c0_24 = arith.constant 0 : index
    %c1 = arith.constant 1 : index
    %81 = vector.load %arg2[%c0_24, %c1] : memref<736x128xf32, #tpu.memory_space<vmem>>, vector<32x1xf32>
    %82 = vector.broadcast %80 : vector<32x1xf32> to vector<32x128xf32>
    %83 = arith.mulf %40, %82 : vector<32x128xf32>
    %84 = vector.broadcast %81 : vector<32x1xf32> to vector<32x128xf32>
    %85 = arith.addf %83, %84 : vector<32x128xf32>
    %cst_25 = arith.constant 0.000000e+00 : f32
    %86 = vector.broadcast %cst_25 : f32 to vector<32x128xf32>
    %87 = arith.maximumf %85, %86 : vector<32x128xf32>
    %c32 = arith.constant 32 : index
    %c0_26 = arith.constant 0 : index
    %88 = vector.load %arg2[%c32, %c0_26] : memref<736x128xf32, #tpu.memory_space<vmem>>, vector<16x32xf32>
    %c32_27 = arith.constant 32 : index
    %c32_28 = arith.constant 32 : index
    %89 = vector.load %arg2[%c32_27, %c32_28] : memref<736x128xf32, #tpu.memory_space<vmem>>, vector<16x1xf32>
    %cst_29 = arith.constant dense<0.000000e+00> : vector<16x128xf32>
    %90 = tpu.matmul %88, %87, %cst_29 {dimension_numbers = #tpu.dot_dimension_numbers<[1], [0], [0], [1], [0, 0, 1, 1], [], []>} : vector<16x32xf32>, vector<32x128xf32>, vector<16x128xf32> -> vector<16x128xf32>
    %91 = vector.broadcast %89 : vector<16x1xf32> to vector<16x128xf32>
    %92 = arith.addf %90, %91 : vector<16x128xf32>
    %c48 = arith.constant 48 : index
    %c0_30 = arith.constant 0 : index
    %93 = vector.load %arg2[%c48, %c0_30] : memref<736x128xf32, #tpu.memory_space<vmem>>, vector<32x1xf32>
    %c48_31 = arith.constant 48 : index
    %c1_32 = arith.constant 1 : index
    %94 = vector.load %arg2[%c48_31, %c1_32] : memref<736x128xf32, #tpu.memory_space<vmem>>, vector<32x1xf32>
    %95 = vector.broadcast %93 : vector<32x1xf32> to vector<32x128xf32>
    %96 = arith.mulf %79, %95 : vector<32x128xf32>
    %97 = vector.broadcast %94 : vector<32x1xf32> to vector<32x128xf32>
    %98 = arith.addf %96, %97 : vector<32x128xf32>
    %cst_33 = arith.constant 0.000000e+00 : f32
    %99 = vector.broadcast %cst_33 : f32 to vector<32x128xf32>
    %100 = arith.maximumf %98, %99 : vector<32x128xf32>
    %c80 = arith.constant 80 : index
    %c0_34 = arith.constant 0 : index
    %101 = vector.load %arg2[%c80, %c0_34] : memref<736x128xf32, #tpu.memory_space<vmem>>, vector<16x32xf32>
    %c80_35 = arith.constant 80 : index
    %c32_36 = arith.constant 32 : index
    %102 = vector.load %arg2[%c80_35, %c32_36] : memref<736x128xf32, #tpu.memory_space<vmem>>, vector<16x1xf32>
    %cst_37 = arith.constant dense<0.000000e+00> : vector<16x128xf32>
    %103 = tpu.matmul %101, %100, %cst_37 {dimension_numbers = #tpu.dot_dimension_numbers<[1], [0], [0], [1], [0, 0, 1, 1], [], []>} : vector<16x32xf32>, vector<32x128xf32>, vector<16x128xf32> -> vector<16x128xf32>
    %104 = vector.broadcast %102 : vector<16x1xf32> to vector<16x128xf32>
    %105 = arith.addf %103, %104 : vector<16x128xf32>
    %106 = vector.extract_strided_slice %92 {offsets = [0, 0], sizes = [16, 64], strides = [1, 1]} : vector<16x128xf32> to vector<16x64xf32>
    %cst_38 = arith.constant dense<0xFF800000> : vector<16xf32>
    %107 = vector.multi_reduction <maximumf>, %106, %cst_38 [1] : vector<16x64xf32> to vector<16xf32>
    %108 = vector.shape_cast %107 : vector<16xf32> to vector<16x1xf32>
    %109 = vector.broadcast %108 : vector<16x1xf32> to vector<16x64xf32>
    %110 = arith.subf %106, %109 : vector<16x64xf32>
    %111 = math.exp %110 : vector<16x64xf32>
    %cst_39 = arith.constant dense<0.000000e+00> : vector<16xf32>
    %112 = vector.multi_reduction <add>, %111, %cst_39 [1] : vector<16x64xf32> to vector<16xf32>
    %113 = vector.shape_cast %112 : vector<16xf32> to vector<16x1xf32>
    %114 = tpu.reciprocal %113 {approx = true} : vector<16x1xf32> -> vector<16x1xf32>
    %115 = vector.broadcast %114 : vector<16x1xf32> to vector<16x64xf32>
    %116 = arith.mulf %111, %115 : vector<16x64xf32>
    %117 = vector.extract_strided_slice %105 {offsets = [0, 0], sizes = [16, 64], strides = [1, 1]} : vector<16x128xf32> to vector<16x64xf32>
    %cst_40 = arith.constant dense<0xFF800000> : vector<16xf32>
    %118 = vector.multi_reduction <maximumf>, %117, %cst_40 [1] : vector<16x64xf32> to vector<16xf32>
    %119 = vector.shape_cast %118 : vector<16xf32> to vector<16x1xf32>
    %120 = vector.broadcast %119 : vector<16x1xf32> to vector<16x64xf32>
    %121 = arith.subf %117, %120 : vector<16x64xf32>
    %122 = math.exp %121 : vector<16x64xf32>
    %cst_41 = arith.constant dense<0.000000e+00> : vector<16xf32>
    %123 = vector.multi_reduction <add>, %122, %cst_41 [1] : vector<16x64xf32> to vector<16xf32>
    %124 = vector.shape_cast %123 : vector<16xf32> to vector<16x1xf32>
    %125 = tpu.reciprocal %124 {approx = true} : vector<16x1xf32> -> vector<16x1xf32>
    %126 = vector.broadcast %125 : vector<16x1xf32> to vector<16x64xf32>
    %127 = arith.mulf %122, %126 : vector<16x64xf32>
    %128 = vector.extract_strided_slice %0 {offsets = [0, 0], sizes = [32, 64], strides = [1, 1]} : vector<32x128xf32> to vector<32x64xf32>
    %129 = vector.extract_strided_slice %1 {offsets = [0, 0], sizes = [32, 64], strides = [1, 1]} : vector<32x128xf32> to vector<32x64xf32>
    %cst_42 = arith.constant dense<0.000000e+00> : vector<16x32xf32>
    %130 = tpu.matmul %116, %128, %cst_42 {dimension_numbers = #tpu.dot_dimension_numbers<[1], [1], [0], [0], [0, 0, 1, 0], [], []>} : vector<16x64xf32>, vector<32x64xf32>, vector<16x32xf32> -> vector<16x32xf32>
    %cst_43 = arith.constant dense<0.000000e+00> : vector<16x32xf32>
    %131 = tpu.matmul %127, %129, %cst_43 {dimension_numbers = #tpu.dot_dimension_numbers<[1], [1], [0], [0], [0, 0, 1, 0], [], []>} : vector<16x64xf32>, vector<32x64xf32>, vector<16x32xf32> -> vector<16x32xf32>
    %132 = vector.extract_strided_slice %92 {offsets = [0, 64], sizes = [16, 64], strides = [1, 1]} : vector<16x128xf32> to vector<16x64xf32>
    %cst_44 = arith.constant dense<0xFF800000> : vector<16xf32>
    %133 = vector.multi_reduction <maximumf>, %132, %cst_44 [1] : vector<16x64xf32> to vector<16xf32>
    %134 = vector.shape_cast %133 : vector<16xf32> to vector<16x1xf32>
    %135 = vector.broadcast %134 : vector<16x1xf32> to vector<16x64xf32>
    %136 = arith.subf %132, %135 : vector<16x64xf32>
    %137 = math.exp %136 : vector<16x64xf32>
    %cst_45 = arith.constant dense<0.000000e+00> : vector<16xf32>
    %138 = vector.multi_reduction <add>, %137, %cst_45 [1] : vector<16x64xf32> to vector<16xf32>
    %139 = vector.shape_cast %138 : vector<16xf32> to vector<16x1xf32>
    %140 = tpu.reciprocal %139 {approx = true} : vector<16x1xf32> -> vector<16x1xf32>
    %141 = vector.broadcast %140 : vector<16x1xf32> to vector<16x64xf32>
    %142 = arith.mulf %137, %141 : vector<16x64xf32>
    %143 = vector.extract_strided_slice %105 {offsets = [0, 64], sizes = [16, 64], strides = [1, 1]} : vector<16x128xf32> to vector<16x64xf32>
    %cst_46 = arith.constant dense<0xFF800000> : vector<16xf32>
    %144 = vector.multi_reduction <maximumf>, %143, %cst_46 [1] : vector<16x64xf32> to vector<16xf32>
    %145 = vector.shape_cast %144 : vector<16xf32> to vector<16x1xf32>
    %146 = vector.broadcast %145 : vector<16x1xf32> to vector<16x64xf32>
    %147 = arith.subf %143, %146 : vector<16x64xf32>
    %148 = math.exp %147 : vector<16x64xf32>
    %cst_47 = arith.constant dense<0.000000e+00> : vector<16xf32>
    %149 = vector.multi_reduction <add>, %148, %cst_47 [1] : vector<16x64xf32> to vector<16xf32>
    %150 = vector.shape_cast %149 : vector<16xf32> to vector<16x1xf32>
    %151 = tpu.reciprocal %150 {approx = true} : vector<16x1xf32> -> vector<16x1xf32>
    %152 = vector.broadcast %151 : vector<16x1xf32> to vector<16x64xf32>
    %153 = arith.mulf %148, %152 : vector<16x64xf32>
    %154 = vector.extract_strided_slice %0 {offsets = [0, 64], sizes = [32, 64], strides = [1, 1]} : vector<32x128xf32> to vector<32x64xf32>
    %155 = vector.extract_strided_slice %1 {offsets = [0, 64], sizes = [32, 64], strides = [1, 1]} : vector<32x128xf32> to vector<32x64xf32>
    %cst_48 = arith.constant dense<0.000000e+00> : vector<16x32xf32>
    %156 = tpu.matmul %142, %154, %cst_48 {dimension_numbers = #tpu.dot_dimension_numbers<[1], [1], [0], [0], [0, 0, 1, 0], [], []>} : vector<16x64xf32>, vector<32x64xf32>, vector<16x32xf32> -> vector<16x32xf32>
    %cst_49 = arith.constant dense<0.000000e+00> : vector<16x32xf32>
    %157 = tpu.matmul %153, %155, %cst_49 {dimension_numbers = #tpu.dot_dimension_numbers<[1], [1], [0], [0], [0, 0, 1, 0], [], []>} : vector<16x64xf32>, vector<32x64xf32>, vector<16x32xf32> -> vector<16x32xf32>
    %158 = tpu.concatenate %130, %156 in 0 : vector<16x32xf32>, vector<16x32xf32> -> vector<32x32xf32>
    %159 = tpu.concatenate %131, %157 in 0 : vector<16x32xf32>, vector<16x32xf32> -> vector<32x32xf32>
    %160 = vector.extract_strided_slice %158 {offsets = [0, 0], sizes = [16, 32], strides = [1, 1]} : vector<32x32xf32> to vector<16x32xf32>
    %cst_50 = arith.constant dense<0.000000e+00> : vector<32xf32>
    %161 = vector.multi_reduction <add>, %160, %cst_50 [0] : vector<16x32xf32> to vector<32xf32>
    %162 = vector.shape_cast %161 : vector<32xf32> to vector<1x32xf32>
    %cst_51 = arith.constant 1.600000e+01 : f32
    %163 = vector.broadcast %cst_51 : f32 to vector<1x32xf32>
    %164 = arith.divf %162, %163 : vector<1x32xf32>
    %165 = vector.broadcast %164 : vector<1x32xf32> to vector<16x32xf32>
    %166 = arith.subf %160, %165 : vector<16x32xf32>
    %167 = arith.mulf %166, %166 : vector<16x32xf32>
    %cst_52 = arith.constant dense<0.000000e+00> : vector<32xf32>
    %168 = vector.multi_reduction <add>, %167, %cst_52 [0] : vector<16x32xf32> to vector<32xf32>
    %169 = vector.shape_cast %168 : vector<32xf32> to vector<1x32xf32>
    %cst_53 = arith.constant 1.600000e+01 : f32
    %170 = vector.broadcast %cst_53 : f32 to vector<1x32xf32>
    %171 = arith.divf %169, %170 : vector<1x32xf32>
    %172 = vector.broadcast %164 : vector<1x32xf32> to vector<16x32xf32>
    %173 = arith.subf %160, %172 : vector<16x32xf32>
    %cst_54 = arith.constant 1.000000e-03 : f32
    %174 = vector.broadcast %cst_54 : f32 to vector<1x32xf32>
    %175 = arith.addf %171, %174 : vector<1x32xf32>
    %176 = math.rsqrt %175 : vector<1x32xf32>
    %177 = vector.broadcast %176 : vector<1x32xf32> to vector<16x32xf32>
    %178 = arith.mulf %173, %177 : vector<16x32xf32>
    %179 = vector.extract_strided_slice %158 {offsets = [16, 0], sizes = [16, 32], strides = [1, 1]} : vector<32x32xf32> to vector<16x32xf32>
    %cst_55 = arith.constant dense<0.000000e+00> : vector<32xf32>
    %180 = vector.multi_reduction <add>, %179, %cst_55 [0] : vector<16x32xf32> to vector<32xf32>
    %181 = vector.shape_cast %180 : vector<32xf32> to vector<1x32xf32>
    %cst_56 = arith.constant 1.600000e+01 : f32
    %182 = vector.broadcast %cst_56 : f32 to vector<1x32xf32>
    %183 = arith.divf %181, %182 : vector<1x32xf32>
    %184 = vector.broadcast %183 : vector<1x32xf32> to vector<16x32xf32>
    %185 = arith.subf %179, %184 : vector<16x32xf32>
    %186 = arith.mulf %185, %185 : vector<16x32xf32>
    %cst_57 = arith.constant dense<0.000000e+00> : vector<32xf32>
    %187 = vector.multi_reduction <add>, %186, %cst_57 [0] : vector<16x32xf32> to vector<32xf32>
    %188 = vector.shape_cast %187 : vector<32xf32> to vector<1x32xf32>
    %cst_58 = arith.constant 1.600000e+01 : f32
    %189 = vector.broadcast %cst_58 : f32 to vector<1x32xf32>
    %190 = arith.divf %188, %189 : vector<1x32xf32>
    %191 = vector.broadcast %183 : vector<1x32xf32> to vector<16x32xf32>
    %192 = arith.subf %179, %191 : vector<16x32xf32>
    %cst_59 = arith.constant 1.000000e-03 : f32
    %193 = vector.broadcast %cst_59 : f32 to vector<1x32xf32>
    %194 = arith.addf %190, %193 : vector<1x32xf32>
    %195 = math.rsqrt %194 : vector<1x32xf32>
    %196 = vector.broadcast %195 : vector<1x32xf32> to vector<16x32xf32>
    %197 = arith.mulf %192, %196 : vector<16x32xf32>
    %198 = tpu.concatenate %178, %197 in 0 : vector<16x32xf32>, vector<16x32xf32> -> vector<32x32xf32>
    %c144 = arith.constant 144 : index
    %c0_60 = arith.constant 0 : index
    %199 = vector.load %arg2[%c144, %c0_60] : memref<736x128xf32, #tpu.memory_space<vmem>>, vector<1x32xf32>
    %c145 = arith.constant 145 : index
    %c0_61 = arith.constant 0 : index
    %200 = vector.load %arg2[%c145, %c0_61] : memref<736x128xf32, #tpu.memory_space<vmem>>, vector<1x32xf32>
    %201 = vector.broadcast %199 : vector<1x32xf32> to vector<32x32xf32>
    %202 = arith.mulf %198, %201 : vector<32x32xf32>
    %203 = vector.broadcast %200 : vector<1x32xf32> to vector<32x32xf32>
    %204 = arith.addf %202, %203 : vector<32x32xf32>
    %cst_62 = arith.constant 0.000000e+00 : f32
    %205 = vector.broadcast %cst_62 : f32 to vector<32x32xf32>
    %206 = arith.maximumf %204, %205 : vector<32x32xf32>
    %c152 = arith.constant 152 : index
    %c0_63 = arith.constant 0 : index
    %207 = vector.load %arg2[%c152, %c0_63] : memref<736x128xf32, #tpu.memory_space<vmem>>, vector<32x32xf32>
    %c184 = arith.constant 184 : index
    %c0_64 = arith.constant 0 : index
    %208 = vector.load %arg2[%c184, %c0_64] : memref<736x128xf32, #tpu.memory_space<vmem>>, vector<1x32xf32>
    %cst_65 = arith.constant dense<0.000000e+00> : vector<32x32xf32>
    %209 = tpu.matmul %206, %207, %cst_65 {dimension_numbers = #tpu.dot_dimension_numbers<[1], [0], [0], [1], [0, 0, 1, 1], [], []>} : vector<32x32xf32>, vector<32x32xf32>, vector<32x32xf32> -> vector<32x32xf32>
    %210 = vector.broadcast %208 : vector<1x32xf32> to vector<32x32xf32>
    %211 = arith.addf %209, %210 : vector<32x32xf32>
    %c272 = arith.constant 272 : index
    %c0_66 = arith.constant 0 : index
    %212 = vector.load %arg2[%c272, %c0_66] : memref<736x128xf32, #tpu.memory_space<vmem>>, vector<32x1xf32>
    %c272_67 = arith.constant 272 : index
    %c1_68 = arith.constant 1 : index
    %213 = vector.load %arg2[%c272_67, %c1_68] : memref<736x128xf32, #tpu.memory_space<vmem>>, vector<32x1xf32>
    %c272_69 = arith.constant 272 : index
    %c2 = arith.constant 2 : index
    %214 = vector.load %arg2[%c272_69, %c2] : memref<736x128xf32, #tpu.memory_space<vmem>>, vector<32x1xf32>
    %c240 = arith.constant 240 : index
    %c0_70 = arith.constant 0 : index
    %215 = vector.load %arg2[%c240, %c0_70] : memref<736x128xf32, #tpu.memory_space<vmem>>, vector<32x32xf32>
    %216 = vector.broadcast %212 : vector<32x1xf32> to vector<32x32xf32>
    %217 = arith.mulf %211, %216 : vector<32x32xf32>
    %218 = vector.broadcast %213 : vector<32x1xf32> to vector<32x32xf32>
    %219 = arith.addf %217, %218 : vector<32x32xf32>
    %cst_71 = arith.constant 0.000000e+00 : f32
    %220 = vector.broadcast %cst_71 : f32 to vector<32x32xf32>
    %221 = arith.maximumf %219, %220 : vector<32x32xf32>
    %cst_72 = arith.constant dense<0.000000e+00> : vector<32x32xf32>
    %222 = tpu.matmul %215, %221, %cst_72 {dimension_numbers = #tpu.dot_dimension_numbers<[1], [0], [0], [1], [0, 0, 1, 1], [], []>} : vector<32x32xf32>, vector<32x32xf32>, vector<32x32xf32> -> vector<32x32xf32>
    %223 = arith.addf %211, %222 : vector<32x32xf32>
    %224 = vector.broadcast %214 : vector<32x1xf32> to vector<32x32xf32>
    %225 = arith.addf %223, %224 : vector<32x32xf32>
    %226 = vector.extract_strided_slice %225 {offsets = [0, 0], sizes = [16, 32], strides = [1, 1]} : vector<32x32xf32> to vector<16x32xf32>
    %cst_73 = arith.constant dense<0.000000e+00> : vector<32xf32>
    %227 = vector.multi_reduction <add>, %226, %cst_73 [0] : vector<16x32xf32> to vector<32xf32>
    %228 = vector.shape_cast %227 : vector<32xf32> to vector<1x32xf32>
    %cst_74 = arith.constant 1.600000e+01 : f32
    %229 = vector.broadcast %cst_74 : f32 to vector<1x32xf32>
    %230 = arith.divf %228, %229 : vector<1x32xf32>
    %231 = vector.broadcast %230 : vector<1x32xf32> to vector<16x32xf32>
    %232 = arith.subf %226, %231 : vector<16x32xf32>
    %233 = arith.mulf %232, %232 : vector<16x32xf32>
    %cst_75 = arith.constant dense<0.000000e+00> : vector<32xf32>
    %234 = vector.multi_reduction <add>, %233, %cst_75 [0] : vector<16x32xf32> to vector<32xf32>
    %235 = vector.shape_cast %234 : vector<32xf32> to vector<1x32xf32>
    %cst_76 = arith.constant 1.600000e+01 : f32
    %236 = vector.broadcast %cst_76 : f32 to vector<1x32xf32>
    %237 = arith.divf %235, %236 : vector<1x32xf32>
    %238 = vector.broadcast %230 : vector<1x32xf32> to vector<16x32xf32>
    %239 = arith.subf %226, %238 : vector<16x32xf32>
    %cst_77 = arith.constant 1.000000e-03 : f32
    %240 = vector.broadcast %cst_77 : f32 to vector<1x32xf32>
    %241 = arith.addf %237, %240 : vector<1x32xf32>
    %242 = math.rsqrt %241 : vector<1x32xf32>
    %243 = vector.broadcast %242 : vector<1x32xf32> to vector<16x32xf32>
    %244 = arith.mulf %239, %243 : vector<16x32xf32>
    %245 = vector.extract_strided_slice %225 {offsets = [16, 0], sizes = [16, 32], strides = [1, 1]} : vector<32x32xf32> to vector<16x32xf32>
    %cst_78 = arith.constant dense<0.000000e+00> : vector<32xf32>
    %246 = vector.multi_reduction <add>, %245, %cst_78 [0] : vector<16x32xf32> to vector<32xf32>
    %247 = vector.shape_cast %246 : vector<32xf32> to vector<1x32xf32>
    %cst_79 = arith.constant 1.600000e+01 : f32
    %248 = vector.broadcast %cst_79 : f32 to vector<1x32xf32>
    %249 = arith.divf %247, %248 : vector<1x32xf32>
    %250 = vector.broadcast %249 : vector<1x32xf32> to vector<16x32xf32>
    %251 = arith.subf %245, %250 : vector<16x32xf32>
    %252 = arith.mulf %251, %251 : vector<16x32xf32>
    %cst_80 = arith.constant dense<0.000000e+00> : vector<32xf32>
    %253 = vector.multi_reduction <add>, %252, %cst_80 [0] : vector<16x32xf32> to vector<32xf32>
    %254 = vector.shape_cast %253 : vector<32xf32> to vector<1x32xf32>
    %cst_81 = arith.constant 1.600000e+01 : f32
    %255 = vector.broadcast %cst_81 : f32 to vector<1x32xf32>
    %256 = arith.divf %254, %255 : vector<1x32xf32>
    %257 = vector.broadcast %249 : vector<1x32xf32> to vector<16x32xf32>
    %258 = arith.subf %245, %257 : vector<16x32xf32>
    %cst_82 = arith.constant 1.000000e-03 : f32
    %259 = vector.broadcast %cst_82 : f32 to vector<1x32xf32>
    %260 = arith.addf %256, %259 : vector<1x32xf32>
    %261 = math.rsqrt %260 : vector<1x32xf32>
    %262 = vector.broadcast %261 : vector<1x32xf32> to vector<16x32xf32>
    %263 = arith.mulf %258, %262 : vector<16x32xf32>
    %264 = tpu.concatenate %244, %263 in 0 : vector<16x32xf32>, vector<16x32xf32> -> vector<32x32xf32>
    %c192 = arith.constant 192 : index
    %c0_83 = arith.constant 0 : index
    %265 = vector.load %arg2[%c192, %c0_83] : memref<736x128xf32, #tpu.memory_space<vmem>>, vector<1x32xf32>
    %c193 = arith.constant 193 : index
    %c0_84 = arith.constant 0 : index
    %266 = vector.load %arg2[%c193, %c0_84] : memref<736x128xf32, #tpu.memory_space<vmem>>, vector<1x32xf32>
    %267 = vector.broadcast %265 : vector<1x32xf32> to vector<32x32xf32>
    %268 = arith.mulf %264, %267 : vector<32x32xf32>
    %269 = vector.broadcast %266 : vector<1x32xf32> to vector<32x32xf32>
    %270 = arith.addf %268, %269 : vector<32x32xf32>
    %cst_85 = arith.constant 0.000000e+00 : f32
    %271 = vector.broadcast %cst_85 : f32 to vector<32x32xf32>
    %272 = arith.maximumf %270, %271 : vector<32x32xf32>
    %c200 = arith.constant 200 : index
    %c0_86 = arith.constant 0 : index
    %273 = vector.load %arg2[%c200, %c0_86] : memref<736x128xf32, #tpu.memory_space<vmem>>, vector<32x32xf32>
    %c232 = arith.constant 232 : index
    %c0_87 = arith.constant 0 : index
    %274 = vector.load %arg2[%c232, %c0_87] : memref<736x128xf32, #tpu.memory_space<vmem>>, vector<1x32xf32>
    %cst_88 = arith.constant dense<0.000000e+00> : vector<32x32xf32>
    %275 = tpu.matmul %272, %273, %cst_88 {dimension_numbers = #tpu.dot_dimension_numbers<[1], [0], [0], [1], [0, 0, 1, 1], [], []>} : vector<32x32xf32>, vector<32x32xf32>, vector<32x32xf32> -> vector<32x32xf32>
    %276 = vector.broadcast %274 : vector<1x32xf32> to vector<32x32xf32>
    %277 = arith.addf %275, %276 : vector<32x32xf32>
    %278 = arith.addf %158, %277 : vector<32x32xf32>
    %c304 = arith.constant 304 : index
    %c0_89 = arith.constant 0 : index
    %279 = vector.load %arg2[%c304, %c0_89] : memref<736x128xf32, #tpu.memory_space<vmem>>, vector<32x32xf32>
    %c336 = arith.constant 336 : index
    %c0_90 = arith.constant 0 : index
    %280 = vector.load %arg2[%c336, %c0_90] : memref<736x128xf32, #tpu.memory_space<vmem>>, vector<1x32xf32>
    %cst_91 = arith.constant dense<0.000000e+00> : vector<32x32xf32>
    %281 = tpu.matmul %158, %279, %cst_91 {dimension_numbers = #tpu.dot_dimension_numbers<[1], [0], [0], [1], [0, 0, 1, 1], [], []>} : vector<32x32xf32>, vector<32x32xf32>, vector<32x32xf32> -> vector<32x32xf32>
    %282 = vector.broadcast %280 : vector<1x32xf32> to vector<32x32xf32>
    %283 = arith.addf %281, %282 : vector<32x32xf32>
    %c344 = arith.constant 344 : index
    %c0_92 = arith.constant 0 : index
    %284 = vector.load %arg2[%c344, %c0_92] : memref<736x128xf32, #tpu.memory_space<vmem>>, vector<32x64xf32>
    %c376 = arith.constant 376 : index
    %c0_93 = arith.constant 0 : index
    %285 = vector.load %arg2[%c376, %c0_93] : memref<736x128xf32, #tpu.memory_space<vmem>>, vector<1x64xf32>
    %cst_94 = arith.constant dense<0.000000e+00> : vector<32x64xf32>
    %286 = tpu.matmul %159, %284, %cst_94 {dimension_numbers = #tpu.dot_dimension_numbers<[1], [0], [0], [1], [0, 0, 1, 1], [], []>} : vector<32x32xf32>, vector<32x64xf32>, vector<32x64xf32> -> vector<32x64xf32>
    %287 = vector.broadcast %285 : vector<1x64xf32> to vector<32x64xf32>
    %288 = arith.addf %286, %287 : vector<32x64xf32>
    %289 = vector.extract_strided_slice %288 {offsets = [0, 0], sizes = [32, 32], strides = [1, 1]} : vector<32x64xf32> to vector<32x32xf32>
    %290 = vector.extract_strided_slice %288 {offsets = [0, 32], sizes = [32, 32], strides = [1, 1]} : vector<32x64xf32> to vector<32x32xf32>
    %291 = tpu.iota {dimensions = array<i32: 0>} : vector<32x32xi32>
    %292 = tpu.iota {dimensions = array<i32: 1>} : vector<32x32xi32>
    %c0_i32 = arith.constant 0 : i32
    %293 = vector.broadcast %c0_i32 : i32 to vector<32x32xi32>
    %294 = arith.cmpi sge, %291, %293 : vector<32x32xi32>
    %c16_i32 = arith.constant 16 : i32
    %295 = vector.broadcast %c16_i32 : i32 to vector<32x32xi32>
    %296 = arith.cmpi slt, %291, %295 : vector<32x32xi32>
    %297 = arith.andi %294, %296 : vector<32x32xi1>
    %c0_i32_95 = arith.constant 0 : i32
    %298 = vector.broadcast %c0_i32_95 : i32 to vector<32x32xi32>
    %299 = arith.cmpi sge, %292, %298 : vector<32x32xi32>
    %300 = arith.andi %297, %299 : vector<32x32xi1>
    %c16_i32_96 = arith.constant 16 : i32
    %301 = vector.broadcast %c16_i32_96 : i32 to vector<32x32xi32>
    %302 = arith.cmpi slt, %292, %301 : vector<32x32xi32>
    %303 = arith.andi %300, %302 : vector<32x32xi1>
    %c16_i32_97 = arith.constant 16 : i32
    %304 = vector.broadcast %c16_i32_97 : i32 to vector<32x32xi32>
    %305 = arith.cmpi sge, %291, %304 : vector<32x32xi32>
    %c32_i32 = arith.constant 32 : i32
    %306 = vector.broadcast %c32_i32 : i32 to vector<32x32xi32>
    %307 = arith.cmpi slt, %291, %306 : vector<32x32xi32>
    %308 = arith.andi %305, %307 : vector<32x32xi1>
    %c16_i32_98 = arith.constant 16 : i32
    %309 = vector.broadcast %c16_i32_98 : i32 to vector<32x32xi32>
    %310 = arith.cmpi sge, %292, %309 : vector<32x32xi32>
    %311 = arith.andi %308, %310 : vector<32x32xi1>
    %c32_i32_99 = arith.constant 32 : i32
    %312 = vector.broadcast %c32_i32_99 : i32 to vector<32x32xi32>
    %313 = arith.cmpi slt, %292, %312 : vector<32x32xi32>
    %314 = arith.andi %311, %313 : vector<32x32xi1>
    %315 = arith.ori %303, %314 : vector<32x32xi1>
    %316 = vector.extract_strided_slice %283 {offsets = [0, 0], sizes = [32, 8], strides = [1, 1]} : vector<32x32xf32> to vector<32x8xf32>
    %317 = vector.extract_strided_slice %289 {offsets = [0, 0], sizes = [32, 8], strides = [1, 1]} : vector<32x32xf32> to vector<32x8xf32>
    %318 = vector.extract_strided_slice %290 {offsets = [0, 0], sizes = [32, 8], strides = [1, 1]} : vector<32x32xf32> to vector<32x8xf32>
    %cst_100 = arith.constant dense<0.000000e+00> : vector<32x32xf32>
    %319 = tpu.matmul %316, %317, %cst_100 {dimension_numbers = #tpu.dot_dimension_numbers<[1], [1], [0], [0], [0, 0, 1, 0], [], []>} : vector<32x8xf32>, vector<32x8xf32>, vector<32x32xf32> -> vector<32x32xf32>
    %cst_101 = arith.constant -1.000000e+30 : f32
    %320 = vector.broadcast %cst_101 : f32 to vector<32x32xf32>
    %321 = arith.select %315, %319, %320 : vector<32x32xi1>, vector<32x32xf32>
    %cst_102 = arith.constant dense<0xFF800000> : vector<32xf32>
    %322 = vector.multi_reduction <maximumf>, %321, %cst_102 [1] : vector<32x32xf32> to vector<32xf32>
    %323 = vector.shape_cast %322 : vector<32xf32> to vector<32x1xf32>
    %324 = vector.broadcast %323 : vector<32x1xf32> to vector<32x32xf32>
    %325 = arith.subf %321, %324 : vector<32x32xf32>
    %326 = math.exp %325 : vector<32x32xf32>
    %cst_103 = arith.constant dense<0.000000e+00> : vector<32xf32>
    %327 = vector.multi_reduction <add>, %326, %cst_103 [1] : vector<32x32xf32> to vector<32xf32>
    %328 = vector.shape_cast %327 : vector<32xf32> to vector<32x1xf32>
    %329 = tpu.reciprocal %328 {approx = true} : vector<32x1xf32> -> vector<32x1xf32>
    %330 = vector.broadcast %329 : vector<32x1xf32> to vector<32x32xf32>
    %331 = arith.mulf %326, %330 : vector<32x32xf32>
    %cst_104 = arith.constant dense<0.000000e+00> : vector<32x8xf32>
    %332 = tpu.matmul %331, %318, %cst_104 {dimension_numbers = #tpu.dot_dimension_numbers<[1], [0], [0], [1], [0, 0, 1, 1], [], []>} : vector<32x32xf32>, vector<32x8xf32>, vector<32x8xf32> -> vector<32x8xf32>
    %333 = vector.extract_strided_slice %283 {offsets = [0, 8], sizes = [32, 8], strides = [1, 1]} : vector<32x32xf32> to vector<32x8xf32>
    %334 = vector.extract_strided_slice %289 {offsets = [0, 8], sizes = [32, 8], strides = [1, 1]} : vector<32x32xf32> to vector<32x8xf32>
    %335 = vector.extract_strided_slice %290 {offsets = [0, 8], sizes = [32, 8], strides = [1, 1]} : vector<32x32xf32> to vector<32x8xf32>
    %cst_105 = arith.constant dense<0.000000e+00> : vector<32x32xf32>
    %336 = tpu.matmul %333, %334, %cst_105 {dimension_numbers = #tpu.dot_dimension_numbers<[1], [1], [0], [0], [0, 0, 1, 0], [], []>} : vector<32x8xf32>, vector<32x8xf32>, vector<32x32xf32> -> vector<32x32xf32>
    %cst_106 = arith.constant -1.000000e+30 : f32
    %337 = vector.broadcast %cst_106 : f32 to vector<32x32xf32>
    %338 = arith.select %315, %336, %337 : vector<32x32xi1>, vector<32x32xf32>
    %cst_107 = arith.constant dense<0xFF800000> : vector<32xf32>
    %339 = vector.multi_reduction <maximumf>, %338, %cst_107 [1] : vector<32x32xf32> to vector<32xf32>
    %340 = vector.shape_cast %339 : vector<32xf32> to vector<32x1xf32>
    %341 = vector.broadcast %340 : vector<32x1xf32> to vector<32x32xf32>
    %342 = arith.subf %338, %341 : vector<32x32xf32>
    %343 = math.exp %342 : vector<32x32xf32>
    %cst_108 = arith.constant dense<0.000000e+00> : vector<32xf32>
    %344 = vector.multi_reduction <add>, %343, %cst_108 [1] : vector<32x32xf32> to vector<32xf32>
    %345 = vector.shape_cast %344 : vector<32xf32> to vector<32x1xf32>
    %346 = tpu.reciprocal %345 {approx = true} : vector<32x1xf32> -> vector<32x1xf32>
    %347 = vector.broadcast %346 : vector<32x1xf32> to vector<32x32xf32>
    %348 = arith.mulf %343, %347 : vector<32x32xf32>
    %cst_109 = arith.constant dense<0.000000e+00> : vector<32x8xf32>
    %349 = tpu.matmul %348, %335, %cst_109 {dimension_numbers = #tpu.dot_dimension_numbers<[1], [0], [0], [1], [0, 0, 1, 1], [], []>} : vector<32x32xf32>, vector<32x8xf32>, vector<32x8xf32> -> vector<32x8xf32>
    %350 = vector.extract_strided_slice %283 {offsets = [0, 16], sizes = [32, 8], strides = [1, 1]} : vector<32x32xf32> to vector<32x8xf32>
    %351 = vector.extract_strided_slice %289 {offsets = [0, 16], sizes = [32, 8], strides = [1, 1]} : vector<32x32xf32> to vector<32x8xf32>
    %352 = vector.extract_strided_slice %290 {offsets = [0, 16], sizes = [32, 8], strides = [1, 1]} : vector<32x32xf32> to vector<32x8xf32>
    %cst_110 = arith.constant dense<0.000000e+00> : vector<32x32xf32>
    %353 = tpu.matmul %350, %351, %cst_110 {dimension_numbers = #tpu.dot_dimension_numbers<[1], [1], [0], [0], [0, 0, 1, 0], [], []>} : vector<32x8xf32>, vector<32x8xf32>, vector<32x32xf32> -> vector<32x32xf32>
    %cst_111 = arith.constant -1.000000e+30 : f32
    %354 = vector.broadcast %cst_111 : f32 to vector<32x32xf32>
    %355 = arith.select %315, %353, %354 : vector<32x32xi1>, vector<32x32xf32>
    %cst_112 = arith.constant dense<0xFF800000> : vector<32xf32>
    %356 = vector.multi_reduction <maximumf>, %355, %cst_112 [1] : vector<32x32xf32> to vector<32xf32>
    %357 = vector.shape_cast %356 : vector<32xf32> to vector<32x1xf32>
    %358 = vector.broadcast %357 : vector<32x1xf32> to vector<32x32xf32>
    %359 = arith.subf %355, %358 : vector<32x32xf32>
    %360 = math.exp %359 : vector<32x32xf32>
    %cst_113 = arith.constant dense<0.000000e+00> : vector<32xf32>
    %361 = vector.multi_reduction <add>, %360, %cst_113 [1] : vector<32x32xf32> to vector<32xf32>
    %362 = vector.shape_cast %361 : vector<32xf32> to vector<32x1xf32>
    %363 = tpu.reciprocal %362 {approx = true} : vector<32x1xf32> -> vector<32x1xf32>
    %364 = vector.broadcast %363 : vector<32x1xf32> to vector<32x32xf32>
    %365 = arith.mulf %360, %364 : vector<32x32xf32>
    %cst_114 = arith.constant dense<0.000000e+00> : vector<32x8xf32>
    %366 = tpu.matmul %365, %352, %cst_114 {dimension_numbers = #tpu.dot_dimension_numbers<[1], [0], [0], [1], [0, 0, 1, 1], [], []>} : vector<32x32xf32>, vector<32x8xf32>, vector<32x8xf32> -> vector<32x8xf32>
    %367 = vector.extract_strided_slice %283 {offsets = [0, 24], sizes = [32, 8], strides = [1, 1]} : vector<32x32xf32> to vector<32x8xf32>
    %368 = vector.extract_strided_slice %289 {offsets = [0, 24], sizes = [32, 8], strides = [1, 1]} : vector<32x32xf32> to vector<32x8xf32>
    %369 = vector.extract_strided_slice %290 {offsets = [0, 24], sizes = [32, 8], strides = [1, 1]} : vector<32x32xf32> to vector<32x8xf32>
    %cst_115 = arith.constant dense<0.000000e+00> : vector<32x32xf32>
    %370 = tpu.matmul %367, %368, %cst_115 {dimension_numbers = #tpu.dot_dimension_numbers<[1], [1], [0], [0], [0, 0, 1, 0], [], []>} : vector<32x8xf32>, vector<32x8xf32>, vector<32x32xf32> -> vector<32x32xf32>
    %cst_116 = arith.constant -1.000000e+30 : f32
    %371 = vector.broadcast %cst_116 : f32 to vector<32x32xf32>
    %372 = arith.select %315, %370, %371 : vector<32x32xi1>, vector<32x32xf32>
    %cst_117 = arith.constant dense<0xFF800000> : vector<32xf32>
    %373 = vector.multi_reduction <maximumf>, %372, %cst_117 [1] : vector<32x32xf32> to vector<32xf32>
    %374 = vector.shape_cast %373 : vector<32xf32> to vector<32x1xf32>
    %375 = vector.broadcast %374 : vector<32x1xf32> to vector<32x32xf32>
    %376 = arith.subf %372, %375 : vector<32x32xf32>
    %377 = math.exp %376 : vector<32x32xf32>
    %cst_118 = arith.constant dense<0.000000e+00> : vector<32xf32>
    %378 = vector.multi_reduction <add>, %377, %cst_118 [1] : vector<32x32xf32> to vector<32xf32>
    %379 = vector.shape_cast %378 : vector<32xf32> to vector<32x1xf32>
    %380 = tpu.reciprocal %379 {approx = true} : vector<32x1xf32> -> vector<32x1xf32>
    %381 = vector.broadcast %380 : vector<32x1xf32> to vector<32x32xf32>
    %382 = arith.mulf %377, %381 : vector<32x32xf32>
    %cst_119 = arith.constant dense<0.000000e+00> : vector<32x8xf32>
    %383 = tpu.matmul %382, %369, %cst_119 {dimension_numbers = #tpu.dot_dimension_numbers<[1], [0], [0], [1], [0, 0, 1, 1], [], []>} : vector<32x32xf32>, vector<32x8xf32>, vector<32x8xf32> -> vector<32x8xf32>
    %384 = tpu.concatenate %332, %349, %366, %383 in 1 : vector<32x8xf32>, vector<32x8xf32>, vector<32x8xf32>, vector<32x8xf32> -> vector<32x32xf32>
    %c384 = arith.constant 384 : index
    %c0_120 = arith.constant 0 : index
    %385 = vector.load %arg2[%c384, %c0_120] : memref<736x128xf32, #tpu.memory_space<vmem>>, vector<32x32xf32>
    %c416 = arith.constant 416 : index
    %c0_121 = arith.constant 0 : index
    %386 = vector.load %arg2[%c416, %c0_121] : memref<736x128xf32, #tpu.memory_space<vmem>>, vector<1x32xf32>
    %cst_122 = arith.constant dense<0.000000e+00> : vector<32x32xf32>
    %387 = tpu.matmul %384, %385, %cst_122 {dimension_numbers = #tpu.dot_dimension_numbers<[1], [0], [0], [1], [0, 0, 1, 1], [], []>} : vector<32x32xf32>, vector<32x32xf32>, vector<32x32xf32> -> vector<32x32xf32>
    %388 = vector.broadcast %386 : vector<1x32xf32> to vector<32x32xf32>
    %389 = arith.addf %387, %388 : vector<32x32xf32>
    %390 = arith.addf %158, %389 : vector<32x32xf32>
    %c424 = arith.constant 424 : index
    %c0_123 = arith.constant 0 : index
    %391 = vector.load %arg2[%c424, %c0_123] : memref<736x128xf32, #tpu.memory_space<vmem>>, vector<1x32xf32>
    %c425 = arith.constant 425 : index
    %c0_124 = arith.constant 0 : index
    %392 = vector.load %arg2[%c425, %c0_124] : memref<736x128xf32, #tpu.memory_space<vmem>>, vector<1x32xf32>
    %cst_125 = arith.constant dense<0.000000e+00> : vector<32xf32>
    %393 = vector.multi_reduction <add>, %390, %cst_125 [1] : vector<32x32xf32> to vector<32xf32>
    %394 = vector.shape_cast %393 : vector<32xf32> to vector<32x1xf32>
    %cst_126 = arith.constant 3.200000e+01 : f32
    %395 = vector.broadcast %cst_126 : f32 to vector<32x1xf32>
    %396 = arith.divf %394, %395 : vector<32x1xf32>
    %397 = vector.broadcast %396 : vector<32x1xf32> to vector<32x32xf32>
    %398 = arith.subf %390, %397 : vector<32x32xf32>
    %399 = arith.mulf %398, %398 : vector<32x32xf32>
    %cst_127 = arith.constant dense<0.000000e+00> : vector<32xf32>
    %400 = vector.multi_reduction <add>, %399, %cst_127 [1] : vector<32x32xf32> to vector<32xf32>
    %401 = vector.shape_cast %400 : vector<32xf32> to vector<32x1xf32>
    %cst_128 = arith.constant 3.200000e+01 : f32
    %402 = vector.broadcast %cst_128 : f32 to vector<32x1xf32>
    %403 = arith.divf %401, %402 : vector<32x1xf32>
    %404 = vector.broadcast %396 : vector<32x1xf32> to vector<32x32xf32>
    %405 = arith.subf %390, %404 : vector<32x32xf32>
    %cst_129 = arith.constant 9.99999974E-6 : f32
    %406 = vector.broadcast %cst_129 : f32 to vector<32x1xf32>
    %407 = arith.addf %403, %406 : vector<32x1xf32>
    %408 = math.rsqrt %407 : vector<32x1xf32>
    %409 = vector.broadcast %408 : vector<32x1xf32> to vector<32x32xf32>
    %410 = arith.mulf %405, %409 : vector<32x32xf32>
    %411 = vector.broadcast %391 : vector<1x32xf32> to vector<32x32xf32>
    %412 = arith.mulf %410, %411 : vector<32x32xf32>
    %413 = vector.broadcast %392 : vector<1x32xf32> to vector<32x32xf32>
    %414 = arith.addf %412, %413 : vector<32x32xf32>
    %c432 = arith.constant 432 : index
    %c0_130 = arith.constant 0 : index
    %415 = vector.load %arg2[%c432, %c0_130] : memref<736x128xf32, #tpu.memory_space<vmem>>, vector<32x64xf32>
    %c464 = arith.constant 464 : index
    %c0_131 = arith.constant 0 : index
    %416 = vector.load %arg2[%c464, %c0_131] : memref<736x128xf32, #tpu.memory_space<vmem>>, vector<1x64xf32>
    %cst_132 = arith.constant dense<0.000000e+00> : vector<32x64xf32>
    %417 = tpu.matmul %414, %415, %cst_132 {dimension_numbers = #tpu.dot_dimension_numbers<[1], [0], [0], [1], [0, 0, 1, 1], [], []>} : vector<32x32xf32>, vector<32x64xf32>, vector<32x64xf32> -> vector<32x64xf32>
    %418 = vector.broadcast %416 : vector<1x64xf32> to vector<32x64xf32>
    %419 = arith.addf %417, %418 : vector<32x64xf32>
    %cst_133 = arith.constant 0.000000e+00 : f32
    %420 = vector.broadcast %cst_133 : f32 to vector<32x64xf32>
    %421 = arith.maximumf %419, %420 : vector<32x64xf32>
    %c472 = arith.constant 472 : index
    %c0_134 = arith.constant 0 : index
    %422 = vector.load %arg2[%c472, %c0_134] : memref<736x128xf32, #tpu.memory_space<vmem>>, vector<64x32xf32>
    %c536 = arith.constant 536 : index
    %c0_135 = arith.constant 0 : index
    %423 = vector.load %arg2[%c536, %c0_135] : memref<736x128xf32, #tpu.memory_space<vmem>>, vector<1x32xf32>
    %cst_136 = arith.constant dense<0.000000e+00> : vector<32x32xf32>
    %424 = tpu.matmul %421, %422, %cst_136 {dimension_numbers = #tpu.dot_dimension_numbers<[1], [0], [0], [1], [0, 0, 1, 1], [], []>} : vector<32x64xf32>, vector<64x32xf32>, vector<32x32xf32> -> vector<32x32xf32>
    %425 = vector.broadcast %423 : vector<1x32xf32> to vector<32x32xf32>
    %426 = arith.addf %424, %425 : vector<32x32xf32>
    %427 = arith.addf %414, %426 : vector<32x32xf32>
    %c426 = arith.constant 426 : index
    %c0_137 = arith.constant 0 : index
    %428 = vector.load %arg2[%c426, %c0_137] : memref<736x128xf32, #tpu.memory_space<vmem>>, vector<1x32xf32>
    %c427 = arith.constant 427 : index
    %c0_138 = arith.constant 0 : index
    %429 = vector.load %arg2[%c427, %c0_138] : memref<736x128xf32, #tpu.memory_space<vmem>>, vector<1x32xf32>
    %cst_139 = arith.constant dense<0.000000e+00> : vector<32xf32>
    %430 = vector.multi_reduction <add>, %427, %cst_139 [1] : vector<32x32xf32> to vector<32xf32>
    %431 = vector.shape_cast %430 : vector<32xf32> to vector<32x1xf32>
    %cst_140 = arith.constant 3.200000e+01 : f32
    %432 = vector.broadcast %cst_140 : f32 to vector<32x1xf32>
    %433 = arith.divf %431, %432 : vector<32x1xf32>
    %434 = vector.broadcast %433 : vector<32x1xf32> to vector<32x32xf32>
    %435 = arith.subf %427, %434 : vector<32x32xf32>
    %436 = arith.mulf %435, %435 : vector<32x32xf32>
    %cst_141 = arith.constant dense<0.000000e+00> : vector<32xf32>
    %437 = vector.multi_reduction <add>, %436, %cst_141 [1] : vector<32x32xf32> to vector<32xf32>
    %438 = vector.shape_cast %437 : vector<32xf32> to vector<32x1xf32>
    %cst_142 = arith.constant 3.200000e+01 : f32
    %439 = vector.broadcast %cst_142 : f32 to vector<32x1xf32>
    %440 = arith.divf %438, %439 : vector<32x1xf32>
    %441 = vector.broadcast %433 : vector<32x1xf32> to vector<32x32xf32>
    %442 = arith.subf %427, %441 : vector<32x32xf32>
    %cst_143 = arith.constant 9.99999974E-6 : f32
    %443 = vector.broadcast %cst_143 : f32 to vector<32x1xf32>
    %444 = arith.addf %440, %443 : vector<32x1xf32>
    %445 = math.rsqrt %444 : vector<32x1xf32>
    %446 = vector.broadcast %445 : vector<32x1xf32> to vector<32x32xf32>
    %447 = arith.mulf %442, %446 : vector<32x32xf32>
    %448 = vector.broadcast %428 : vector<1x32xf32> to vector<32x32xf32>
    %449 = arith.mulf %447, %448 : vector<32x32xf32>
    %450 = vector.broadcast %429 : vector<1x32xf32> to vector<32x32xf32>
    %451 = arith.addf %449, %450 : vector<32x32xf32>
    %452 = arith.addf %158, %451 : vector<32x32xf32>
    %453 = arith.addf %452, %278 : vector<32x32xf32>
    %c544 = arith.constant 544 : index
    %c0_144 = arith.constant 0 : index
    %454 = vector.load %arg2[%c544, %c0_144] : memref<736x128xf32, #tpu.memory_space<vmem>>, vector<32x8xf32>
    %c576 = arith.constant 576 : index
    %c0_145 = arith.constant 0 : index
    %455 = vector.load %arg2[%c576, %c0_145] : memref<736x128xf32, #tpu.memory_space<vmem>>, vector<1x8xf32>
    %c577 = arith.constant 577 : index
    %c0_146 = arith.constant 0 : index
    %456 = vector.load %arg2[%c577, %c0_146] : memref<736x128xf32, #tpu.memory_space<vmem>>, vector<1x8xf32>
    %c578 = arith.constant 578 : index
    %c0_147 = arith.constant 0 : index
    %457 = vector.load %arg2[%c578, %c0_147] : memref<736x128xf32, #tpu.memory_space<vmem>>, vector<1x8xf32>
    %cst_148 = arith.constant dense<0.000000e+00> : vector<32x8xf32>
    %458 = tpu.matmul %453, %454, %cst_148 {dimension_numbers = #tpu.dot_dimension_numbers<[1], [0], [0], [1], [0, 0, 1, 1], [], []>} : vector<32x32xf32>, vector<32x8xf32>, vector<32x8xf32> -> vector<32x8xf32>
    %459 = vector.broadcast %455 : vector<1x8xf32> to vector<32x8xf32>
    %460 = arith.addf %458, %459 : vector<32x8xf32>
    %461 = vector.broadcast %456 : vector<1x8xf32> to vector<32x8xf32>
    %462 = arith.mulf %460, %461 : vector<32x8xf32>
    %463 = vector.broadcast %457 : vector<1x8xf32> to vector<32x8xf32>
    %464 = arith.addf %462, %463 : vector<32x8xf32>
    %cst_149 = arith.constant 0.000000e+00 : f32
    %465 = vector.broadcast %cst_149 : f32 to vector<32x8xf32>
    %466 = arith.maximumf %464, %465 : vector<32x8xf32>
    %c584 = arith.constant 584 : index
    %c0_150 = arith.constant 0 : index
    %467 = vector.load %arg2[%c584, %c0_150] : memref<736x128xf32, #tpu.memory_space<vmem>>, vector<8x32xf32>
    %c592 = arith.constant 592 : index
    %c0_151 = arith.constant 0 : index
    %468 = vector.load %arg2[%c592, %c0_151] : memref<736x128xf32, #tpu.memory_space<vmem>>, vector<1x32xf32>
    %c593 = arith.constant 593 : index
    %c0_152 = arith.constant 0 : index
    %469 = vector.load %arg2[%c593, %c0_152] : memref<736x128xf32, #tpu.memory_space<vmem>>, vector<1x32xf32>
    %c594 = arith.constant 594 : index
    %c0_153 = arith.constant 0 : index
    %470 = vector.load %arg2[%c594, %c0_153] : memref<736x128xf32, #tpu.memory_space<vmem>>, vector<1x32xf32>
    %cst_154 = arith.constant dense<0.000000e+00> : vector<32x32xf32>
    %471 = tpu.matmul %466, %467, %cst_154 {dimension_numbers = #tpu.dot_dimension_numbers<[1], [0], [0], [1], [0, 0, 1, 1], [], []>} : vector<32x8xf32>, vector<8x32xf32>, vector<32x32xf32> -> vector<32x32xf32>
    %472 = vector.broadcast %468 : vector<1x32xf32> to vector<32x32xf32>
    %473 = arith.addf %471, %472 : vector<32x32xf32>
    %474 = vector.broadcast %469 : vector<1x32xf32> to vector<32x32xf32>
    %475 = arith.mulf %473, %474 : vector<32x32xf32>
    %476 = vector.broadcast %470 : vector<1x32xf32> to vector<32x32xf32>
    %477 = arith.addf %475, %476 : vector<32x32xf32>
    %478 = vector.extract_strided_slice %453 {offsets = [0, 0], sizes = [16, 32], strides = [1, 1]} : vector<32x32xf32> to vector<16x32xf32>
    %cst_155 = arith.constant dense<0.000000e+00> : vector<32xf32>
    %479 = vector.multi_reduction <add>, %478, %cst_155 [0] : vector<16x32xf32> to vector<32xf32>
    %480 = vector.shape_cast %479 : vector<32xf32> to vector<1x32xf32>
    %cst_156 = arith.constant 1.600000e+01 : f32
    %481 = vector.broadcast %cst_156 : f32 to vector<1x32xf32>
    %482 = arith.divf %480, %481 : vector<1x32xf32>
    %483 = vector.extract_strided_slice %453 {offsets = [16, 0], sizes = [16, 32], strides = [1, 1]} : vector<32x32xf32> to vector<16x32xf32>
    %cst_157 = arith.constant dense<0.000000e+00> : vector<32xf32>
    %484 = vector.multi_reduction <add>, %483, %cst_157 [0] : vector<16x32xf32> to vector<32xf32>
    %485 = vector.shape_cast %484 : vector<32xf32> to vector<1x32xf32>
    %cst_158 = arith.constant 1.600000e+01 : f32
    %486 = vector.broadcast %cst_158 : f32 to vector<1x32xf32>
    %487 = arith.divf %485, %486 : vector<1x32xf32>
    %488 = tpu.concatenate %482, %487 in 0 : vector<1x32xf32>, vector<1x32xf32> -> vector<2x32xf32>
    %c600 = arith.constant 600 : index
    %c0_159 = arith.constant 0 : index
    %489 = vector.load %arg2[%c600, %c0_159] : memref<736x128xf32, #tpu.memory_space<vmem>>, vector<32x8xf32>
    %c632 = arith.constant 632 : index
    %c0_160 = arith.constant 0 : index
    %490 = vector.load %arg2[%c632, %c0_160] : memref<736x128xf32, #tpu.memory_space<vmem>>, vector<1x8xf32>
    %c633 = arith.constant 633 : index
    %c0_161 = arith.constant 0 : index
    %491 = vector.load %arg2[%c633, %c0_161] : memref<736x128xf32, #tpu.memory_space<vmem>>, vector<1x8xf32>
    %c634 = arith.constant 634 : index
    %c0_162 = arith.constant 0 : index
    %492 = vector.load %arg2[%c634, %c0_162] : memref<736x128xf32, #tpu.memory_space<vmem>>, vector<1x8xf32>
    %cst_163 = arith.constant dense<0.000000e+00> : vector<2x8xf32>
    %493 = tpu.matmul %488, %489, %cst_163 {dimension_numbers = #tpu.dot_dimension_numbers<[1], [0], [0], [1], [0, 0, 1, 1], [], []>} : vector<2x32xf32>, vector<32x8xf32>, vector<2x8xf32> -> vector<2x8xf32>
    %494 = vector.broadcast %490 : vector<1x8xf32> to vector<2x8xf32>
    %495 = arith.addf %493, %494 : vector<2x8xf32>
    %496 = vector.broadcast %491 : vector<1x8xf32> to vector<2x8xf32>
    %497 = arith.mulf %495, %496 : vector<2x8xf32>
    %498 = vector.broadcast %492 : vector<1x8xf32> to vector<2x8xf32>
    %499 = arith.addf %497, %498 : vector<2x8xf32>
    %cst_164 = arith.constant 0.000000e+00 : f32
    %500 = vector.broadcast %cst_164 : f32 to vector<2x8xf32>
    %501 = arith.maximumf %499, %500 : vector<2x8xf32>
    %c640 = arith.constant 640 : index
    %c0_165 = arith.constant 0 : index
    %502 = vector.load %arg2[%c640, %c0_165] : memref<736x128xf32, #tpu.memory_space<vmem>>, vector<8x32xf32>
    %c648 = arith.constant 648 : index
    %c0_166 = arith.constant 0 : index
    %503 = vector.load %arg2[%c648, %c0_166] : memref<736x128xf32, #tpu.memory_space<vmem>>, vector<1x32xf32>
    %c649 = arith.constant 649 : index
    %c0_167 = arith.constant 0 : index
    %504 = vector.load %arg2[%c649, %c0_167] : memref<736x128xf32, #tpu.memory_space<vmem>>, vector<1x32xf32>
    %c650 = arith.constant 650 : index
    %c0_168 = arith.constant 0 : index
    %505 = vector.load %arg2[%c650, %c0_168] : memref<736x128xf32, #tpu.memory_space<vmem>>, vector<1x32xf32>
    %cst_169 = arith.constant dense<0.000000e+00> : vector<2x32xf32>
    %506 = tpu.matmul %501, %502, %cst_169 {dimension_numbers = #tpu.dot_dimension_numbers<[1], [0], [0], [1], [0, 0, 1, 1], [], []>} : vector<2x8xf32>, vector<8x32xf32>, vector<2x32xf32> -> vector<2x32xf32>
    %507 = vector.broadcast %503 : vector<1x32xf32> to vector<2x32xf32>
    %508 = arith.addf %506, %507 : vector<2x32xf32>
    %509 = vector.broadcast %504 : vector<1x32xf32> to vector<2x32xf32>
    %510 = arith.mulf %508, %509 : vector<2x32xf32>
    %511 = vector.broadcast %505 : vector<1x32xf32> to vector<2x32xf32>
    %512 = arith.addf %510, %511 : vector<2x32xf32>
    %513 = vector.extract_strided_slice %512 {offsets = [0, 0], sizes = [1, 32], strides = [1, 1]} : vector<2x32xf32> to vector<1x32xf32>
    %514 = vector.shape_cast %513 : vector<1x32xf32> to vector<1x32xf32>
    %515 = vector.broadcast %514 : vector<1x32xf32> to vector<16x32xf32>
    %516 = vector.extract_strided_slice %512 {offsets = [1, 0], sizes = [1, 32], strides = [1, 1]} : vector<2x32xf32> to vector<1x32xf32>
    %517 = vector.shape_cast %516 : vector<1x32xf32> to vector<1x32xf32>
    %518 = vector.broadcast %517 : vector<1x32xf32> to vector<16x32xf32>
    %519 = tpu.concatenate %515, %518 in 0 : vector<16x32xf32>, vector<16x32xf32> -> vector<32x32xf32>
    %520 = arith.addf %477, %519 : vector<32x32xf32>
    %cst_170 = arith.constant 0.000000e+00 : f32
    %521 = vector.broadcast %cst_170 : f32 to vector<32x32xf32>
    %522 = arith.subf %521, %520 : vector<32x32xf32>
    %523 = math.exp %522 : vector<32x32xf32>
    %cst_171 = arith.constant 1.000000e+00 : f32
    %524 = vector.broadcast %cst_171 : f32 to vector<32x32xf32>
    %525 = arith.addf %524, %523 : vector<32x32xf32>
    %526 = tpu.reciprocal %525 {approx = true} : vector<32x32xf32> -> vector<32x32xf32>
    %527 = arith.subf %452, %278 : vector<32x32xf32>
    %528 = arith.mulf %526, %527 : vector<32x32xf32>
    %529 = arith.addf %278, %528 : vector<32x32xf32>
    %cst_172 = arith.constant 2.000000e+00 : f32
    %530 = vector.broadcast %cst_172 : f32 to vector<32x32xf32>
    %531 = arith.mulf %530, %529 : vector<32x32xf32>
    %532 = tpu.transpose %531, [1, 0] : vector<32x32xf32> -> vector<32x32xf32>
    %c96 = arith.constant 96 : index
    %c0_173 = arith.constant 0 : index
    %533 = vector.load %arg2[%c96, %c0_173] : memref<736x128xf32, #tpu.memory_space<vmem>>, vector<32x1xf32>
    %c96_174 = arith.constant 96 : index
    %c1_175 = arith.constant 1 : index
    %534 = vector.load %arg2[%c96_174, %c1_175] : memref<736x128xf32, #tpu.memory_space<vmem>>, vector<32x1xf32>
    %535 = vector.broadcast %533 : vector<32x1xf32> to vector<32x128xf32>
    %536 = arith.mulf %40, %535 : vector<32x128xf32>
    %537 = vector.broadcast %534 : vector<32x1xf32> to vector<32x128xf32>
    %538 = arith.addf %536, %537 : vector<32x128xf32>
    %cst_176 = arith.constant 0.000000e+00 : f32
    %539 = vector.broadcast %cst_176 : f32 to vector<32x128xf32>
    %540 = arith.maximumf %538, %539 : vector<32x128xf32>
    %c128 = arith.constant 128 : index
    %c0_177 = arith.constant 0 : index
    %541 = vector.load %arg2[%c128, %c0_177] : memref<736x128xf32, #tpu.memory_space<vmem>>, vector<16x32xf32>
    %c128_178 = arith.constant 128 : index
    %c32_179 = arith.constant 32 : index
    %542 = vector.load %arg2[%c128_178, %c32_179] : memref<736x128xf32, #tpu.memory_space<vmem>>, vector<16x1xf32>
    %cst_180 = arith.constant dense<0.000000e+00> : vector<16x128xf32>
    %543 = tpu.matmul %541, %540, %cst_180 {dimension_numbers = #tpu.dot_dimension_numbers<[1], [0], [0], [1], [0, 0, 1, 1], [], []>} : vector<16x32xf32>, vector<32x128xf32>, vector<16x128xf32> -> vector<16x128xf32>
    %544 = vector.broadcast %542 : vector<16x1xf32> to vector<16x128xf32>
    %545 = arith.addf %543, %544 : vector<16x128xf32>
    %cst_181 = arith.constant dense<0xFF800000> : vector<128xf32>
    %546 = vector.multi_reduction <maximumf>, %545, %cst_181 [0] : vector<16x128xf32> to vector<128xf32>
    %547 = vector.shape_cast %546 : vector<128xf32> to vector<1x128xf32>
    %548 = vector.broadcast %547 : vector<1x128xf32> to vector<16x128xf32>
    %549 = arith.subf %545, %548 : vector<16x128xf32>
    %550 = math.exp %549 : vector<16x128xf32>
    %cst_182 = arith.constant dense<0.000000e+00> : vector<128xf32>
    %551 = vector.multi_reduction <add>, %550, %cst_182 [0] : vector<16x128xf32> to vector<128xf32>
    %552 = vector.shape_cast %551 : vector<128xf32> to vector<1x128xf32>
    %553 = tpu.reciprocal %552 {approx = true} : vector<1x128xf32> -> vector<1x128xf32>
    %554 = vector.broadcast %553 : vector<1x128xf32> to vector<16x128xf32>
    %555 = arith.mulf %550, %554 : vector<16x128xf32>
    %556 = vector.extract_strided_slice %532 {offsets = [0, 0], sizes = [32, 16], strides = [1, 1]} : vector<32x32xf32> to vector<32x16xf32>
    %557 = vector.extract_strided_slice %555 {offsets = [0, 0], sizes = [16, 64], strides = [1, 1]} : vector<16x128xf32> to vector<16x64xf32>
    %cst_183 = arith.constant dense<0.000000e+00> : vector<32x64xf32>
    %558 = tpu.matmul %556, %557, %cst_183 {dimension_numbers = #tpu.dot_dimension_numbers<[1], [0], [0], [1], [0, 0, 1, 1], [], []>} : vector<32x16xf32>, vector<16x64xf32>, vector<32x64xf32> -> vector<32x64xf32>
    %559 = vector.extract_strided_slice %532 {offsets = [0, 16], sizes = [32, 16], strides = [1, 1]} : vector<32x32xf32> to vector<32x16xf32>
    %560 = vector.extract_strided_slice %555 {offsets = [0, 64], sizes = [16, 64], strides = [1, 1]} : vector<16x128xf32> to vector<16x64xf32>
    %cst_184 = arith.constant dense<0.000000e+00> : vector<32x64xf32>
    %561 = tpu.matmul %559, %560, %cst_184 {dimension_numbers = #tpu.dot_dimension_numbers<[1], [0], [0], [1], [0, 0, 1, 1], [], []>} : vector<32x16xf32>, vector<16x64xf32>, vector<32x64xf32> -> vector<32x64xf32>
    %562 = tpu.concatenate %558, %561 in 1 : vector<32x64xf32>, vector<32x64xf32> -> vector<32x128xf32>
    %563 = arith.addf %562, %0 : vector<32x128xf32>
    %c656 = arith.constant 656 : index
    %c0_185 = arith.constant 0 : index
    %564 = vector.load %arg2[%c656, %c0_185] : memref<736x128xf32, #tpu.memory_space<vmem>>, vector<8x32xf32>
    %c656_186 = arith.constant 656 : index
    %c32_187 = arith.constant 32 : index
    %565 = vector.load %arg2[%c656_186, %c32_187] : memref<736x128xf32, #tpu.memory_space<vmem>>, vector<8x1xf32>
    %c656_188 = arith.constant 656 : index
    %c33 = arith.constant 33 : index
    %566 = vector.load %arg2[%c656_188, %c33] : memref<736x128xf32, #tpu.memory_space<vmem>>, vector<8x1xf32>
    %c656_189 = arith.constant 656 : index
    %c34 = arith.constant 34 : index
    %567 = vector.load %arg2[%c656_189, %c34] : memref<736x128xf32, #tpu.memory_space<vmem>>, vector<8x1xf32>
    %cst_190 = arith.constant dense<0.000000e+00> : vector<8x128xf32>
    %568 = tpu.matmul %564, %563, %cst_190 {dimension_numbers = #tpu.dot_dimension_numbers<[1], [0], [0], [1], [0, 0, 1, 1], [], []>} : vector<8x32xf32>, vector<32x128xf32>, vector<8x128xf32> -> vector<8x128xf32>
    %569 = vector.broadcast %565 : vector<8x1xf32> to vector<8x128xf32>
    %570 = arith.addf %568, %569 : vector<8x128xf32>
    %571 = vector.broadcast %566 : vector<8x1xf32> to vector<8x128xf32>
    %572 = arith.mulf %570, %571 : vector<8x128xf32>
    %573 = vector.broadcast %567 : vector<8x1xf32> to vector<8x128xf32>
    %574 = arith.addf %572, %573 : vector<8x128xf32>
    %cst_191 = arith.constant 0.000000e+00 : f32
    %575 = vector.broadcast %cst_191 : f32 to vector<8x128xf32>
    %576 = arith.maximumf %574, %575 : vector<8x128xf32>
    %c664 = arith.constant 664 : index
    %c0_192 = arith.constant 0 : index
    %577 = vector.load %arg2[%c664, %c0_192] : memref<736x128xf32, #tpu.memory_space<vmem>>, vector<32x8xf32>
    %c664_193 = arith.constant 664 : index
    %c8 = arith.constant 8 : index
    %578 = vector.load %arg2[%c664_193, %c8] : memref<736x128xf32, #tpu.memory_space<vmem>>, vector<32x1xf32>
    %c664_194 = arith.constant 664 : index
    %c9 = arith.constant 9 : index
    %579 = vector.load %arg2[%c664_194, %c9] : memref<736x128xf32, #tpu.memory_space<vmem>>, vector<32x1xf32>
    %c664_195 = arith.constant 664 : index
    %c10 = arith.constant 10 : index
    %580 = vector.load %arg2[%c664_195, %c10] : memref<736x128xf32, #tpu.memory_space<vmem>>, vector<32x1xf32>
    %cst_196 = arith.constant dense<0.000000e+00> : vector<32x128xf32>
    %581 = tpu.matmul %577, %576, %cst_196 {dimension_numbers = #tpu.dot_dimension_numbers<[1], [0], [0], [1], [0, 0, 1, 1], [], []>} : vector<32x8xf32>, vector<8x128xf32>, vector<32x128xf32> -> vector<32x128xf32>
    %582 = vector.broadcast %578 : vector<32x1xf32> to vector<32x128xf32>
    %583 = arith.addf %581, %582 : vector<32x128xf32>
    %584 = vector.broadcast %579 : vector<32x1xf32> to vector<32x128xf32>
    %585 = arith.mulf %583, %584 : vector<32x128xf32>
    %586 = vector.broadcast %580 : vector<32x1xf32> to vector<32x128xf32>
    %587 = arith.addf %585, %586 : vector<32x128xf32>
    %588 = vector.extract_strided_slice %563 {offsets = [0, 0], sizes = [32, 64], strides = [1, 1]} : vector<32x128xf32> to vector<32x64xf32>
    %cst_197 = arith.constant dense<0.000000e+00> : vector<32xf32>
    %589 = vector.multi_reduction <add>, %588, %cst_197 [1] : vector<32x64xf32> to vector<32xf32>
    %590 = vector.shape_cast %589 : vector<32xf32> to vector<32x1xf32>
    %cst_198 = arith.constant 6.400000e+01 : f32
    %591 = vector.broadcast %cst_198 : f32 to vector<32x1xf32>
    %592 = arith.divf %590, %591 : vector<32x1xf32>
    %593 = vector.extract_strided_slice %563 {offsets = [0, 64], sizes = [32, 64], strides = [1, 1]} : vector<32x128xf32> to vector<32x64xf32>
    %cst_199 = arith.constant dense<0.000000e+00> : vector<32xf32>
    %594 = vector.multi_reduction <add>, %593, %cst_199 [1] : vector<32x64xf32> to vector<32xf32>
    %595 = vector.shape_cast %594 : vector<32xf32> to vector<32x1xf32>
    %cst_200 = arith.constant 6.400000e+01 : f32
    %596 = vector.broadcast %cst_200 : f32 to vector<32x1xf32>
    %597 = arith.divf %595, %596 : vector<32x1xf32>
    %598 = tpu.concatenate %592, %597 in 1 : vector<32x1xf32>, vector<32x1xf32> -> vector<32x2xf32>
    %c696 = arith.constant 696 : index
    %c0_201 = arith.constant 0 : index
    %599 = vector.load %arg2[%c696, %c0_201] : memref<736x128xf32, #tpu.memory_space<vmem>>, vector<8x32xf32>
    %c696_202 = arith.constant 696 : index
    %c32_203 = arith.constant 32 : index
    %600 = vector.load %arg2[%c696_202, %c32_203] : memref<736x128xf32, #tpu.memory_space<vmem>>, vector<8x1xf32>
    %c696_204 = arith.constant 696 : index
    %c33_205 = arith.constant 33 : index
    %601 = vector.load %arg2[%c696_204, %c33_205] : memref<736x128xf32, #tpu.memory_space<vmem>>, vector<8x1xf32>
    %c696_206 = arith.constant 696 : index
    %c34_207 = arith.constant 34 : index
    %602 = vector.load %arg2[%c696_206, %c34_207] : memref<736x128xf32, #tpu.memory_space<vmem>>, vector<8x1xf32>
    %cst_208 = arith.constant dense<0.000000e+00> : vector<8x2xf32>
    %603 = tpu.matmul %599, %598, %cst_208 {dimension_numbers = #tpu.dot_dimension_numbers<[1], [0], [0], [1], [0, 0, 1, 1], [], []>} : vector<8x32xf32>, vector<32x2xf32>, vector<8x2xf32> -> vector<8x2xf32>
    %604 = vector.broadcast %600 : vector<8x1xf32> to vector<8x2xf32>
    %605 = arith.addf %603, %604 : vector<8x2xf32>
    %606 = vector.broadcast %601 : vector<8x1xf32> to vector<8x2xf32>
    %607 = arith.mulf %605, %606 : vector<8x2xf32>
    %608 = vector.broadcast %602 : vector<8x1xf32> to vector<8x2xf32>
    %609 = arith.addf %607, %608 : vector<8x2xf32>
    %cst_209 = arith.constant 0.000000e+00 : f32
    %610 = vector.broadcast %cst_209 : f32 to vector<8x2xf32>
    %611 = arith.maximumf %609, %610 : vector<8x2xf32>
    %c704 = arith.constant 704 : index
    %c0_210 = arith.constant 0 : index
    %612 = vector.load %arg2[%c704, %c0_210] : memref<736x128xf32, #tpu.memory_space<vmem>>, vector<32x8xf32>
    %c704_211 = arith.constant 704 : index
    %c8_212 = arith.constant 8 : index
    %613 = vector.load %arg2[%c704_211, %c8_212] : memref<736x128xf32, #tpu.memory_space<vmem>>, vector<32x1xf32>
    %c704_213 = arith.constant 704 : index
    %c9_214 = arith.constant 9 : index
    %614 = vector.load %arg2[%c704_213, %c9_214] : memref<736x128xf32, #tpu.memory_space<vmem>>, vector<32x1xf32>
    %c704_215 = arith.constant 704 : index
    %c10_216 = arith.constant 10 : index
    %615 = vector.load %arg2[%c704_215, %c10_216] : memref<736x128xf32, #tpu.memory_space<vmem>>, vector<32x1xf32>
    %cst_217 = arith.constant dense<0.000000e+00> : vector<32x2xf32>
    %616 = tpu.matmul %612, %611, %cst_217 {dimension_numbers = #tpu.dot_dimension_numbers<[1], [0], [0], [1], [0, 0, 1, 1], [], []>} : vector<32x8xf32>, vector<8x2xf32>, vector<32x2xf32> -> vector<32x2xf32>
    %617 = vector.broadcast %613 : vector<32x1xf32> to vector<32x2xf32>
    %618 = arith.addf %616, %617 : vector<32x2xf32>
    %619 = vector.broadcast %614 : vector<32x1xf32> to vector<32x2xf32>
    %620 = arith.mulf %618, %619 : vector<32x2xf32>
    %621 = vector.broadcast %615 : vector<32x1xf32> to vector<32x2xf32>
    %622 = arith.addf %620, %621 : vector<32x2xf32>
    %623 = vector.extract_strided_slice %622 {offsets = [0, 0], sizes = [32, 1], strides = [1, 1]} : vector<32x2xf32> to vector<32x1xf32>
    %624 = vector.shape_cast %623 : vector<32x1xf32> to vector<32x1xf32>
    %625 = vector.broadcast %624 : vector<32x1xf32> to vector<32x64xf32>
    %626 = vector.extract_strided_slice %622 {offsets = [0, 1], sizes = [32, 1], strides = [1, 1]} : vector<32x2xf32> to vector<32x1xf32>
    %627 = vector.shape_cast %626 : vector<32x1xf32> to vector<32x1xf32>
    %628 = vector.broadcast %627 : vector<32x1xf32> to vector<32x64xf32>
    %629 = tpu.concatenate %625, %628 in 1 : vector<32x64xf32>, vector<32x64xf32> -> vector<32x128xf32>
    %630 = arith.addf %587, %629 : vector<32x128xf32>
    %cst_218 = arith.constant 0.000000e+00 : f32
    %631 = vector.broadcast %cst_218 : f32 to vector<32x128xf32>
    %632 = arith.subf %631, %630 : vector<32x128xf32>
    %633 = math.exp %632 : vector<32x128xf32>
    %cst_219 = arith.constant 1.000000e+00 : f32
    %634 = vector.broadcast %cst_219 : f32 to vector<32x128xf32>
    %635 = arith.addf %634, %633 : vector<32x128xf32>
    %636 = tpu.reciprocal %635 {approx = true} : vector<32x128xf32> -> vector<32x128xf32>
    %637 = arith.subf %562, %0 : vector<32x128xf32>
    %638 = arith.mulf %636, %637 : vector<32x128xf32>
    %639 = arith.addf %0, %638 : vector<32x128xf32>
    %cst_220 = arith.constant 2.000000e+00 : f32
    %640 = vector.broadcast %cst_220 : f32 to vector<32x128xf32>
    %641 = arith.mulf %640, %639 : vector<32x128xf32>
    %c0_221 = arith.constant 0 : index
    %c0_222 = arith.constant 0 : index
    %642 = vector.load %arg3[%c0_221, %c0_222] : memref<32x128xf32, #tpu.memory_space<vmem>>, vector<32x128xf32>
    tpu.vector_store %arg3[%c0_221, %c0_222], %641 {strides = array<i32>} : memref<32x128xf32, #tpu.memory_space<vmem>>, vector<32x128xf32>,
    return
  }
}

</mosaic_0001>

<llo_original>
// kernel: gcgt_forward.1
$region0: #{gcgt_forward.1}
  #allocation0 [shape = 'u32[]', space=smem, size = 0x4, offset = 0x4, fixed_abs, tag = 'smem constant byte address 0x4 - core index']
  #allocation1 [shape = 'u32[144,128]{1,0:T(1,128)}', space=vmem, size = 0x12000, scoped, tag = 'internal scratch']
  %s0 = inlined_call_operand.vmem [shape: f32[32,128], index: 0, kind: input, shape index: {}]
  %s1 = inlined_call_operand.vmem [shape: f32[32,128], index: 1, kind: input, shape index: {}]
  %s2 = inlined_call_operand.hbm [shape: f32[736,128], index: 2, kind: input, shape index: {}]
  %s3 = inlined_call_operand.vmem [shape: f32[32,128], index: 3, kind: output, shape index: {}]
  %s4 = sld [smem:[#allocation0]]
  $region26: #{gcgt_forward.1} parent=0
    _
  %s6 = ssub.s32 1, %s4
  %s7 = scalar_select 0, %s6, %s4
  $region1: #{gcgt_forward.1} parent=0
    #allocation2 [shape = 'u8[376832]{0}', space=vmem, size = 0x5c000, scoped, tag = 'input window, operand 2, single buffered']
    #allocation3 [shape = 's32[1]{0}', space=sflag, size = 0x4, scoped, tag = 'scoped memory for gcgt_forward.1']
    %8 = vsyncpa [#allocation3], 0
    // Predicated region
    $region2: #{gcgt_forward.1} parent=1 // pred_check
      _
    $region3: #{gcgt_forward.1} parent=1 // pred_check_branch
      %10 = sbr.rel (0) target = $region5
    $region4: #{gcgt_forward.1} parent=1 // pred_region
      _
    $region5: #{gcgt_forward.1} parent=1 // pred_fallthru
      _
    // Predicated region
    $region6: #{gcgt_forward.1} parent=1 // pred_check
      _
    $region7: #{gcgt_forward.1} parent=1 // pred_check_branch
      %12 = sbr.rel (0) target = $region9
    $region8: #{gcgt_forward.1} parent=1 // pred_region
      _
    $region9: #{gcgt_forward.1} parent=1 // pred_fallthru
      _
    // Predicated region
    $region10: #{gcgt_forward.1} parent=1 // pred_check
      _
    $region11: #{gcgt_forward.1} parent=1 // pred_check_branch
      %14 = sbr.rel (0) target = $region13
    $region12: #{gcgt_forward.1} parent=1 // pred_region
      %s16 = ssub.s32 11776, 11776
      %17 = vsyncadd [#allocation3], %s16
      %s18 = sshll.u32 [#allocation2], 4
      %s19 = int_to_ptr.vmem [resolvable:$true] %s18
      %24 = dma.hbm_to_vmem [thread:$0]  %s2, 11776, %s19, [#allocation3], 128, 128, 8
    $region13: #{gcgt_forward.1} parent=1 // pred_fallthru
      _
    // Predicated region
    $region14: #{gcgt_forward.1} parent=1 // pred_check
      _
    $region15: #{gcgt_forward.1} parent=1 // pred_check_branch
      %26 = sbr.rel (0) target = $region17
    $region16: #{gcgt_forward.1} parent=1 // pred_region
      %27 = dma.done [#allocation3], 11776
    $region17: #{gcgt_forward.1} parent=1 // pred_fallthru
      _
    %v28 = vld [vmem:[%s0] sm:$0xff]
    %v29 = vld [vmem:[%s0 + $0x8] sm:$0xff]
    %v30 = vld [vmem:[%s0 + $0x10] sm:$0xff]
    %v31 = vld [vmem:[%s0 + $0x18] sm:$0xff]
    %v32 = vld [vmem:[%s1] sm:$0xff]
    %v33 = vld [vmem:[%s1 + $0x8] sm:$0xff]
    %v34 = vld [vmem:[%s1 + $0x10] sm:$0xff]
    %v35 = vld [vmem:[%s1 + $0x18] sm:$0xff]
    %vm36 = vcmask 523264
    %v37 = vsel %vm36, %v28, 0.0
    %38 = vadd.xlane.f32.xlu0 %v37
    %v39 = vpop.xlane.xlu0 %38
    %v40 = vsel %vm36, %v29, 0.0
    %41 = vadd.xlane.f32.xlu0 %v40
    %v42 = vpop.xlane.xlu0 %41
    %v43 = vsel %vm36, %v30, 0.0
    %44 = vadd.xlane.f32.xlu0 %v43
    %v45 = vpop.xlane.xlu0 %44
    %v46 = vsel %vm36, %v31, 0.0
    %47 = vadd.xlane.f32.xlu0 %v46
    %v48 = vpop.xlane.xlu0 %47
    %v49 = vrcp.pop 64.0
    %v50 = vmul.f32 %v39, %v49
    %v51 = vmul.f32 %v42, %v49
    %v52 = vmul.f32 %v45, %v49
    %v53 = vmul.f32 %v48, %v49
    %v54 = vsub.f32 %v28, %v50
    %v55 = vsub.f32 %v29, %v51
    %v56 = vsub.f32 %v30, %v52
    %v57 = vsub.f32 %v31, %v53
    %v58 = vmul.f32 %v54, %v54
    %v59 = vmul.f32 %v55, %v55
    %v60 = vmul.f32 %v56, %v56
    %v61 = vmul.f32 %v57, %v57
    %v62 = vsel %vm36, %v58, 0.0
    %63 = vadd.xlane.f32.xlu0 %v62
    %v64 = vpop.xlane.xlu0 %63
    %v65 = vsel %vm36, %v59, 0.0
    %66 = vadd.xlane.f32.xlu0 %v65
    %v67 = vpop.xlane.xlu0 %66
    %v68 = vsel %vm36, %v60, 0.0
    %69 = vadd.xlane.f32.xlu0 %v68
    %v70 = vpop.xlane.xlu0 %69
    %v71 = vsel %vm36, %v61, 0.0
    %72 = vadd.xlane.f32.xlu0 %v71
    %v73 = vpop.xlane.xlu0 %72
    %v74 = vmul.f32 %v64, %v49
    %v75 = vmul.f32 %v67, %v49
    %v76 = vmul.f32 %v70, %v49
    %v77 = vmul.f32 %v73, %v49
    %v78 = vadd.f32 %v74, 0.001
    %v79 = vadd.f32 %v75, 0.001
    %v80 = vadd.f32 %v76, 0.001
    %v81 = vadd.f32 %v77, 0.001
    %v82 = vrsqrt.pop %v78
    %v83 = vrsqrt.pop %v79
    %v84 = vrsqrt.pop %v80
    %v85 = vrsqrt.pop %v81
    %v86 = vmul.f32 %v54, %v82
    %v87 = vmul.f32 %v55, %v83
    %v88 = vmul.f32 %v56, %v84
    %v89 = vmul.f32 %v57, %v85
    %94 = vrot.lane.b32.xlu0 %v28, 64
    %v95 = vpop.permute.xlu0 %94
    %96 = vrot.lane.b32.xlu0 %v29, 64
    %v97 = vpop.permute.xlu0 %96
    %98 = vrot.lane.b32.xlu0 %v30, 64
    %v99 = vpop.permute.xlu0 %98
    %100 = vrot.lane.b32.xlu0 %v31, 64
    %v101 = vpop.permute.xlu0 %100
    %v106 = vsel %vm36, %v95, 0.0
    %107 = vadd.xlane.f32.xlu0 %v106
    %v108 = vpop.xlane.xlu0 %107
    %v109 = vsel %vm36, %v97, 0.0
    %110 = vadd.xlane.f32.xlu0 %v109
    %v111 = vpop.xlane.xlu0 %110
    %v112 = vsel %vm36, %v99, 0.0
    %113 = vadd.xlane.f32.xlu0 %v112
    %v114 = vpop.xlane.xlu0 %113
    %v115 = vsel %vm36, %v101, 0.0
    %116 = vadd.xlane.f32.xlu0 %v115
    %v117 = vpop.xlane.xlu0 %116
    %v118 = vmul.f32 %v108, %v49
    %v119 = vmul.f32 %v111, %v49
    %v120 = vmul.f32 %v114, %v49
    %v121 = vmul.f32 %v117, %v49
    %v122 = vsub.f32 %v28, %v118
    %v123 = vsub.f32 %v29, %v119
    %v124 = vsub.f32 %v30, %v120
    %v125 = vsub.f32 %v31, %v121
    %v126 = vmul.f32 %v122, %v122
    %v127 = vmul.f32 %v123, %v123
    %v128 = vmul.f32 %v124, %v124
    %v129 = vmul.f32 %v125, %v125
    %134 = vrot.lane.b32.xlu0 %v126, 64
    %v135 = vpop.permute.xlu0 %134
    %136 = vrot.lane.b32.xlu0 %v127, 64
    %v137 = vpop.permute.xlu0 %136
    %138 = vrot.lane.b32.xlu0 %v128, 64
    %v139 = vpop.permute.xlu0 %138
    %140 = vrot.lane.b32.xlu0 %v129, 64
    %v141 = vpop.permute.xlu0 %140
    %v146 = vsel %vm36, %v135, 0.0
    %147 = vadd.xlane.f32.xlu0 %v146
    %v148 = vpop.xlane.xlu0 %147
    %v149 = vsel %vm36, %v137, 0.0
    %150 = vadd.xlane.f32.xlu0 %v149
    %v151 = vpop.xlane.xlu0 %150
    %v152 = vsel %vm36, %v139, 0.0
    %153 = vadd.xlane.f32.xlu0 %v152
    %v154 = vpop.xlane.xlu0 %153
    %v155 = vsel %vm36, %v141, 0.0
    %156 = vadd.xlane.f32.xlu0 %v155
    %v157 = vpop.xlane.xlu0 %156
    %v158 = vmul.f32 %v148, %v49
    %v159 = vmul.f32 %v151, %v49
    %v160 = vmul.f32 %v154, %v49
    %v161 = vmul.f32 %v157, %v49
    %v162 = vadd.f32 %v158, 0.001
    %v163 = vadd.f32 %v159, 0.001
    %v164 = vadd.f32 %v160, 0.001
    %v165 = vadd.f32 %v161, 0.001
    %v166 = vrsqrt.pop %v162
    %v167 = vrsqrt.pop %v163
    %v168 = vrsqrt.pop %v164
    %v169 = vrsqrt.pop %v165
    %v170 = vmul.f32 %v122, %v166
    %v171 = vmul.f32 %v123, %v167
    %v172 = vmul.f32 %v124, %v168
    %v173 = vmul.f32 %v125, %v169
    %v174 = vsel %vm36, %v86, %v170
    %v175 = vsel %vm36, %v87, %v171
    %v176 = vsel %vm36, %v88, %v172
    %v177 = vsel %vm36, %v89, %v173
    %v178 = vsel %vm36, %v32, 0.0
    %179 = vadd.xlane.f32.xlu0 %v178
    %v180 = vpop.xlane.xlu0 %179
    %v181 = vsel %vm36, %v33, 0.0
    %182 = vadd.xlane.f32.xlu0 %v181
    %v183 = vpop.xlane.xlu0 %182
    %v184 = vsel %vm36, %v34, 0.0
    %185 = vadd.xlane.f32.xlu0 %v184
    %v186 = vpop.xlane.xlu0 %185
    %v187 = vsel %vm36, %v35, 0.0
    %188 = vadd.xlane.f32.xlu0 %v187
    %v189 = vpop.xlane.xlu0 %188
    %v190 = vmul.f32 %v180, %v49
    %v191 = vmul.f32 %v183, %v49
    %v192 = vmul.f32 %v186, %v49
    %v193 = vmul.f32 %v189, %v49
    %v194 = vsub.f32 %v32, %v190
    %v195 = vsub.f32 %v33, %v191
    %v196 = vsub.f32 %v34, %v192
    %v197 = vsub.f32 %v35, %v193
    %v198 = vmul.f32 %v194, %v194
    %v199 = vmul.f32 %v195, %v195
    %v200 = vmul.f32 %v196, %v196
    %v201 = vmul.f32 %v197, %v197
    %v202 = vsel %vm36, %v198, 0.0
    %203 = vadd.xlane.f32.xlu0 %v202
    %v204 = vpop.xlane.xlu0 %203
    %v205 = vsel %vm36, %v199, 0.0
    %206 = vadd.xlane.f32.xlu0 %v205
    %v207 = vpop.xlane.xlu0 %206
    %v208 = vsel %vm36, %v200, 0.0
    %209 = vadd.xlane.f32.xlu0 %v208
    %v210 = vpop.xlane.xlu0 %209
    %v211 = vsel %vm36, %v201, 0.0
    %212 = vadd.xlane.f32.xlu0 %v211
    %v213 = vpop.xlane.xlu0 %212
    %v214 = vmul.f32 %v204, %v49
    %v215 = vmul.f32 %v207, %v49
    %v216 = vmul.f32 %v210, %v49
    %v217 = vmul.f32 %v213, %v49
    %v218 = vadd.f32 %v214, 0.001
    %v219 = vadd.f32 %v215, 0.001
    %v220 = vadd.f32 %v216, 0.001
    %v221 = vadd.f32 %v217, 0.001
    %v222 = vrsqrt.pop %v218
    %v223 = vrsqrt.pop %v219
    %v224 = vrsqrt.pop %v220
    %v225 = vrsqrt.pop %v221
    %v226 = vmul.f32 %v194, %v222
    %v227 = vmul.f32 %v195, %v223
    %v228 = vmul.f32 %v196, %v224
    %v229 = vmul.f32 %v197, %v225
    %234 = vrot.lane.b32.xlu0 %v32, 64
    %v235 = vpop.permute.xlu0 %234
    %236 = vrot.lane.b32.xlu0 %v33, 64
    %v237 = vpop.permute.xlu0 %236
    %238 = vrot.lane.b32.xlu0 %v34, 64
    %v239 = vpop.permute.xlu0 %238
    %240 = vrot.lane.b32.xlu0 %v35, 64
    %v241 = vpop.permute.xlu0 %240
    %v246 = vsel %vm36, %v235, 0.0
    %247 = vadd.xlane.f32.xlu0 %v246
    %v248 = vpop.xlane.xlu0 %247
    %v249 = vsel %vm36, %v237, 0.0
    %250 = vadd.xlane.f32.xlu0 %v249
    %v251 = vpop.xlane.xlu0 %250
    %v252 = vsel %vm36, %v239, 0.0
    %253 = vadd.xlane.f32.xlu0 %v252
    %v254 = vpop.xlane.xlu0 %253
    %v255 = vsel %vm36, %v241, 0.0
    %256 = vadd.xlane.f32.xlu0 %v255
    %v257 = vpop.xlane.xlu0 %256
    %v258 = vmul.f32 %v248, %v49
    %v259 = vmul.f32 %v251, %v49
    %v260 = vmul.f32 %v254, %v49
    %v261 = vmul.f32 %v257, %v49
    %v262 = vsub.f32 %v32, %v258
    %v263 = vsub.f32 %v33, %v259
    %v264 = vsub.f32 %v34, %v260
    %v265 = vsub.f32 %v35, %v261
    %v266 = vmul.f32 %v262, %v262
    %v267 = vmul.f32 %v263, %v263
    %v268 = vmul.f32 %v264, %v264
    %v269 = vmul.f32 %v265, %v265
    %274 = vrot.lane.b32.xlu0 %v266, 64
    %v275 = vpop.permute.xlu0 %274
    %276 = vrot.lane.b32.xlu0 %v267, 64
    %v277 = vpop.permute.xlu0 %276
    %278 = vrot.lane.b32.xlu0 %v268, 64
    %v279 = vpop.permute.xlu0 %278
    %280 = vrot.lane.b32.xlu0 %v269, 64
    %v281 = vpop.permute.xlu0 %280
    %v286 = vsel %vm36, %v275, 0.0
    %287 = vadd.xlane.f32.xlu0 %v286
    %v288 = vpop.xlane.xlu0 %287
    %v289 = vsel %vm36, %v277, 0.0
    %290 = vadd.xlane.f32.xlu0 %v289
    %v291 = vpop.xlane.xlu0 %290
    %v292 = vsel %vm36, %v279, 0.0
    %293 = vadd.xlane.f32.xlu0 %v292
    %v294 = vpop.xlane.xlu0 %293
    %v295 = vsel %vm36, %v281, 0.0
    %296 = vadd.xlane.f32.xlu0 %v295
    %v297 = vpop.xlane.xlu0 %296
    %v298 = vmul.f32 %v288, %v49
    %v299 = vmul.f32 %v291, %v49
    %v300 = vmul.f32 %v294, %v49
    %v301 = vmul.f32 %v297, %v49
    %v302 = vadd.f32 %v298, 0.001
    %v303 = vadd.f32 %v299, 0.001
    %v304 = vadd.f32 %v300, 0.001
    %v305 = vadd.f32 %v301, 0.001
    %v306 = vrsqrt.pop %v302
    %v307 = vrsqrt.pop %v303
    %v308 = vrsqrt.pop %v304
    %v309 = vrsqrt.pop %v305
    %v310 = vmul.f32 %v262, %v306
    %v311 = vmul.f32 %v263, %v307
    %v312 = vmul.f32 %v264, %v308
    %v313 = vmul.f32 %v265, %v309
    %v314 = vsel %vm36, %v226, %v310
    %v315 = vsel %vm36, %v227, %v311
    %v316 = vsel %vm36, %v228, %v312
    %v317 = vsel %vm36, %v229, %v313
    %v318 = vld [vmem:[#allocation2] sm:$0xff]
    %v319 = vld [vmem:[#allocation2 + $0x8] sm:$0xff]
    %v320 = vld [vmem:[#allocation2 + $0x10] sm:$0xff]
    %v321 = vld [vmem:[#allocation2 + $0x18] sm:$0xff]
    %323 = vset.pattern.permute.xlu0 0
    %324 = vperm.xlu0 %323, %v318
    %v325 = vpop.permute.xlu0 %324
    %328 = vset.pattern.permute.xlu0 0
    %329 = vperm.xlu0 %328, %v319
    %v330 = vpop.permute.xlu0 %329
    %333 = vset.pattern.permute.xlu0 0
    %334 = vperm.xlu0 %333, %v320
    %v335 = vpop.permute.xlu0 %334
    %338 = vset.pattern.permute.xlu0 0
    %339 = vperm.xlu0 %338, %v321
    %v340 = vpop.permute.xlu0 %339
    %v342 = vmul.f32 %v174, %v325
    %v343 = vmul.f32 %v175, %v330
    %v344 = vmul.f32 %v176, %v335
    %v345 = vmul.f32 %v177, %v340
    %346 = vset.pattern.permute.xlu0 1
    %347 = vperm.xlu0 %346, %v318
    %v348 = vpop.permute.xlu0 %347
    %350 = vset.pattern.permute.xlu0 1
    %351 = vperm.xlu0 %350, %v319
    %v352 = vpop.permute.xlu0 %351
    %354 = vset.pattern.permute.xlu0 1
    %355 = vperm.xlu0 %354, %v320
    %v356 = vpop.permute.xlu0 %355
    %358 = vset.pattern.permute.xlu0 1
    %359 = vperm.xlu0 %358, %v321
    %v360 = vpop.permute.xlu0 %359
    %v362 = vadd.f32 %v342, %v348
    %v363 = vadd.f32 %v343, %v352
    %v364 = vadd.f32 %v344, %v356
    %v365 = vadd.f32 %v345, %v360
    %v366 = vmax.f32 %v362, 0.0
    %v367 = vmax.f32 %v363, 0.0
    %v368 = vmax.f32 %v364, 0.0
    %v369 = vmax.f32 %v365, 0.0
    %v370 = vld [vmem:[#allocation2 + $0x20] sm:$0xff]
    %v371 = vld [vmem:[#allocation2 + $0x28] sm:$0xff]
    %373 = vset.pattern.permute.xlu0 32
    %374 = vperm.xlu0 %373, %v370
    %v375 = vpop.permute.xlu0 %374
    %378 = vset.pattern.permute.xlu0 32
    %379 = vperm.xlu0 %378, %v371
    %v380 = vpop.permute.xlu0 %379
    %vm382 = vcmask 261120
    %v383 = vsel %vm382, %v370, 0
    %v385 = vsel %vm382, %v371, 0
    %387 = vmatprep.subr.mxu0 0.0
    %388 = vmatpush1.msra.mxu0 %v366
    %389 = vmatprep.subr.mxu0 0.0
    %390 = vmatpush1.msra.mxu0 %v367
    %391 = vmatprep.subr.mxu0 0.0
    %392 = vmatpush1.msra.mxu0 %v368
    %393 = vmatprep.subr.mxu0 0.0
    %394 = vmatpush1.msra.mxu0 %v369
    %395 = vmatprep.subr.mxu0 0.0
    %396 = vmatpush1.msra.mxu0 0.0
    %397 = vmatprep.subr.mxu0 0.0
    %398 = vmatpush1.msra.mxu0 0.0
    %399 = vmatprep.subr.mxu0 0.0
    %400 = vmatpush1.msra.mxu0 0.0
    %401 = vmatprep.subr.mxu0 0.0
    %402 = vmatpush1.msra.mxu0 0.0
    %403 = vmatprep.subr.mxu0 0.0
    %404 = vmatpush1.msra.mxu0 0.0
    %405 = vmatprep.subr.mxu0 0.0
    %406 = vmatpush1.msra.mxu0 0.0
    %407 = vmatprep.subr.mxu0 0.0
    %408 = vmatpush1.msra.mxu0 0.0
    %409 = vmatprep.subr.mxu0 0.0
    %410 = vmatpush1.msra.mxu0 0.0
    %411 = vmatprep.subr.mxu0 0.0
    %412 = vmatpush1.msra.mxu0 0.0
    %413 = vmatprep.subr.mxu0 0.0
    %414 = vmatpush1.msra.mxu0 0.0
    %415 = vmatprep.subr.mxu0 0.0
    %416 = vmatpush1.msra.mxu0 0.0
    %417 = vmatprep.subr.mxu0 0.0
    %418 = vmatpush1.msra.mxu0 0.0
    %419 = vmatprep.subr.mxu0 0.0
    %420 = vmatpush1.msra.mxu0 0.0
    %421 = vmatprep.subr.mxu0 0.0
    %422 = vmatpush1.msra.mxu0 0.0
    %423 = vmatprep.subr.mxu0 0.0
    %424 = vmatpush1.msra.mxu0 0.0
    %425 = vmatprep.subr.mxu0 0.0
    %426 = vmatpush1.msra.mxu0 0.0
    %427 = vmatprep.subr.mxu0 0.0
    %428 = vmatpush1.msra.mxu0 0.0
    %429 = vmatprep.subr.mxu0 0.0
    %430 = vmatpush1.msra.mxu0 0.0
    %431 = vmatprep.subr.mxu0 0.0
    %432 = vmatpush1.msra.mxu0 0.0
    %433 = vmatprep.subr.mxu0 0.0
    %434 = vmatpush1.msra.mxu0 0.0
    %435 = vmatprep.subr.mxu0 0.0
    %436 = vmatpush1.msra.mxu0 0.0
    %437 = vmatprep.subr.mxu0 0.0
    %438 = vmatpush1.msra.mxu0 0.0
    %439 = vmatprep.subr.mxu0 0.0
    %440 = vmatpush1.msra.mxu0 0.0
    %441 = vmatprep.subr.mxu0 0.0
    %442 = vmatpush1.msra.mxu0 0.0
    %443 = vmatprep.subr.mxu0 0.0
    %444 = vmatpush1.msra.mxu0 0.0
    %445 = vmatprep.subr.mxu0 0.0
    %446 = vmatpush1.msra.mxu0 0.0
    %447 = vmatprep.subr.mxu0 0.0
    %448 = vmatpush1.msra.mxu0 0.0
    %449 = vmatprep.subr.mxu0 0.0
    %450 = vmatpush1.msra.mxu0 0.0
    %451 = vmatprep.mubr.f32.mxu0 0.0
    %452 = vmatmul.mubr.f32.gmra.mrb[0].mxu0 %v383
    %v453 = vpop.f32.mrb[0].mxu0
    %v454 = vadd.f32 %v375, %v453
    %v455 = vpop.f32.mrb[0].mxu0
    %456 = vmatprep.mubr.f32.mxu0 0.0
    %457 = vmatmul.mubr.f32.gmra.mrb[0].mxu0 %v385
    %v458 = vpop.f32.mrb[0].mxu0
    %v459 = vadd.f32 %v380, %v458
    %v460 = vpop.f32.mrb[0].mxu0
    %461 = vdwg.mxu0
    %v462 = vld [vmem:[#allocation2 + $0x30] sm:$0xff]
    %v463 = vld [vmem:[#allocation2 + $0x38] sm:$0xff]
    %v464 = vld [vmem:[#allocation2 + $0x40] sm:$0xff]
    %v465 = vld [vmem:[#allocation2 + $0x48] sm:$0xff]
    %467 = vset.pattern.permute.xlu0 0
    %468 = vperm.xlu0 %467, %v462
    %v469 = vpop.permute.xlu0 %468
    %472 = vset.pattern.permute.xlu0 0
    %473 = vperm.xlu0 %472, %v463
    %v474 = vpop.permute.xlu0 %473
    %477 = vset.pattern.permute.xlu0 0
    %478 = vperm.xlu0 %477, %v464
    %v479 = vpop.permute.xlu0 %478
    %482 = vset.pattern.permute.xlu0 0
    %483 = vperm.xlu0 %482, %v465
    %v484 = vpop.permute.xlu0 %483
    %v486 = vmul.f32 %v314, %v469
    %v487 = vmul.f32 %v315, %v474
    %v488 = vmul.f32 %v316, %v479
    %v489 = vmul.f32 %v317, %v484
    %490 = vset.pattern.permute.xlu0 1
    %491 = vperm.xlu0 %490, %v462
    %v492 = vpop.permute.xlu0 %491
    %494 = vset.pattern.permute.xlu0 1
    %495 = vperm.xlu0 %494, %v463
    %v496 = vpop.permute.xlu0 %495
    %498 = vset.pattern.permute.xlu0 1
    %499 = vperm.xlu0 %498, %v464
    %v500 = vpop.permute.xlu0 %499
    %502 = vset.pattern.permute.xlu0 1
    %503 = vperm.xlu0 %502, %v465
    %v504 = vpop.permute.xlu0 %503
    %v506 = vadd.f32 %v486, %v492
    %v507 = vadd.f32 %v487, %v496
    %v508 = vadd.f32 %v488, %v500
    %v509 = vadd.f32 %v489, %v504
    %v510 = vmax.f32 %v506, 0.0
    %v511 = vmax.f32 %v507, 0.0
    %v512 = vmax.f32 %v508, 0.0
    %v513 = vmax.f32 %v509, 0.0
    %v514 = vld [vmem:[#allocation2 + $0x50] sm:$0xff]
    %v515 = vld [vmem:[#allocation2 + $0x58] sm:$0xff]
    %517 = vset.pattern.permute.xlu0 32
    %518 = vperm.xlu0 %517, %v514
    %v519 = vpop.permute.xlu0 %518
    %522 = vset.pattern.permute.xlu0 32
    %523 = vperm.xlu0 %522, %v515
    %v524 = vpop.permute.xlu0 %523
    %v526 = vsel %vm382, %v514, 0
    %v528 = vsel %vm382, %v515, 0
    %530 = vmatprep.subr.mxu0 0.0
    %531 = vmatpush1.msra.mxu0 %v510
    %532 = vmatprep.subr.mxu0 0.0
    %533 = vmatpush1.msra.mxu0 %v511
    %534 = vmatprep.subr.mxu0 0.0
    %535 = vmatpush1.msra.mxu0 %v512
    %536 = vmatprep.subr.mxu0 0.0
    %537 = vmatpush1.msra.mxu0 %v513
    %538 = vmatprep.subr.mxu0 0.0
    %539 = vmatpush1.msra.mxu0 0.0
    %540 = vmatprep.subr.mxu0 0.0
    %541 = vmatpush1.msra.mxu0 0.0
    %542 = vmatprep.subr.mxu0 0.0
    %543 = vmatpush1.msra.mxu0 0.0
    %544 = vmatprep.subr.mxu0 0.0
    %545 = vmatpush1.msra.mxu0 0.0
    %546 = vmatprep.subr.mxu0 0.0
    %547 = vmatpush1.msra.mxu0 0.0
    %548 = vmatprep.subr.mxu0 0.0
    %549 = vmatpush1.msra.mxu0 0.0
    %550 = vmatprep.subr.mxu0 0.0
    %551 = vmatpush1.msra.mxu0 0.0
    %552 = vmatprep.subr.mxu0 0.0
    %553 = vmatpush1.msra.mxu0 0.0
    %554 = vmatprep.subr.mxu0 0.0
    %555 = vmatpush1.msra.mxu0 0.0
    %556 = vmatprep.subr.mxu0 0.0
    %557 = vmatpush1.msra.mxu0 0.0
    %558 = vmatprep.subr.mxu0 0.0
    %559 = vmatpush1.msra.mxu0 0.0
    %560 = vmatprep.subr.mxu0 0.0
    %561 = vmatpush1.msra.mxu0 0.0
    %562 = vmatprep.subr.mxu0 0.0
    %563 = vmatpush1.msra.mxu0 0.0
    %564 = vmatprep.subr.mxu0 0.0
    %565 = vmatpush1.msra.mxu0 0.0
    %566 = vmatprep.subr.mxu0 0.0
    %567 = vmatpush1.msra.mxu0 0.0
    %568 = vmatprep.subr.mxu0 0.0
    %569 = vmatpush1.msra.mxu0 0.0
    %570 = vmatprep.subr.mxu0 0.0
    %571 = vmatpush1.msra.mxu0 0.0
    %572 = vmatprep.subr.mxu0 0.0
    %573 = vmatpush1.msra.mxu0 0.0
    %574 = vmatprep.subr.mxu0 0.0
    %575 = vmatpush1.msra.mxu0 0.0
    %576 = vmatprep.subr.mxu0 0.0
    %577 = vmatpush1.msra.mxu0 0.0
    %578 = vmatprep.subr.mxu0 0.0
    %579 = vmatpush1.msra.mxu0 0.0
    %580 = vmatprep.subr.mxu0 0.0
    %581 = vmatpush1.msra.mxu0 0.0
    %582 = vmatprep.subr.mxu0 0.0
    %583 = vmatpush1.msra.mxu0 0.0
    %584 = vmatprep.subr.mxu0 0.0
    %585 = vmatpush1.msra.mxu0 0.0
    %586 = vmatprep.subr.mxu0 0.0
    %587 = vmatpush1.msra.mxu0 0.0
    %588 = vmatprep.subr.mxu0 0.0
    %589 = vmatpush1.msra.mxu0 0.0
    %590 = vmatprep.subr.mxu0 0.0
    %591 = vmatpush1.msra.mxu0 0.0
    %592 = vmatprep.subr.mxu0 0.0
    %593 = vmatpush1.msra.mxu0 0.0
    %594 = vmatprep.mubr.f32.mxu0 0.0
    %595 = vmatmul.mubr.f32.gmra.mrb[0].mxu0 %v526
    %v596 = vpop.f32.mrb[0].mxu0
    %v597 = vadd.f32 %v519, %v596
    %v598 = vpop.f32.mrb[0].mxu0
    %599 = vmatprep.mubr.f32.mxu0 0.0
    %600 = vmatmul.mubr.f32.gmra.mrb[0].mxu0 %v528
    %v601 = vpop.f32.mrb[0].mxu0
    %v602 = vadd.f32 %v524, %v601
    %v603 = vpop.f32.mrb[0].mxu0
    %604 = vdwg.mxu0
    %v605 = vsel %vm36, %v454, -inf
    %606 = vmax.xlane.f32.xlu0 %v605
    %v607 = vpop.xlane.xlu0 %606
    %v608 = vsel %vm36, %v459, -inf
    %609 = vmax.xlane.f32.xlu0 %v608
    %v610 = vpop.xlane.xlu0 %609
    %v611 = vsub.f32 %v454, %v607
    %v612 = vsub.f32 %v459, %v610
    %v613 = vmul.f32 %v611, 1.442695
    %v614 = vpow.pop %v613
    %v615 = vmul.f32 %v612, 1.442695
    %v616 = vpow.pop %v615
    %v617 = vsel %vm36, %v614, 0.0
    %618 = vadd.xlane.f32.xlu0 %v617
    %v619 = vpop.xlane.xlu0 %618
    %v620 = vsel %vm36, %v616, 0.0
    %621 = vadd.xlane.f32.xlu0 %v620
    %v622 = vpop.xlane.xlu0 %621
    %v623 = vrcp.pop %v619
    %v624 = vrcp.pop %v622
    %v625 = vmul.f32 %v614, %v623
    %v626 = vmul.f32 %v616, %v624
    %v627 = vsel %vm36, %v597, -inf
    %628 = vmax.xlane.f32.xlu0 %v627
    %v629 = vpop.xlane.xlu0 %628
    %v630 = vsel %vm36, %v602, -inf
    %631 = vmax.xlane.f32.xlu0 %v630
    %v632 = vpop.xlane.xlu0 %631
    %v633 = vsub.f32 %v597, %v629
    %v634 = vsub.f32 %v602, %v632
    %v635 = vmul.f32 %v633, 1.442695
    %v636 = vpow.pop %v635
    %v637 = vmul.f32 %v634, 1.442695
    %v638 = vpow.pop %v637
    %v639 = vsel %vm36, %v636, 0.0
    %640 = vadd.xlane.f32.xlu0 %v639
    %v641 = vpop.xlane.xlu0 %640
    %v642 = vsel %vm36, %v638, 0.0
    %643 = vadd.xlane.f32.xlu0 %v642
    %v644 = vpop.xlane.xlu0 %643
    %v645 = vrcp.pop %v641
    %v646 = vrcp.pop %v644
    %v647 = vmul.f32 %v636, %v645
    %v648 = vmul.f32 %v638, %v646
    %v650 = vsel %vm36, %v625, 0
    %v653 = vsel %vm36, %v626, 0
    %v655 = vsel %vm36, %v28, 0
    %v657 = vsel %vm36, %v29, 0
    %v659 = vsel %vm36, %v30, 0
    %v661 = vsel %vm36, %v31, 0
    %663 = vmatprep.subr.mxu0 0.0
    %664 = vmatpush1.xpose.msra.mxu0 %v655
    %665 = vmatprep.subr.mxu0 0.0
    %666 = vmatpush1.xpose.msra.mxu0 %v657
    %667 = vmatprep.subr.mxu0 0.0
    %668 = vmatpush1.xpose.msra.mxu0 %v659
    %669 = vmatprep.subr.mxu0 0.0
    %670 = vmatpush1.xpose.msra.mxu0 %v661
    %671 = vmatprep.subr.mxu0 0.0
    %672 = vmatpush1.xpose.msra.mxu0 0.0
    %673 = vmatprep.subr.mxu0 0.0
    %674 = vmatpush1.xpose.msra.mxu0 0.0
    %675 = vmatprep.subr.mxu0 0.0
    %676 = vmatpush1.xpose.msra.mxu0 0.0
    %677 = vmatprep.subr.mxu0 0.0
    %678 = vmatpush1.xpose.msra.mxu0 0.0
    %679 = vmatprep.subr.mxu0 0.0
    %680 = vmatpush1.xpose.msra.mxu0 0.0
    %681 = vmatprep.subr.mxu0 0.0
    %682 = vmatpush1.xpose.msra.mxu0 0.0
    %683 = vmatprep.subr.mxu0 0.0
    %684 = vmatpush1.xpose.msra.mxu0 0.0
    %685 = vmatprep.subr.mxu0 0.0
    %686 = vmatpush1.xpose.msra.mxu0 0.0
    %687 = vmatprep.subr.mxu0 0.0
    %688 = vmatpush1.xpose.msra.mxu0 0.0
    %689 = vmatprep.subr.mxu0 0.0
    %690 = vmatpush1.xpose.msra.mxu0 0.0
    %691 = vmatprep.subr.mxu0 0.0
    %692 = vmatpush1.xpose.msra.mxu0 0.0
    %693 = vmatprep.subr.mxu0 0.0
    %694 = vmatpush1.xpose.msra.mxu0 0.0
    %695 = vmatprep.subr.mxu0 0.0
    %696 = vmatpush1.xpose.msra.mxu0 0.0
    %697 = vmatprep.subr.mxu0 0.0
    %698 = vmatpush1.xpose.msra.mxu0 0.0
    %699 = vmatprep.subr.mxu0 0.0
    %700 = vmatpush1.xpose.msra.mxu0 0.0
    %701 = vmatprep.subr.mxu0 0.0
    %702 = vmatpush1.xpose.msra.mxu0 0.0
    %703 = vmatprep.subr.mxu0 0.0
    %704 = vmatpush1.xpose.msra.mxu0 0.0
    %705 = vmatprep.subr.mxu0 0.0
    %706 = vmatpush1.xpose.msra.mxu0 0.0
    %707 = vmatprep.subr.mxu0 0.0
    %708 = vmatpush1.xpose.msra.mxu0 0.0
    %709 = vmatprep.subr.mxu0 0.0
    %710 = vmatpush1.xpose.msra.mxu0 0.0
    %711 = vmatprep.subr.mxu0 0.0
    %712 = vmatpush1.xpose.msra.mxu0 0.0
    %713 = vmatprep.subr.mxu0 0.0
    %714 = vmatpush1.xpose.msra.mxu0 0.0
    %715 = vmatprep.subr.mxu0 0.0
    %716 = vmatpush1.xpose.msra.mxu0 0.0
    %717 = vmatprep.subr.mxu0 0.0
    %718 = vmatpush1.xpose.msra.mxu0 0.0
    %719 = vmatprep.subr.mxu0 0.0
    %720 = vmatpush1.xpose.msra.mxu0 0.0
    %721 = vmatprep.subr.mxu0 0.0
    %722 = vmatpush1.xpose.msra.mxu0 0.0
    %723 = vmatprep.subr.mxu0 0.0
    %724 = vmatpush1.xpose.msra.mxu0 0.0
    %725 = vmatprep.subr.mxu0 0.0
    %726 = vmatpush1.xpose.msra.mxu0 0.0
    %727 = vmatprep.mubr.f32.mxu0 0.0
    %728 = vmatmul.mubr.f32.gmra.mrb[0].mxu0 %v650
    %v729 = vpop.f32.mrb[0].mxu0
    %v730 = vadd.f32 0.0, %v729
    %v731 = vpop.f32.mrb[0].mxu0
    %732 = vmatprep.mubr.f32.mxu0 0.0
    %733 = vmatmul.mubr.f32.gmra.mrb[0].mxu0 %v653
    %v734 = vpop.f32.mrb[0].mxu0
    %v735 = vadd.f32 0.0, %v734
    %v736 = vpop.f32.mrb[0].mxu0
    %737 = vdwg.mxu0
    %v739 = vsel %vm36, %v647, 0
    %v742 = vsel %vm36, %v648, 0
    %v744 = vsel %vm36, %v32, 0
    %v746 = vsel %vm36, %v33, 0
    %v748 = vsel %vm36, %v34, 0
    %v750 = vsel %vm36, %v35, 0
    %752 = vmatprep.subr.mxu0 0.0
    %753 = vmatpush1.xpose.msra.mxu0 %v744
    %754 = vmatprep.subr.mxu0 0.0
    %755 = vmatpush1.xpose.msra.mxu0 %v746
    %756 = vmatprep.subr.mxu0 0.0
    %757 = vmatpush1.xpose.msra.mxu0 %v748
    %758 = vmatprep.subr.mxu0 0.0
    %759 = vmatpush1.xpose.msra.mxu0 %v750
    %760 = vmatprep.subr.mxu0 0.0
    %761 = vmatpush1.xpose.msra.mxu0 0.0
    %762 = vmatprep.subr.mxu0 0.0
    %763 = vmatpush1.xpose.msra.mxu0 0.0
    %764 = vmatprep.subr.mxu0 0.0
    %765 = vmatpush1.xpose.msra.mxu0 0.0
    %766 = vmatprep.subr.mxu0 0.0
    %767 = vmatpush1.xpose.msra.mxu0 0.0
    %768 = vmatprep.subr.mxu0 0.0
    %769 = vmatpush1.xpose.msra.mxu0 0.0
    %770 = vmatprep.subr.mxu0 0.0
    %771 = vmatpush1.xpose.msra.mxu0 0.0
    %772 = vmatprep.subr.mxu0 0.0
    %773 = vmatpush1.xpose.msra.mxu0 0.0
    %774 = vmatprep.subr.mxu0 0.0
    %775 = vmatpush1.xpose.msra.mxu0 0.0
    %776 = vmatprep.subr.mxu0 0.0
    %777 = vmatpush1.xpose.msra.mxu0 0.0
    %778 = vmatprep.subr.mxu0 0.0
    %779 = vmatpush1.xpose.msra.mxu0 0.0
    %780 = vmatprep.subr.mxu0 0.0
    %781 = vmatpush1.xpose.msra.mxu0 0.0
    %782 = vmatprep.subr.mxu0 0.0
    %783 = vmatpush1.xpose.msra.mxu0 0.0
    %784 = vmatprep.subr.mxu0 0.0
    %785 = vmatpush1.xpose.msra.mxu0 0.0
    %786 = vmatprep.subr.mxu0 0.0
    %787 = vmatpush1.xpose.msra.mxu0 0.0
    %788 = vmatprep.subr.mxu0 0.0
    %789 = vmatpush1.xpose.msra.mxu0 0.0
    %790 = vmatprep.subr.mxu0 0.0
    %791 = vmatpush1.xpose.msra.mxu0 0.0
    %792 = vmatprep.subr.mxu0 0.0
    %793 = vmatpush1.xpose.msra.mxu0 0.0
    %794 = vmatprep.subr.mxu0 0.0
    %795 = vmatpush1.xpose.msra.mxu0 0.0
    %796 = vmatprep.subr.mxu0 0.0
    %797 = vmatpush1.xpose.msra.mxu0 0.0
    %798 = vmatprep.subr.mxu0 0.0
    %799 = vmatpush1.xpose.msra.mxu0 0.0
    %800 = vmatprep.subr.mxu0 0.0
    %801 = vmatpush1.xpose.msra.mxu0 0.0
    %802 = vmatprep.subr.mxu0 0.0
    %803 = vmatpush1.xpose.msra.mxu0 0.0
    %804 = vmatprep.subr.mxu0 0.0
    %805 = vmatpush1.xpose.msra.mxu0 0.0
    %806 = vmatprep.subr.mxu0 0.0
    %807 = vmatpush1.xpose.msra.mxu0 0.0
    %808 = vmatprep.subr.mxu0 0.0
    %809 = vmatpush1.xpose.msra.mxu0 0.0
    %810 = vmatprep.subr.mxu0 0.0
    %811 = vmatpush1.xpose.msra.mxu0 0.0
    %812 = vmatprep.subr.mxu0 0.0
    %813 = vmatpush1.xpose.msra.mxu0 0.0
    %814 = vmatprep.subr.mxu0 0.0
    %815 = vmatpush1.xpose.msra.mxu0 0.0
    %816 = vmatprep.mubr.f32.mxu0 0.0
    %817 = vmatmul.mubr.f32.gmra.mrb[0].mxu0 %v739
    %v818 = vpop.f32.mrb[0].mxu0
    %v819 = vadd.f32 0.0, %v818
    %v820 = vpop.f32.mrb[0].mxu0
    %821 = vmatprep.mubr.f32.mxu0 0.0
    %822 = vmatmul.mubr.f32.gmra.mrb[0].mxu0 %v742
    %v823 = vpop.f32.mrb[0].mxu0
    %v824 = vadd.f32 0.0, %v823
    %v825 = vpop.f32.mrb[0].mxu0
    %826 = vdwg.mxu0
    %vm827 = vcmask 1048064
    %v828 = vsel %vm827, %v454, -inf
    %829 = vmax.xlane.f32.xlu0 %v828
    %v830 = vpop.xlane.xlu0 %829
    %v831 = vsel %vm827, %v459, -inf
    %832 = vmax.xlane.f32.xlu0 %v831
    %v833 = vpop.xlane.xlu0 %832
    %v834 = vsub.f32 %v454, %v830
    %v835 = vsub.f32 %v459, %v833
    %v836 = vmul.f32 %v834, 1.442695
    %v837 = vpow.pop %v836
    %v838 = vmul.f32 %v835, 1.442695
    %v839 = vpow.pop %v838
    %842 = vrot.lane.b32.xlu0 %v837, 64
    %v843 = vpop.permute.xlu0 %842
    %844 = vrot.lane.b32.xlu0 %v839, 64
    %v845 = vpop.permute.xlu0 %844
    %v848 = vsel %vm36, %v843, 0.0
    %849 = vadd.xlane.f32.xlu0 %v848
    %v850 = vpop.xlane.xlu0 %849
    %v851 = vsel %vm36, %v845, 0.0
    %852 = vadd.xlane.f32.xlu0 %v851
    %v853 = vpop.xlane.xlu0 %852
    %v854 = vrcp.pop %v850
    %v855 = vrcp.pop %v853
    %v856 = vmul.f32 %v837, %v854
    %v857 = vmul.f32 %v839, %v855
    %v858 = vsel %vm827, %v597, -inf
    %859 = vmax.xlane.f32.xlu0 %v858
    %v860 = vpop.xlane.xlu0 %859
    %v861 = vsel %vm827, %v602, -inf
    %862 = vmax.xlane.f32.xlu0 %v861
    %v863 = vpop.xlane.xlu0 %862
    %v864 = vsub.f32 %v597, %v860
    %v865 = vsub.f32 %v602, %v863
    %v866 = vmul.f32 %v864, 1.442695
    %v867 = vpow.pop %v866
    %v868 = vmul.f32 %v865, 1.442695
    %v869 = vpow.pop %v868
    %872 = vrot.lane.b32.xlu0 %v867, 64
    %v873 = vpop.permute.xlu0 %872
    %874 = vrot.lane.b32.xlu0 %v869, 64
    %v875 = vpop.permute.xlu0 %874
    %v878 = vsel %vm36, %v873, 0.0
    %879 = vadd.xlane.f32.xlu0 %v878
    %v880 = vpop.xlane.xlu0 %879
    %v881 = vsel %vm36, %v875, 0.0
    %882 = vadd.xlane.f32.xlu0 %v881
    %v883 = vpop.xlane.xlu0 %882
    %v884 = vrcp.pop %v880
    %v885 = vrcp.pop %v883
    %v886 = vmul.f32 %v867, %v884
    %v887 = vmul.f32 %v869, %v885
    %890 = vrot.lane.b32.xlu0 %v856, 64
    %v891 = vpop.permute.xlu0 %890
    %892 = vrot.lane.b32.xlu0 %v857, 64
    %v893 = vpop.permute.xlu0 %892
    %v894 = vsel %vm36, %v891, 0
    %v896 = vsel %vm36, %v893, 0
    %v898 = vsel %vm36, %v95, 0
    %v900 = vsel %vm36, %v97, 0
    %v902 = vsel %vm36, %v99, 0
    %v904 = vsel %vm36, %v101, 0
    %906 = vmatprep.subr.mxu0 0.0
    %907 = vmatpush1.xpose.msra.mxu0 %v898
    %908 = vmatprep.subr.mxu0 0.0
    %909 = vmatpush1.xpose.msra.mxu0 %v900
    %910 = vmatprep.subr.mxu0 0.0
    %911 = vmatpush1.xpose.msra.mxu0 %v902
    %912 = vmatprep.subr.mxu0 0.0
    %913 = vmatpush1.xpose.msra.mxu0 %v904
    %914 = vmatprep.subr.mxu0 0.0
    %915 = vmatpush1.xpose.msra.mxu0 0.0
    %916 = vmatprep.subr.mxu0 0.0
    %917 = vmatpush1.xpose.msra.mxu0 0.0
    %918 = vmatprep.subr.mxu0 0.0
    %919 = vmatpush1.xpose.msra.mxu0 0.0
    %920 = vmatprep.subr.mxu0 0.0
    %921 = vmatpush1.xpose.msra.mxu0 0.0
    %922 = vmatprep.subr.mxu0 0.0
    %923 = vmatpush1.xpose.msra.mxu0 0.0
    %924 = vmatprep.subr.mxu0 0.0
    %925 = vmatpush1.xpose.msra.mxu0 0.0
    %926 = vmatprep.subr.mxu0 0.0
    %927 = vmatpush1.xpose.msra.mxu0 0.0
    %928 = vmatprep.subr.mxu0 0.0
    %929 = vmatpush1.xpose.msra.mxu0 0.0
    %930 = vmatprep.subr.mxu0 0.0
    %931 = vmatpush1.xpose.msra.mxu0 0.0
    %932 = vmatprep.subr.mxu0 0.0
    %933 = vmatpush1.xpose.msra.mxu0 0.0
    %934 = vmatprep.subr.mxu0 0.0
    %935 = vmatpush1.xpose.msra.mxu0 0.0
    %936 = vmatprep.subr.mxu0 0.0
    %937 = vmatpush1.xpose.msra.mxu0 0.0
    %938 = vmatprep.subr.mxu0 0.0
    %939 = vmatpush1.xpose.msra.mxu0 0.0
    %940 = vmatprep.subr.mxu0 0.0
    %941 = vmatpush1.xpose.msra.mxu0 0.0
    %942 = vmatprep.subr.mxu0 0.0
    %943 = vmatpush1.xpose.msra.mxu0 0.0
    %944 = vmatprep.subr.mxu0 0.0
    %945 = vmatpush1.xpose.msra.mxu0 0.0
    %946 = vmatprep.subr.mxu0 0.0
    %947 = vmatpush1.xpose.msra.mxu0 0.0
    %948 = vmatprep.subr.mxu0 0.0
    %949 = vmatpush1.xpose.msra.mxu0 0.0
    %950 = vmatprep.subr.mxu0 0.0
    %951 = vmatpush1.xpose.msra.mxu0 0.0
    %952 = vmatprep.subr.mxu0 0.0
    %953 = vmatpush1.xpose.msra.mxu0 0.0
    %954 = vmatprep.subr.mxu0 0.0
    %955 = vmatpush1.xpose.msra.mxu0 0.0
    %956 = vmatprep.subr.mxu0 0.0
    %957 = vmatpush1.xpose.msra.mxu0 0.0
    %958 = vmatprep.subr.mxu0 0.0
    %959 = vmatpush1.xpose.msra.mxu0 0.0
    %960 = vmatprep.subr.mxu0 0.0
    %961 = vmatpush1.xpose.msra.mxu0 0.0
    %962 = vmatprep.subr.mxu0 0.0
    %963 = vmatpush1.xpose.msra.mxu0 0.0
    %964 = vmatprep.subr.mxu0 0.0
    %965 = vmatpush1.xpose.msra.mxu0 0.0
    %966 = vmatprep.subr.mxu0 0.0
    %967 = vmatpush1.xpose.msra.mxu0 0.0
    %968 = vmatprep.subr.mxu0 0.0
    %969 = vmatpush1.xpose.msra.mxu0 0.0
    %970 = vmatprep.mubr.f32.mxu0 0.0
    %971 = vmatmul.mubr.f32.gmra.mrb[0].mxu0 %v894
    %v972 = vpop.f32.mrb[0].mxu0
    %v973 = vadd.f32 0.0, %v972
    %v974 = vpop.f32.mrb[0].mxu0
    %975 = vmatprep.mubr.f32.mxu0 0.0
    %976 = vmatmul.mubr.f32.gmra.mrb[0].mxu0 %v896
    %v977 = vpop.f32.mrb[0].mxu0
    %v978 = vadd.f32 0.0, %v977
    %v979 = vpop.f32.mrb[0].mxu0
    %980 = vdwg.mxu0
    %983 = vrot.lane.b32.xlu0 %v886, 64
    %v984 = vpop.permute.xlu0 %983
    %985 = vrot.lane.b32.xlu0 %v887, 64
    %v986 = vpop.permute.xlu0 %985
    %v987 = vsel %vm36, %v984, 0
    %v989 = vsel %vm36, %v986, 0
    %v991 = vsel %vm36, %v235, 0
    %v993 = vsel %vm36, %v237, 0
    %v995 = vsel %vm36, %v239, 0
    %v997 = vsel %vm36, %v241, 0
    %999 = vmatprep.subr.mxu0 0.0
    %1000 = vmatpush1.xpose.msra.mxu0 %v991
    %1001 = vmatprep.subr.mxu0 0.0
    %1002 = vmatpush1.xpose.msra.mxu0 %v993
    %1003 = vmatprep.subr.mxu0 0.0
    %1004 = vmatpush1.xpose.msra.mxu0 %v995
    %1005 = vmatprep.subr.mxu0 0.0
    %1006 = vmatpush1.xpose.msra.mxu0 %v997
    %1007 = vmatprep.subr.mxu0 0.0
    %1008 = vmatpush1.xpose.msra.mxu0 0.0
    %1009 = vmatprep.subr.mxu0 0.0
    %1010 = vmatpush1.xpose.msra.mxu0 0.0
    %1011 = vmatprep.subr.mxu0 0.0
    %1012 = vmatpush1.xpose.msra.mxu0 0.0
    %1013 = vmatprep.subr.mxu0 0.0
    %1014 = vmatpush1.xpose.msra.mxu0 0.0
    %1015 = vmatprep.subr.mxu0 0.0
    %1016 = vmatpush1.xpose.msra.mxu0 0.0
    %1017 = vmatprep.subr.mxu0 0.0
    %1018 = vmatpush1.xpose.msra.mxu0 0.0
    %1019 = vmatprep.subr.mxu0 0.0
    %1020 = vmatpush1.xpose.msra.mxu0 0.0
    %1021 = vmatprep.subr.mxu0 0.0
    %1022 = vmatpush1.xpose.msra.mxu0 0.0
    %1023 = vmatprep.subr.mxu0 0.0
    %1024 = vmatpush1.xpose.msra.mxu0 0.0
    %1025 = vmatprep.subr.mxu0 0.0
    %1026 = vmatpush1.xpose.msra.mxu0 0.0
    %1027 = vmatprep.subr.mxu0 0.0
    %1028 = vmatpush1.xpose.msra.mxu0 0.0
    %1029 = vmatprep.subr.mxu0 0.0
    %1030 = vmatpush1.xpose.msra.mxu0 0.0
    %1031 = vmatprep.subr.mxu0 0.0
    %1032 = vmatpush1.xpose.msra.mxu0 0.0
    %1033 = vmatprep.subr.mxu0 0.0
    %1034 = vmatpush1.xpose.msra.mxu0 0.0
    %1035 = vmatprep.subr.mxu0 0.0
    %1036 = vmatpush1.xpose.msra.mxu0 0.0
    %1037 = vmatprep.subr.mxu0 0.0
    %1038 = vmatpush1.xpose.msra.mxu0 0.0
    %1039 = vmatprep.subr.mxu0 0.0
    %1040 = vmatpush1.xpose.msra.mxu0 0.0
    %1041 = vmatprep.subr.mxu0 0.0
    %1042 = vmatpush1.xpose.msra.mxu0 0.0
    %1043 = vmatprep.subr.mxu0 0.0
    %1044 = vmatpush1.xpose.msra.mxu0 0.0
    %1045 = vmatprep.subr.mxu0 0.0
    %1046 = vmatpush1.xpose.msra.mxu0 0.0
    %1047 = vmatprep.subr.mxu0 0.0
    %1048 = vmatpush1.xpose.msra.mxu0 0.0
    %1049 = vmatprep.subr.mxu0 0.0
    %1050 = vmatpush1.xpose.msra.mxu0 0.0
    %1051 = vmatprep.subr.mxu0 0.0
    %1052 = vmatpush1.xpose.msra.mxu0 0.0
    %1053 = vmatprep.subr.mxu0 0.0
    %1054 = vmatpush1.xpose.msra.mxu0 0.0
    %1055 = vmatprep.subr.mxu0 0.0
    %1056 = vmatpush1.xpose.msra.mxu0 0.0
    %1057 = vmatprep.subr.mxu0 0.0
    %1058 = vmatpush1.xpose.msra.mxu0 0.0
    %1059 = vmatprep.subr.mxu0 0.0
    %1060 = vmatpush1.xpose.msra.mxu0 0.0
    %1061 = vmatprep.subr.mxu0 0.0
    %1062 = vmatpush1.xpose.msra.mxu0 0.0
    %1063 = vmatprep.mubr.f32.mxu0 0.0
    %1064 = vmatmul.mubr.f32.gmra.mrb[0].mxu0 %v987
    %v1065 = vpop.f32.mrb[0].mxu0
    %v1066 = vadd.f32 0.0, %v1065
    %v1067 = vpop.f32.mrb[0].mxu0
    %1068 = vmatprep.mubr.f32.mxu0 0.0
    %1069 = vmatmul.mubr.f32.gmra.mrb[0].mxu0 %v989
    %v1070 = vpop.f32.mrb[0].mxu0
    %v1071 = vadd.f32 0.0, %v1070
    %v1072 = vpop.f32.mrb[0].mxu0
    %1073 = vdwg.mxu0
    %v1074 = vsel %vm382, %v730, 0.0
    %v1075 = vsel %vm382, %v735, 0.0
    %v1076 = vadd.f32 %v1074, %v1075
    %v1077 = vrot.slane %v1076, 4
    %v1078 = vadd.f32 %v1076, %v1077
    %v1079 = vrot.slane %v1078, 2
    %v1080 = vadd.f32 %v1078, %v1079
    %v1081 = vrot.slane %v1080, 1
    %v1082 = vadd.f32 %v1080, %v1081
    %v1083 = vrcp.pop 16.0
    %v1084 = vmul.f32 %v1082, %v1083
    %v1085 = vsub.f32 %v730, %v1084
    %v1086 = vsub.f32 %v735, %v1084
    %v1087 = vmul.f32 %v1085, %v1085
    %v1088 = vmul.f32 %v1086, %v1086
    %v1089 = vsel %vm382, %v1087, 0.0
    %v1090 = vsel %vm382, %v1088, 0.0
    %v1091 = vadd.f32 %v1089, %v1090
    %v1092 = vrot.slane %v1091, 4
    %v1093 = vadd.f32 %v1091, %v1092
    %v1094 = vrot.slane %v1093, 2
    %v1095 = vadd.f32 %v1093, %v1094
    %v1096 = vrot.slane %v1095, 1
    %v1097 = vadd.f32 %v1095, %v1096
    %v1098 = vmul.f32 %v1097, %v1083
    %v1099 = vadd.f32 %v1098, 0.001
    %v1100 = vrsqrt.pop %v1099
    %v1101 = vmul.f32 %v1085, %v1100
    %v1102 = vmul.f32 %v1086, %v1100
    %v1103 = vsel %vm382, %v973, 0.0
    %v1104 = vsel %vm382, %v978, 0.0
    %v1105 = vadd.f32 %v1103, %v1104
    %v1106 = vrot.slane %v1105, 4
    %v1107 = vadd.f32 %v1105, %v1106
    %v1108 = vrot.slane %v1107, 2
    %v1109 = vadd.f32 %v1107, %v1108
    %v1110 = vrot.slane %v1109, 1
    %v1111 = vadd.f32 %v1109, %v1110
    %v1112 = vmul.f32 %v1111, %v1083
    %v1113 = vsub.f32 %v973, %v1112
    %v1114 = vsub.f32 %v978, %v1112
    %v1115 = vmul.f32 %v1113, %v1113
    %v1116 = vmul.f32 %v1114, %v1114
    %v1117 = vsel %vm382, %v1115, 0.0
    %v1118 = vsel %vm382, %v1116, 0.0
    %v1119 = vadd.f32 %v1117, %v1118
    %v1120 = vrot.slane %v1119, 4
    %v1121 = vadd.f32 %v1119, %v1120
    %v1122 = vrot.slane %v1121, 2
    %v1123 = vadd.f32 %v1121, %v1122
    %v1124 = vrot.slane %v1123, 1
    %v1125 = vadd.f32 %v1123, %v1124
    %v1126 = vmul.f32 %v1125, %v1083
    %v1127 = vadd.f32 %v1126, 0.001
    %v1128 = vrsqrt.pop %v1127
    %v1129 = vmul.f32 %v1113, %v1128
    %v1130 = vmul.f32 %v1114, %v1128
    %v1131 = vld [vmem:[#allocation2 + $0x90] sm:$0x1]
    %v1132 = vld [vmem:[#allocation2 + $0x91] sm:$0x1]
    %v1133 = vlaneseq
    %v1134 = vshrl.u32 %v1133, 7
    %v1135 = vsub.s32 0, %v1134
    %v1136 = vrot.slane %v1131, %v1135
    %v1137 = vmul.f32 %v1101, %v1136
    %v1138 = vmul.f32 %v1102, %v1136
    %v1139 = vmul.f32 %v1129, %v1136
    %v1140 = vmul.f32 %v1130, %v1136
    %v1141 = vlaneseq
    %v1142 = vshrl.u32 %v1141, 7
    %v1143 = vsub.s32 0, %v1142
    %v1144 = vrot.slane %v1132, %v1143
    %v1145 = vadd.f32 %v1137, %v1144
    %v1146 = vadd.f32 %v1138, %v1144
    %v1147 = vadd.f32 %v1139, %v1144
    %v1148 = vadd.f32 %v1140, %v1144
    %v1149 = vmax.f32 %v1145, 0.0
    %v1150 = vmax.f32 %v1146, 0.0
    %v1151 = vmax.f32 %v1147, 0.0
    %v1152 = vmax.f32 %v1148, 0.0
    %v1153 = vld [vmem:[#allocation2 + $0x98] sm:$0xff]
    %v1154 = vld [vmem:[#allocation2 + $0xa0] sm:$0xff]
    %v1155 = vld [vmem:[#allocation2 + $0xa8] sm:$0xff]
    %v1156 = vld [vmem:[#allocation2 + $0xb0] sm:$0xff]
    %v1157 = vld [vmem:[#allocation2 + $0xb8] sm:$0x1]
    %v1158 = vlaneseq
    %v1159 = vshrl.u32 %v1158, 7
    %v1160 = vsub.s32 0, %v1159
    %v1161 = vrot.slane %v1157, %v1160
    %v1163 = vsel %vm382, %v1149, 0
    %v1166 = vsel %vm382, %v1150, 0
    %v1169 = vsel %vm382, %v1151, 0
    %v1172 = vsel %vm382, %v1152, 0
    %1174 = vmatprep.subr.mxu0 0.0
    %1175 = vmatpush1.msra.mxu0 %v1153
    %1176 = vmatprep.subr.mxu0 0.0
    %1177 = vmatpush1.msra.mxu0 %v1154
    %1178 = vmatprep.subr.mxu0 0.0
    %1179 = vmatpush1.msra.mxu0 %v1155
    %1180 = vmatprep.subr.mxu0 0.0
    %1181 = vmatpush1.msra.mxu0 %v1156
    %1182 = vmatprep.subr.mxu0 0.0
    %1183 = vmatpush1.msra.mxu0 0.0
    %1184 = vmatprep.subr.mxu0 0.0
    %1185 = vmatpush1.msra.mxu0 0.0
    %1186 = vmatprep.subr.mxu0 0.0
    %1187 = vmatpush1.msra.mxu0 0.0
    %1188 = vmatprep.subr.mxu0 0.0
    %1189 = vmatpush1.msra.mxu0 0.0
    %1190 = vmatprep.subr.mxu0 0.0
    %1191 = vmatpush1.msra.mxu0 0.0
    %1192 = vmatprep.subr.mxu0 0.0
    %1193 = vmatpush1.msra.mxu0 0.0
    %1194 = vmatprep.subr.mxu0 0.0
    %1195 = vmatpush1.msra.mxu0 0.0
    %1196 = vmatprep.subr.mxu0 0.0
    %1197 = vmatpush1.msra.mxu0 0.0
    %1198 = vmatprep.subr.mxu0 0.0
    %1199 = vmatpush1.msra.mxu0 0.0
    %1200 = vmatprep.subr.mxu0 0.0
    %1201 = vmatpush1.msra.mxu0 0.0
    %1202 = vmatprep.subr.mxu0 0.0
    %1203 = vmatpush1.msra.mxu0 0.0
    %1204 = vmatprep.subr.mxu0 0.0
    %1205 = vmatpush1.msra.mxu0 0.0
    %1206 = vmatprep.subr.mxu0 0.0
    %1207 = vmatpush1.msra.mxu0 0.0
    %1208 = vmatprep.subr.mxu0 0.0
    %1209 = vmatpush1.msra.mxu0 0.0
    %1210 = vmatprep.subr.mxu0 0.0
    %1211 = vmatpush1.msra.mxu0 0.0
    %1212 = vmatprep.subr.mxu0 0.0
    %1213 = vmatpush1.msra.mxu0 0.0
    %1214 = vmatprep.subr.mxu0 0.0
    %1215 = vmatpush1.msra.mxu0 0.0
    %1216 = vmatprep.subr.mxu0 0.0
    %1217 = vmatpush1.msra.mxu0 0.0
    %1218 = vmatprep.subr.mxu0 0.0
    %1219 = vmatpush1.msra.mxu0 0.0
    %1220 = vmatprep.subr.mxu0 0.0
    %1221 = vmatpush1.msra.mxu0 0.0
    %1222 = vmatprep.subr.mxu0 0.0
    %1223 = vmatpush1.msra.mxu0 0.0
    %1224 = vmatprep.subr.mxu0 0.0
    %1225 = vmatpush1.msra.mxu0 0.0
    %1226 = vmatprep.subr.mxu0 0.0
    %1227 = vmatpush1.msra.mxu0 0.0
    %1228 = vmatprep.subr.mxu0 0.0
    %1229 = vmatpush1.msra.mxu0 0.0
    %1230 = vmatprep.subr.mxu0 0.0
    %1231 = vmatpush1.msra.mxu0 0.0
    %1232 = vmatprep.subr.mxu0 0.0
    %1233 = vmatpush1.msra.mxu0 0.0
    %1234 = vmatprep.subr.mxu0 0.0
    %1235 = vmatpush1.msra.mxu0 0.0
    %1236 = vmatprep.subr.mxu0 0.0
    %1237 = vmatpush1.msra.mxu0 0.0
    %1238 = vmatprep.mubr.f32.mxu0 0.0
    %1239 = vmatmul.mubr.f32.gmra.mrb[0].mxu0 %v1163
    %v1240 = vpop.f32.mrb[0].mxu0
    %v1241 = vadd.f32 %v1161, %v1240
    %v1242 = vpop.f32.mrb[0].mxu0
    %1243 = vmatprep.mubr.f32.mxu0 0.0
    %1244 = vmatmul.mubr.f32.gmra.mrb[0].mxu0 %v1166
    %v1245 = vpop.f32.mrb[0].mxu0
    %v1246 = vadd.f32 %v1161, %v1245
    %v1247 = vpop.f32.mrb[0].mxu0
    %1248 = vmatprep.mubr.f32.mxu0 0.0
    %1249 = vmatmul.mubr.f32.gmra.mrb[0].mxu0 %v1169
    %v1250 = vpop.f32.mrb[0].mxu0
    %v1251 = vadd.f32 %v1161, %v1250
    %v1252 = vpop.f32.mrb[0].mxu0
    %1253 = vmatprep.mubr.f32.mxu0 0.0
    %1254 = vmatmul.mubr.f32.gmra.mrb[0].mxu0 %v1172
    %v1255 = vpop.f32.mrb[0].mxu0
    %v1256 = vadd.f32 %v1161, %v1255
    %v1257 = vpop.f32.mrb[0].mxu0
    %1258 = vdwg.mxu0
    %v1259 = vld [vmem:[#allocation2 + $0x110] sm:$0xff]
    %v1260 = vld [vmem:[#allocation2 + $0x118] sm:$0xff]
    %v1261 = vld [vmem:[#allocation2 + $0x120] sm:$0xff]
    %v1262 = vld [vmem:[#allocation2 + $0x128] sm:$0xff]
    %v1263 = vld [vmem:[#allocation2 + $0xf0] sm:$0xff]
    %v1264 = vld [vmem:[#allocation2 + $0xf8] sm:$0xff]
    %v1265 = vld [vmem:[#allocation2 + $0x100] sm:$0xff]
    %v1266 = vld [vmem:[#allocation2 + $0x108] sm:$0xff]
    %1268 = vset.pattern.permute.xlu0 0
    %1269 = vperm.xlu0 %1268, %v1259
    %v1270 = vpop.permute.xlu0 %1269
    %1273 = vset.pattern.permute.xlu0 0
    %1274 = vperm.xlu0 %1273, %v1260
    %v1275 = vpop.permute.xlu0 %1274
    %1278 = vset.pattern.permute.xlu0 0
    %1279 = vperm.xlu0 %1278, %v1261
    %v1280 = vpop.permute.xlu0 %1279
    %1283 = vset.pattern.permute.xlu0 0
    %1284 = vperm.xlu0 %1283, %v1262
    %v1285 = vpop.permute.xlu0 %1284
    %v1287 = vmul.f32 %v1241, %v1270
    %v1288 = vmul.f32 %v1246, %v1275
    %v1289 = vmul.f32 %v1251, %v1280
    %v1290 = vmul.f32 %v1256, %v1285
    %1291 = vset.pattern.permute.xlu0 1
    %1292 = vperm.xlu0 %1291, %v1259
    %v1293 = vpop.permute.xlu0 %1292
    %1295 = vset.pattern.permute.xlu0 1
    %1296 = vperm.xlu0 %1295, %v1260
    %v1297 = vpop.permute.xlu0 %1296
    %1299 = vset.pattern.permute.xlu0 1
    %1300 = vperm.xlu0 %1299, %v1261
    %v1301 = vpop.permute.xlu0 %1300
    %1303 = vset.pattern.permute.xlu0 1
    %1304 = vperm.xlu0 %1303, %v1262
    %v1305 = vpop.permute.xlu0 %1304
    %v1307 = vadd.f32 %v1287, %v1293
    %v1308 = vadd.f32 %v1288, %v1297
    %v1309 = vadd.f32 %v1289, %v1301
    %v1310 = vadd.f32 %v1290, %v1305
    %v1311 = vmax.f32 %v1307, 0.0
    %v1312 = vmax.f32 %v1308, 0.0
    %v1313 = vmax.f32 %v1309, 0.0
    %v1314 = vmax.f32 %v1310, 0.0
    %v1316 = vsel %vm382, %v1263, 0
    %v1319 = vsel %vm382, %v1264, 0
    %v1322 = vsel %vm382, %v1265, 0
    %v1325 = vsel %vm382, %v1266, 0
    %1327 = vmatprep.subr.mxu0 0.0
    %1328 = vmatpush1.msra.mxu0 %v1311
    %1329 = vmatprep.subr.mxu0 0.0
    %1330 = vmatpush1.msra.mxu0 %v1312
    %1331 = vmatprep.subr.mxu0 0.0
    %1332 = vmatpush1.msra.mxu0 %v1313
    %1333 = vmatprep.subr.mxu0 0.0
    %1334 = vmatpush1.msra.mxu0 %v1314
    %1335 = vmatprep.subr.mxu0 0.0
    %1336 = vmatpush1.msra.mxu0 0.0
    %1337 = vmatprep.subr.mxu0 0.0
    %1338 = vmatpush1.msra.mxu0 0.0
    %1339 = vmatprep.subr.mxu0 0.0
    %1340 = vmatpush1.msra.mxu0 0.0
    %1341 = vmatprep.subr.mxu0 0.0
    %1342 = vmatpush1.msra.mxu0 0.0
    %1343 = vmatprep.subr.mxu0 0.0
    %1344 = vmatpush1.msra.mxu0 0.0
    %1345 = vmatprep.subr.mxu0 0.0
    %1346 = vmatpush1.msra.mxu0 0.0
    %1347 = vmatprep.subr.mxu0 0.0
    %1348 = vmatpush1.msra.mxu0 0.0
    %1349 = vmatprep.subr.mxu0 0.0
    %1350 = vmatpush1.msra.mxu0 0.0
    %1351 = vmatprep.subr.mxu0 0.0
    %1352 = vmatpush1.msra.mxu0 0.0
    %1353 = vmatprep.subr.mxu0 0.0
    %1354 = vmatpush1.msra.mxu0 0.0
    %1355 = vmatprep.subr.mxu0 0.0
    %1356 = vmatpush1.msra.mxu0 0.0
    %1357 = vmatprep.subr.mxu0 0.0
    %1358 = vmatpush1.msra.mxu0 0.0
    %1359 = vmatprep.subr.mxu0 0.0
    %1360 = vmatpush1.msra.mxu0 0.0
    %1361 = vmatprep.subr.mxu0 0.0
    %1362 = vmatpush1.msra.mxu0 0.0
    %1363 = vmatprep.subr.mxu0 0.0
    %1364 = vmatpush1.msra.mxu0 0.0
    %1365 = vmatprep.subr.mxu0 0.0
    %1366 = vmatpush1.msra.mxu0 0.0
    %1367 = vmatprep.subr.mxu0 0.0
    %1368 = vmatpush1.msra.mxu0 0.0
    %1369 = vmatprep.subr.mxu0 0.0
    %1370 = vmatpush1.msra.mxu0 0.0
    %1371 = vmatprep.subr.mxu0 0.0
    %1372 = vmatpush1.msra.mxu0 0.0
    %1373 = vmatprep.subr.mxu0 0.0
    %1374 = vmatpush1.msra.mxu0 0.0
    %1375 = vmatprep.subr.mxu0 0.0
    %1376 = vmatpush1.msra.mxu0 0.0
    %1377 = vmatprep.subr.mxu0 0.0
    %1378 = vmatpush1.msra.mxu0 0.0
    %1379 = vmatprep.subr.mxu0 0.0
    %1380 = vmatpush1.msra.mxu0 0.0
    %1381 = vmatprep.subr.mxu0 0.0
    %1382 = vmatpush1.msra.mxu0 0.0
    %1383 = vmatprep.subr.mxu0 0.0
    %1384 = vmatpush1.msra.mxu0 0.0
    %1385 = vmatprep.subr.mxu0 0.0
    %1386 = vmatpush1.msra.mxu0 0.0
    %1387 = vmatprep.subr.mxu0 0.0
    %1388 = vmatpush1.msra.mxu0 0.0
    %1389 = vmatprep.subr.mxu0 0.0
    %1390 = vmatpush1.msra.mxu0 0.0
    %1391 = vmatprep.mubr.f32.mxu0 0.0
    %1392 = vmatmul.mubr.f32.gmra.mrb[0].mxu0 %v1316
    %v1393 = vpop.f32.mrb[0].mxu0
    %v1394 = vadd.f32 0.0, %v1393
    %v1395 = vpop.f32.mrb[0].mxu0
    %1396 = vmatprep.mubr.f32.mxu0 0.0
    %1397 = vmatmul.mubr.f32.gmra.mrb[0].mxu0 %v1319
    %v1398 = vpop.f32.mrb[0].mxu0
    %v1399 = vadd.f32 0.0, %v1398
    %v1400 = vpop.f32.mrb[0].mxu0
    %1401 = vmatprep.mubr.f32.mxu0 0.0
    %1402 = vmatmul.mubr.f32.gmra.mrb[0].mxu0 %v1322
    %v1403 = vpop.f32.mrb[0].mxu0
    %v1404 = vadd.f32 0.0, %v1403
    %v1405 = vpop.f32.mrb[0].mxu0
    %1406 = vmatprep.mubr.f32.mxu0 0.0
    %1407 = vmatmul.mubr.f32.gmra.mrb[0].mxu0 %v1325
    %v1408 = vpop.f32.mrb[0].mxu0
    %v1409 = vadd.f32 0.0, %v1408
    %v1410 = vpop.f32.mrb[0].mxu0
    %1411 = vdwg.mxu0
    %v1412 = vadd.f32 %v1241, %v1394
    %v1413 = vadd.f32 %v1246, %v1399
    %v1414 = vadd.f32 %v1251, %v1404
    %v1415 = vadd.f32 %v1256, %v1409
    %1416 = vset.pattern.permute.xlu0 2
    %1417 = vperm.xlu0 %1416, %v1259
    %v1418 = vpop.permute.xlu0 %1417
    %1420 = vset.pattern.permute.xlu0 2
    %1421 = vperm.xlu0 %1420, %v1260
    %v1422 = vpop.permute.xlu0 %1421
    %1424 = vset.pattern.permute.xlu0 2
    %1425 = vperm.xlu0 %1424, %v1261
    %v1426 = vpop.permute.xlu0 %1425
    %1428 = vset.pattern.permute.xlu0 2
    %1429 = vperm.xlu0 %1428, %v1262
    %v1430 = vpop.permute.xlu0 %1429
    %v1432 = vadd.f32 %v1412, %v1418
    %v1433 = vadd.f32 %v1413, %v1422
    %v1434 = vadd.f32 %v1414, %v1426
    %v1435 = vadd.f32 %v1415, %v1430
    %v1436 = vsel %vm382, %v1432, 0.0
    %v1437 = vsel %vm382, %v1433, 0.0
    %v1438 = vadd.f32 %v1436, %v1437
    %v1439 = vrot.slane %v1438, 4
    %v1440 = vadd.f32 %v1438, %v1439
    %v1441 = vrot.slane %v1440, 2
    %v1442 = vadd.f32 %v1440, %v1441
    %v1443 = vrot.slane %v1442, 1
    %v1444 = vadd.f32 %v1442, %v1443
    %v1445 = vmul.f32 %v1444, %v1083
    %v1446 = vsub.f32 %v1432, %v1445
    %v1447 = vsub.f32 %v1433, %v1445
    %v1448 = vmul.f32 %v1446, %v1446
    %v1449 = vmul.f32 %v1447, %v1447
    %v1450 = vsel %vm382, %v1448, 0.0
    %v1451 = vsel %vm382, %v1449, 0.0
    %v1452 = vadd.f32 %v1450, %v1451
    %v1453 = vrot.slane %v1452, 4
    %v1454 = vadd.f32 %v1452, %v1453
    %v1455 = vrot.slane %v1454, 2
    %v1456 = vadd.f32 %v1454, %v1455
    %v1457 = vrot.slane %v1456, 1
    %v1458 = vadd.f32 %v1456, %v1457
    %v1459 = vmul.f32 %v1458, %v1083
    %v1460 = vadd.f32 %v1459, 0.001
    %v1461 = vrsqrt.pop %v1460
    %v1462 = vmul.f32 %v1446, %v1461
    %v1463 = vmul.f32 %v1447, %v1461
    %v1464 = vsel %vm382, %v1434, 0.0
    %v1465 = vsel %vm382, %v1435, 0.0
    %v1466 = vadd.f32 %v1464, %v1465
    %v1467 = vrot.slane %v1466, 4
    %v1468 = vadd.f32 %v1466, %v1467
    %v1469 = vrot.slane %v1468, 2
    %v1470 = vadd.f32 %v1468, %v1469
    %v1471 = vrot.slane %v1470, 1
    %v1472 = vadd.f32 %v1470, %v1471
    %v1473 = vmul.f32 %v1472, %v1083
    %v1474 = vsub.f32 %v1434, %v1473
    %v1475 = vsub.f32 %v1435, %v1473
    %v1476 = vmul.f32 %v1474, %v1474
    %v1477 = vmul.f32 %v1475, %v1475
    %v1478 = vsel %vm382, %v1476, 0.0
    %v1479 = vsel %vm382, %v1477, 0.0
    %v1480 = vadd.f32 %v1478, %v1479
    %v1481 = vrot.slane %v1480, 4
    %v1482 = vadd.f32 %v1480, %v1481
    %v1483 = vrot.slane %v1482, 2
    %v1484 = vadd.f32 %v1482, %v1483
    %v1485 = vrot.slane %v1484, 1
    %v1486 = vadd.f32 %v1484, %v1485
    %v1487 = vmul.f32 %v1486, %v1083
    %v1488 = vadd.f32 %v1487, 0.001
    %v1489 = vrsqrt.pop %v1488
    %v1490 = vmul.f32 %v1474, %v1489
    %v1491 = vmul.f32 %v1475, %v1489
    %v1492 = vld [vmem:[#allocation2 + $0xc0] sm:$0x1]
    %v1493 = vld [vmem:[#allocation2 + $0xc1] sm:$0x1]
    %v1494 = vlaneseq
    %v1495 = vshrl.u32 %v1494, 7
    %v1496 = vsub.s32 0, %v1495
    %v1497 = vrot.slane %v1492, %v1496
    %v1498 = vmul.f32 %v1462, %v1497
    %v1499 = vmul.f32 %v1463, %v1497
    %v1500 = vmul.f32 %v1490, %v1497
    %v1501 = vmul.f32 %v1491, %v1497
    %v1502 = vlaneseq
    %v1503 = vshrl.u32 %v1502, 7
    %v1504 = vsub.s32 0, %v1503
    %v1505 = vrot.slane %v1493, %v1504
    %v1506 = vadd.f32 %v1498, %v1505
    %v1507 = vadd.f32 %v1499, %v1505
    %v1508 = vadd.f32 %v1500, %v1505
    %v1509 = vadd.f32 %v1501, %v1505
    %v1510 = vmax.f32 %v1506, 0.0
    %v1511 = vmax.f32 %v1507, 0.0
    %v1512 = vmax.f32 %v1508, 0.0
    %v1513 = vmax.f32 %v1509, 0.0
    %v1514 = vld [vmem:[#allocation2 + $0xc8] sm:$0xff]
    %v1515 = vld [vmem:[#allocation2 + $0xd0] sm:$0xff]
    %v1516 = vld [vmem:[#allocation2 + $0xd8] sm:$0xff]
    %v1517 = vld [vmem:[#allocation2 + $0xe0] sm:$0xff]
    %v1518 = vld [vmem:[#allocation2 + $0xe8] sm:$0x1]
    %v1519 = vlaneseq
    %v1520 = vshrl.u32 %v1519, 7
    %v1521 = vsub.s32 0, %v1520
    %v1522 = vrot.slane %v1518, %v1521
    %v1524 = vsel %vm382, %v1510, 0
    %v1527 = vsel %vm382, %v1511, 0
    %v1530 = vsel %vm382, %v1512, 0
    %v1533 = vsel %vm382, %v1513, 0
    %1535 = vmatprep.subr.mxu0 0.0
    %1536 = vmatpush1.msra.mxu0 %v1514
    %1537 = vmatprep.subr.mxu0 0.0
    %1538 = vmatpush1.msra.mxu0 %v1515
    %1539 = vmatprep.subr.mxu0 0.0
    %1540 = vmatpush1.msra.mxu0 %v1516
    %1541 = vmatprep.subr.mxu0 0.0
    %1542 = vmatpush1.msra.mxu0 %v1517
    %1543 = vmatprep.subr.mxu0 0.0
    %1544 = vmatpush1.msra.mxu0 0.0
    %1545 = vmatprep.subr.mxu0 0.0
    %1546 = vmatpush1.msra.mxu0 0.0
    %1547 = vmatprep.subr.mxu0 0.0
    %1548 = vmatpush1.msra.mxu0 0.0
    %1549 = vmatprep.subr.mxu0 0.0
    %1550 = vmatpush1.msra.mxu0 0.0
    %1551 = vmatprep.subr.mxu0 0.0
    %1552 = vmatpush1.msra.mxu0 0.0
    %1553 = vmatprep.subr.mxu0 0.0
    %1554 = vmatpush1.msra.mxu0 0.0
    %1555 = vmatprep.subr.mxu0 0.0
    %1556 = vmatpush1.msra.mxu0 0.0
    %1557 = vmatprep.subr.mxu0 0.0
    %1558 = vmatpush1.msra.mxu0 0.0
    %1559 = vmatprep.subr.mxu0 0.0
    %1560 = vmatpush1.msra.mxu0 0.0
    %1561 = vmatprep.subr.mxu0 0.0
    %1562 = vmatpush1.msra.mxu0 0.0
    %1563 = vmatprep.subr.mxu0 0.0
    %1564 = vmatpush1.msra.mxu0 0.0
    %1565 = vmatprep.subr.mxu0 0.0
    %1566 = vmatpush1.msra.mxu0 0.0
    %1567 = vmatprep.subr.mxu0 0.0
    %1568 = vmatpush1.msra.mxu0 0.0
    %1569 = vmatprep.subr.mxu0 0.0
    %1570 = vmatpush1.msra.mxu0 0.0
    %1571 = vmatprep.subr.mxu0 0.0
    %1572 = vmatpush1.msra.mxu0 0.0
    %1573 = vmatprep.subr.mxu0 0.0
    %1574 = vmatpush1.msra.mxu0 0.0
    %1575 = vmatprep.subr.mxu0 0.0
    %1576 = vmatpush1.msra.mxu0 0.0
    %1577 = vmatprep.subr.mxu0 0.0
    %1578 = vmatpush1.msra.mxu0 0.0
    %1579 = vmatprep.subr.mxu0 0.0
    %1580 = vmatpush1.msra.mxu0 0.0
    %1581 = vmatprep.subr.mxu0 0.0
    %1582 = vmatpush1.msra.mxu0 0.0
    %1583 = vmatprep.subr.mxu0 0.0
    %1584 = vmatpush1.msra.mxu0 0.0
    %1585 = vmatprep.subr.mxu0 0.0
    %1586 = vmatpush1.msra.mxu0 0.0
    %1587 = vmatprep.subr.mxu0 0.0
    %1588 = vmatpush1.msra.mxu0 0.0
    %1589 = vmatprep.subr.mxu0 0.0
    %1590 = vmatpush1.msra.mxu0 0.0
    %1591 = vmatprep.subr.mxu0 0.0
    %1592 = vmatpush1.msra.mxu0 0.0
    %1593 = vmatprep.subr.mxu0 0.0
    %1594 = vmatpush1.msra.mxu0 0.0
    %1595 = vmatprep.subr.mxu0 0.0
    %1596 = vmatpush1.msra.mxu0 0.0
    %1597 = vmatprep.subr.mxu0 0.0
    %1598 = vmatpush1.msra.mxu0 0.0
    %1599 = vmatprep.mubr.f32.mxu0 0.0
    %1600 = vmatmul.mubr.f32.gmra.mrb[0].mxu0 %v1524
    %v1601 = vpop.f32.mrb[0].mxu0
    %v1602 = vadd.f32 %v1522, %v1601
    %v1603 = vpop.f32.mrb[0].mxu0
    %1604 = vmatprep.mubr.f32.mxu0 0.0
    %1605 = vmatmul.mubr.f32.gmra.mrb[0].mxu0 %v1527
    %v1606 = vpop.f32.mrb[0].mxu0
    %v1607 = vadd.f32 %v1522, %v1606
    %v1608 = vpop.f32.mrb[0].mxu0
    %1609 = vmatprep.mubr.f32.mxu0 0.0
    %1610 = vmatmul.mubr.f32.gmra.mrb[0].mxu0 %v1530
    %v1611 = vpop.f32.mrb[0].mxu0
    %v1612 = vadd.f32 %v1522, %v1611
    %v1613 = vpop.f32.mrb[0].mxu0
    %1614 = vmatprep.mubr.f32.mxu0 0.0
    %1615 = vmatmul.mubr.f32.gmra.mrb[0].mxu0 %v1533
    %v1616 = vpop.f32.mrb[0].mxu0
    %v1617 = vadd.f32 %v1522, %v1616
    %v1618 = vpop.f32.mrb[0].mxu0
    %1619 = vdwg.mxu0
    %v1620 = vadd.f32 %v730, %v1602
    %v1621 = vadd.f32 %v735, %v1607
    %v1622 = vadd.f32 %v973, %v1612
    %v1623 = vadd.f32 %v978, %v1617
    %v1624 = vld [vmem:[#allocation2 + $0x130] sm:$0xff]
    %v1625 = vld [vmem:[#allocation2 + $0x138] sm:$0xff]
    %v1626 = vld [vmem:[#allocation2 + $0x140] sm:$0xff]
    %v1627 = vld [vmem:[#allocation2 + $0x148] sm:$0xff]
    %v1628 = vld [vmem:[#allocation2 + $0x150] sm:$0x1]
    %v1629 = vlaneseq
    %v1630 = vshrl.u32 %v1629, 7
    %v1631 = vsub.s32 0, %v1630
    %v1632 = vrot.slane %v1628, %v1631
    %v1634 = vsel %vm382, %v730, 0
    %v1637 = vsel %vm382, %v735, 0
    %v1640 = vsel %vm382, %v973, 0
    %v1643 = vsel %vm382, %v978, 0
    %1645 = vmatprep.subr.mxu0 0.0
    %1646 = vmatpush1.msra.mxu0 %v1624
    %1647 = vmatprep.subr.mxu0 0.0
    %1648 = vmatpush1.msra.mxu0 %v1625
    %1649 = vmatprep.subr.mxu0 0.0
    %1650 = vmatpush1.msra.mxu0 %v1626
    %1651 = vmatprep.subr.mxu0 0.0
    %1652 = vmatpush1.msra.mxu0 %v1627
    %1653 = vmatprep.subr.mxu0 0.0
    %1654 = vmatpush1.msra.mxu0 0.0
    %1655 = vmatprep.subr.mxu0 0.0
    %1656 = vmatpush1.msra.mxu0 0.0
    %1657 = vmatprep.subr.mxu0 0.0
    %1658 = vmatpush1.msra.mxu0 0.0
    %1659 = vmatprep.subr.mxu0 0.0
    %1660 = vmatpush1.msra.mxu0 0.0
    %1661 = vmatprep.subr.mxu0 0.0
    %1662 = vmatpush1.msra.mxu0 0.0
    %1663 = vmatprep.subr.mxu0 0.0
    %1664 = vmatpush1.msra.mxu0 0.0
    %1665 = vmatprep.subr.mxu0 0.0
    %1666 = vmatpush1.msra.mxu0 0.0
    %1667 = vmatprep.subr.mxu0 0.0
    %1668 = vmatpush1.msra.mxu0 0.0
    %1669 = vmatprep.subr.mxu0 0.0
    %1670 = vmatpush1.msra.mxu0 0.0
    %1671 = vmatprep.subr.mxu0 0.0
    %1672 = vmatpush1.msra.mxu0 0.0
    %1673 = vmatprep.subr.mxu0 0.0
    %1674 = vmatpush1.msra.mxu0 0.0
    %1675 = vmatprep.subr.mxu0 0.0
    %1676 = vmatpush1.msra.mxu0 0.0
    %1677 = vmatprep.subr.mxu0 0.0
    %1678 = vmatpush1.msra.mxu0 0.0
    %1679 = vmatprep.subr.mxu0 0.0
    %1680 = vmatpush1.msra.mxu0 0.0
    %1681 = vmatprep.subr.mxu0 0.0
    %1682 = vmatpush1.msra.mxu0 0.0
    %1683 = vmatprep.subr.mxu0 0.0
    %1684 = vmatpush1.msra.mxu0 0.0
    %1685 = vmatprep.subr.mxu0 0.0
    %1686 = vmatpush1.msra.mxu0 0.0
    %1687 = vmatprep.subr.mxu0 0.0
    %1688 = vmatpush1.msra.mxu0 0.0
    %1689 = vmatprep.subr.mxu0 0.0
    %1690 = vmatpush1.msra.mxu0 0.0
    %1691 = vmatprep.subr.mxu0 0.0
    %1692 = vmatpush1.msra.mxu0 0.0
    %1693 = vmatprep.subr.mxu0 0.0
    %1694 = vmatpush1.msra.mxu0 0.0
    %1695 = vmatprep.subr.mxu0 0.0
    %1696 = vmatpush1.msra.mxu0 0.0
    %1697 = vmatprep.subr.mxu0 0.0
    %1698 = vmatpush1.msra.mxu0 0.0
    %1699 = vmatprep.subr.mxu0 0.0
    %1700 = vmatpush1.msra.mxu0 0.0
    %1701 = vmatprep.subr.mxu0 0.0
    %1702 = vmatpush1.msra.mxu0 0.0
    %1703 = vmatprep.subr.mxu0 0.0
    %1704 = vmatpush1.msra.mxu0 0.0
    %1705 = vmatprep.subr.mxu0 0.0
    %1706 = vmatpush1.msra.mxu0 0.0
    %1707 = vmatprep.subr.mxu0 0.0
    %1708 = vmatpush1.msra.mxu0 0.0
    %1709 = vmatprep.mubr.f32.mxu0 0.0
    %1710 = vmatmul.mubr.f32.gmra.mrb[0].mxu0 %v1634
    %v1711 = vpop.f32.mrb[0].mxu0
    %v1712 = vadd.f32 %v1632, %v1711
    %v1713 = vpop.f32.mrb[0].mxu0
    %1714 = vmatprep.mubr.f32.mxu0 0.0
    %1715 = vmatmul.mubr.f32.gmra.mrb[0].mxu0 %v1637
    %v1716 = vpop.f32.mrb[0].mxu0
    %v1717 = vadd.f32 %v1632, %v1716
    %v1718 = vpop.f32.mrb[0].mxu0
    %1719 = vmatprep.mubr.f32.mxu0 0.0
    %1720 = vmatmul.mubr.f32.gmra.mrb[0].mxu0 %v1640
    %v1721 = vpop.f32.mrb[0].mxu0
    %v1722 = vadd.f32 %v1632, %v1721
    %v1723 = vpop.f32.mrb[0].mxu0
    %1724 = vmatprep.mubr.f32.mxu0 0.0
    %1725 = vmatmul.mubr.f32.gmra.mrb[0].mxu0 %v1643
    %v1726 = vpop.f32.mrb[0].mxu0
    %v1727 = vadd.f32 %v1632, %v1726
    %v1728 = vpop.f32.mrb[0].mxu0
    %1729 = vdwg.mxu0
    %v1730 = vld [vmem:[#allocation2 + $0x158] sm:$0xff]
    %v1731 = vld [vmem:[#allocation2 + $0x160] sm:$0xff]
    %v1732 = vld [vmem:[#allocation2 + $0x168] sm:$0xff]
    %v1733 = vld [vmem:[#allocation2 + $0x170] sm:$0xff]
    %v1734 = vld [vmem:[#allocation2 + $0x178] sm:$0x1]
    %v1735 = vlaneseq
    %v1736 = vshrl.u32 %v1735, 7
    %v1737 = vsub.s32 0, %v1736
    %v1738 = vrot.slane %v1734, %v1737
    %v1740 = vsel %vm382, %v819, 0
    %v1743 = vsel %vm382, %v824, 0
    %v1746 = vsel %vm382, %v1066, 0
    %v1749 = vsel %vm382, %v1071, 0
    %1751 = vmatprep.subr.mxu0 0.0
    %1752 = vmatpush1.msra.mxu0 %v1730
    %1753 = vmatprep.subr.mxu0 0.0
    %1754 = vmatpush1.msra.mxu0 %v1731
    %1755 = vmatprep.subr.mxu0 0.0
    %1756 = vmatpush1.msra.mxu0 %v1732
    %1757 = vmatprep.subr.mxu0 0.0
    %1758 = vmatpush1.msra.mxu0 %v1733
    %1759 = vmatprep.subr.mxu0 0.0
    %1760 = vmatpush1.msra.mxu0 0.0
    %1761 = vmatprep.subr.mxu0 0.0
    %1762 = vmatpush1.msra.mxu0 0.0
    %1763 = vmatprep.subr.mxu0 0.0
    %1764 = vmatpush1.msra.mxu0 0.0
    %1765 = vmatprep.subr.mxu0 0.0
    %1766 = vmatpush1.msra.mxu0 0.0
    %1767 = vmatprep.subr.mxu0 0.0
    %1768 = vmatpush1.msra.mxu0 0.0
    %1769 = vmatprep.subr.mxu0 0.0
    %1770 = vmatpush1.msra.mxu0 0.0
    %1771 = vmatprep.subr.mxu0 0.0
    %1772 = vmatpush1.msra.mxu0 0.0
    %1773 = vmatprep.subr.mxu0 0.0
    %1774 = vmatpush1.msra.mxu0 0.0
    %1775 = vmatprep.subr.mxu0 0.0
    %1776 = vmatpush1.msra.mxu0 0.0
    %1777 = vmatprep.subr.mxu0 0.0
    %1778 = vmatpush1.msra.mxu0 0.0
    %1779 = vmatprep.subr.mxu0 0.0
    %1780 = vmatpush1.msra.mxu0 0.0
    %1781 = vmatprep.subr.mxu0 0.0
    %1782 = vmatpush1.msra.mxu0 0.0
    %1783 = vmatprep.subr.mxu0 0.0
    %1784 = vmatpush1.msra.mxu0 0.0
    %1785 = vmatprep.subr.mxu0 0.0
    %1786 = vmatpush1.msra.mxu0 0.0
    %1787 = vmatprep.subr.mxu0 0.0
    %1788 = vmatpush1.msra.mxu0 0.0
    %1789 = vmatprep.subr.mxu0 0.0
    %1790 = vmatpush1.msra.mxu0 0.0
    %1791 = vmatprep.subr.mxu0 0.0
    %1792 = vmatpush1.msra.mxu0 0.0
    %1793 = vmatprep.subr.mxu0 0.0
    %1794 = vmatpush1.msra.mxu0 0.0
    %1795 = vmatprep.subr.mxu0 0.0
    %1796 = vmatpush1.msra.mxu0 0.0
    %1797 = vmatprep.subr.mxu0 0.0
    %1798 = vmatpush1.msra.mxu0 0.0
    %1799 = vmatprep.subr.mxu0 0.0
    %1800 = vmatpush1.msra.mxu0 0.0
    %1801 = vmatprep.subr.mxu0 0.0
    %1802 = vmatpush1.msra.mxu0 0.0
    %1803 = vmatprep.subr.mxu0 0.0
    %1804 = vmatpush1.msra.mxu0 0.0
    %1805 = vmatprep.subr.mxu0 0.0
    %1806 = vmatpush1.msra.mxu0 0.0
    %1807 = vmatprep.subr.mxu0 0.0
    %1808 = vmatpush1.msra.mxu0 0.0
    %1809 = vmatprep.subr.mxu0 0.0
    %1810 = vmatpush1.msra.mxu0 0.0
    %1811 = vmatprep.subr.mxu0 0.0
    %1812 = vmatpush1.msra.mxu0 0.0
    %1813 = vmatprep.subr.mxu0 0.0
    %1814 = vmatpush1.msra.mxu0 0.0
    %1815 = vmatprep.mubr.f32.mxu0 0.0
    %1816 = vmatmul.mubr.f32.gmra.mrb[0].mxu0 %v1740
    %v1817 = vpop.f32.mrb[0].mxu0
    %v1818 = vadd.f32 %v1738, %v1817
    %v1819 = vpop.f32.mrb[0].mxu0
    %1820 = vmatprep.mubr.f32.mxu0 0.0
    %1821 = vmatmul.mubr.f32.gmra.mrb[0].mxu0 %v1743
    %v1822 = vpop.f32.mrb[0].mxu0
    %v1823 = vadd.f32 %v1738, %v1822
    %v1824 = vpop.f32.mrb[0].mxu0
    %1825 = vmatprep.mubr.f32.mxu0 0.0
    %1826 = vmatmul.mubr.f32.gmra.mrb[0].mxu0 %v1746
    %v1827 = vpop.f32.mrb[0].mxu0
    %v1828 = vadd.f32 %v1738, %v1827
    %v1829 = vpop.f32.mrb[0].mxu0
    %1830 = vmatprep.mubr.f32.mxu0 0.0
    %1831 = vmatmul.mubr.f32.gmra.mrb[0].mxu0 %v1749
    %v1832 = vpop.f32.mrb[0].mxu0
    %v1833 = vadd.f32 %v1738, %v1832
    %v1834 = vpop.f32.mrb[0].mxu0
    %1835 = vdwg.mxu0
    %v1836 = vlaneseq
    %v1837 = vshrl.u32 %v1836, 7
    %v1838 = vadd.s32 %v1837, 8
    %v1839 = vadd.s32 %v1837, 16
    %v1840 = vadd.s32 %v1837, 24
    %v1841 = vlaneseq
    %v1842 = vand.u32 %v1841, 127
    %vm1843 = vcmp.ge.s32.totalorder %v1837, 0
    %vm1844 = vcmp.ge.s32.totalorder %v1838, 0
    %vm1845 = vcmp.ge.s32.totalorder %v1839, 0
    %vm1846 = vcmp.ge.s32.totalorder %v1840, 0
    %vm1847 = vcmp.lt.s32.totalorder %v1837, 16
    %vm1848 = vcmp.lt.s32.totalorder %v1838, 16
    %vm1849 = vcmp.lt.s32.totalorder %v1839, 16
    %vm1850 = vcmp.lt.s32.totalorder %v1840, 16
    %vm1851 = vmand %vm1843, %vm1847
    %vm1852 = vmand %vm1844, %vm1848
    %vm1853 = vmand %vm1845, %vm1849
    %vm1854 = vmand %vm1846, %vm1850
    %vm1855 = vcmp.ge.s32.totalorder %v1842, 0
    %vm1856 = vmand %vm1851, %vm1855
    %vm1857 = vmand %vm1852, %vm1855
    %vm1858 = vmand %vm1853, %vm1855
    %vm1859 = vmand %vm1854, %vm1855
    %vm1860 = vcmp.lt.s32.totalorder %v1842, 16
    %vm1861 = vmand %vm1856, %vm1860
    %vm1862 = vmand %vm1857, %vm1860
    %vm1863 = vmand %vm1858, %vm1860
    %vm1864 = vmand %vm1859, %vm1860
    %vm1865 = vcmp.ge.s32.totalorder %v1837, 16
    %vm1866 = vcmp.ge.s32.totalorder %v1838, 16
    %vm1867 = vcmp.ge.s32.totalorder %v1839, 16
    %vm1868 = vcmp.ge.s32.totalorder %v1840, 16
    %vm1869 = vcmp.lt.s32.totalorder %v1837, 32
    %vm1870 = vcmp.lt.s32.totalorder %v1838, 32
    %vm1871 = vcmp.lt.s32.totalorder %v1839, 32
    %vm1872 = vcmp.lt.s32.totalorder %v1840, 32
    %vm1873 = vmand %vm1865, %vm1869
    %vm1874 = vmand %vm1866, %vm1870
    %vm1875 = vmand %vm1867, %vm1871
    %vm1876 = vmand %vm1868, %vm1872
    %vm1877 = vcmp.ge.s32.totalorder %v1842, 16
    %vm1878 = vmand %vm1873, %vm1877
    %vm1879 = vmand %vm1874, %vm1877
    %vm1880 = vmand %vm1875, %vm1877
    %vm1881 = vmand %vm1876, %vm1877
    %vm1882 = vcmp.lt.s32.totalorder %v1842, 32
    %vm1883 = vmand %vm1878, %vm1882
    %vm1884 = vmand %vm1879, %vm1882
    %vm1885 = vmand %vm1880, %vm1882
    %vm1886 = vmand %vm1881, %vm1882
    %vm1887 = vmor %vm1861, %vm1883
    %vm1888 = vmor %vm1862, %vm1884
    %vm1889 = vmor %vm1863, %vm1885
    %vm1890 = vmor %vm1864, %vm1886
    %vm1891 = vcmask 64512
    %v1893 = vsel %vm1891, %v1712, 0
    %v1896 = vsel %vm1891, %v1717, 0
    %v1899 = vsel %vm1891, %v1722, 0
    %v1902 = vsel %vm1891, %v1727, 0
    %v1905 = vsel %vm1891, %v1818, 0
    %v1908 = vsel %vm1891, %v1823, 0
    %v1911 = vsel %vm1891, %v1828, 0
    %v1914 = vsel %vm1891, %v1833, 0
    %1916 = vmatprep.subr.mxu0 0.0
    %1917 = vmatpush1.xpose.msra.mxu0 %v1905
    %1918 = vmatprep.subr.mxu0 0.0
    %1919 = vmatpush1.xpose.msra.mxu0 %v1908
    %1920 = vmatprep.subr.mxu0 0.0
    %1921 = vmatpush1.xpose.msra.mxu0 %v1911
    %1922 = vmatprep.subr.mxu0 0.0
    %1923 = vmatpush1.xpose.msra.mxu0 %v1914
    %1924 = vmatprep.subr.mxu0 0.0
    %1925 = vmatpush1.xpose.msra.mxu0 0.0
    %1926 = vmatprep.subr.mxu0 0.0
    %1927 = vmatpush1.xpose.msra.mxu0 0.0
    %1928 = vmatprep.subr.mxu0 0.0
    %1929 = vmatpush1.xpose.msra.mxu0 0.0
    %1930 = vmatprep.subr.mxu0 0.0
    %1931 = vmatpush1.xpose.msra.mxu0 0.0
    %1932 = vmatprep.subr.mxu0 0.0
    %1933 = vmatpush1.xpose.msra.mxu0 0.0
    %1934 = vmatprep.subr.mxu0 0.0
    %1935 = vmatpush1.xpose.msra.mxu0 0.0
    %1936 = vmatprep.subr.mxu0 0.0
    %1937 = vmatpush1.xpose.msra.mxu0 0.0
    %1938 = vmatprep.subr.mxu0 0.0
    %1939 = vmatpush1.xpose.msra.mxu0 0.0
    %1940 = vmatprep.subr.mxu0 0.0
    %1941 = vmatpush1.xpose.msra.mxu0 0.0
    %1942 = vmatprep.subr.mxu0 0.0
    %1943 = vmatpush1.xpose.msra.mxu0 0.0
    %1944 = vmatprep.subr.mxu0 0.0
    %1945 = vmatpush1.xpose.msra.mxu0 0.0
    %1946 = vmatprep.subr.mxu0 0.0
    %1947 = vmatpush1.xpose.msra.mxu0 0.0
    %1948 = vmatprep.subr.mxu0 0.0
    %1949 = vmatpush1.xpose.msra.mxu0 0.0
    %1950 = vmatprep.subr.mxu0 0.0
    %1951 = vmatpush1.xpose.msra.mxu0 0.0
    %1952 = vmatprep.subr.mxu0 0.0
    %1953 = vmatpush1.xpose.msra.mxu0 0.0
    %1954 = vmatprep.subr.mxu0 0.0
    %1955 = vmatpush1.xpose.msra.mxu0 0.0
    %1956 = vmatprep.subr.mxu0 0.0
    %1957 = vmatpush1.xpose.msra.mxu0 0.0
    %1958 = vmatprep.subr.mxu0 0.0
    %1959 = vmatpush1.xpose.msra.mxu0 0.0
    %1960 = vmatprep.subr.mxu0 0.0
    %1961 = vmatpush1.xpose.msra.mxu0 0.0
    %1962 = vmatprep.subr.mxu0 0.0
    %1963 = vmatpush1.xpose.msra.mxu0 0.0
    %1964 = vmatprep.subr.mxu0 0.0
    %1965 = vmatpush1.xpose.msra.mxu0 0.0
    %1966 = vmatprep.subr.mxu0 0.0
    %1967 = vmatpush1.xpose.msra.mxu0 0.0
    %1968 = vmatprep.subr.mxu0 0.0
    %1969 = vmatpush1.xpose.msra.mxu0 0.0
    %1970 = vmatprep.subr.mxu0 0.0
    %1971 = vmatpush1.xpose.msra.mxu0 0.0
    %1972 = vmatprep.subr.mxu0 0.0
    %1973 = vmatpush1.xpose.msra.mxu0 0.0
    %1974 = vmatprep.subr.mxu0 0.0
    %1975 = vmatpush1.xpose.msra.mxu0 0.0
    %1976 = vmatprep.subr.mxu0 0.0
    %1977 = vmatpush1.xpose.msra.mxu0 0.0
    %1978 = vmatprep.subr.mxu0 0.0
    %1979 = vmatpush1.xpose.msra.mxu0 0.0
    %1980 = vmatprep.mubr.f32.mxu0 0.0
    %1981 = vmatmul.mubr.f32.gmra.mrb[0].mxu0 %v1893
    %v1982 = vpop.f32.mrb[0].mxu0
    %v1983 = vadd.f32 0.0, %v1982
    %v1984 = vpop.f32.mrb[0].mxu0
    %1985 = vmatprep.mubr.f32.mxu0 0.0
    %1986 = vmatmul.mubr.f32.gmra.mrb[0].mxu0 %v1896
    %v1987 = vpop.f32.mrb[0].mxu0
    %v1988 = vadd.f32 0.0, %v1987
    %v1989 = vpop.f32.mrb[0].mxu0
    %1990 = vmatprep.mubr.f32.mxu0 0.0
    %1991 = vmatmul.mubr.f32.gmra.mrb[0].mxu0 %v1899
    %v1992 = vpop.f32.mrb[0].mxu0
    %v1993 = vadd.f32 0.0, %v1992
    %v1994 = vpop.f32.mrb[0].mxu0
    %1995 = vmatprep.mubr.f32.mxu0 0.0
    %1996 = vmatmul.mubr.f32.gmra.mrb[0].mxu0 %v1902
    %v1997 = vpop.f32.mrb[0].mxu0
    %v1998 = vadd.f32 0.0, %v1997
    %v1999 = vpop.f32.mrb[0].mxu0
    %2000 = vdwg.mxu0
    %v2001 = vsel %vm1887, %v1983, -1e+30
    %v2002 = vsel %vm1888, %v1988, -1e+30
    %v2003 = vsel %vm1889, %v1993, -1e+30
    %v2004 = vsel %vm1890, %v1998, -1e+30
    %v2005 = vsel %vm382, %v2001, -inf
    %2006 = vmax.xlane.f32.xlu0 %v2005
    %v2007 = vpop.xlane.xlu0 %2006
    %v2008 = vsel %vm382, %v2002, -inf
    %2009 = vmax.xlane.f32.xlu0 %v2008
    %v2010 = vpop.xlane.xlu0 %2009
    %v2011 = vsel %vm382, %v2003, -inf
    %2012 = vmax.xlane.f32.xlu0 %v2011
    %v2013 = vpop.xlane.xlu0 %2012
    %v2014 = vsel %vm382, %v2004, -inf
    %2015 = vmax.xlane.f32.xlu0 %v2014
    %v2016 = vpop.xlane.xlu0 %2015
    %v2017 = vsub.f32 %v2001, %v2007
    %v2018 = vsub.f32 %v2002, %v2010
    %v2019 = vsub.f32 %v2003, %v2013
    %v2020 = vsub.f32 %v2004, %v2016
    %v2021 = vmul.f32 %v2017, 1.442695
    %v2022 = vpow.pop %v2021
    %v2023 = vmul.f32 %v2018, 1.442695
    %v2024 = vpow.pop %v2023
    %v2025 = vmul.f32 %v2019, 1.442695
    %v2026 = vpow.pop %v2025
    %v2027 = vmul.f32 %v2020, 1.442695
    %v2028 = vpow.pop %v2027
    %v2029 = vsel %vm382, %v2022, 0.0
    %2030 = vadd.xlane.f32.xlu0 %v2029
    %v2031 = vpop.xlane.xlu0 %2030
    %v2032 = vsel %vm382, %v2024, 0.0
    %2033 = vadd.xlane.f32.xlu0 %v2032
    %v2034 = vpop.xlane.xlu0 %2033
    %v2035 = vsel %vm382, %v2026, 0.0
    %2036 = vadd.xlane.f32.xlu0 %v2035
    %v2037 = vpop.xlane.xlu0 %2036
    %v2038 = vsel %vm382, %v2028, 0.0
    %2039 = vadd.xlane.f32.xlu0 %v2038
    %v2040 = vpop.xlane.xlu0 %2039
    %v2041 = vrcp.pop %v2031
    %v2042 = vrcp.pop %v2034
    %v2043 = vrcp.pop %v2037
    %v2044 = vrcp.pop %v2040
    %v2045 = vmul.f32 %v2022, %v2041
    %v2046 = vmul.f32 %v2024, %v2042
    %v2047 = vmul.f32 %v2026, %v2043
    %v2048 = vmul.f32 %v2028, %v2044
    %2049 = vrot.lane.b32.xlu0 %v1818, 96
    %v2050 = vpop.permute.xlu0 %2049
    %2051 = vrot.lane.b32.xlu0 %v1823, 96
    %v2052 = vpop.permute.xlu0 %2051
    %2053 = vrot.lane.b32.xlu0 %v1828, 96
    %v2054 = vpop.permute.xlu0 %2053
    %2055 = vrot.lane.b32.xlu0 %v1833, 96
    %v2056 = vpop.permute.xlu0 %2055
    %v2062 = vsel %vm382, %v2045, 0
    %v2065 = vsel %vm382, %v2046, 0
    %v2068 = vsel %vm382, %v2047, 0
    %v2071 = vsel %vm382, %v2048, 0
    %2073 = vmatprep.subr.mxu0 0.0
    %2074 = vmatpush1.msra.mxu0 %v2050
    %2075 = vmatprep.subr.mxu0 0.0
    %2076 = vmatpush1.msra.mxu0 %v2052
    %2077 = vmatprep.subr.mxu0 0.0
    %2078 = vmatpush1.msra.mxu0 %v2054
    %2079 = vmatprep.subr.mxu0 0.0
    %2080 = vmatpush1.msra.mxu0 %v2056
    %2081 = vmatprep.subr.mxu0 0.0
    %2082 = vmatpush1.msra.mxu0 0.0
    %2083 = vmatprep.subr.mxu0 0.0
    %2084 = vmatpush1.msra.mxu0 0.0
    %2085 = vmatprep.subr.mxu0 0.0
    %2086 = vmatpush1.msra.mxu0 0.0
    %2087 = vmatprep.subr.mxu0 0.0
    %2088 = vmatpush1.msra.mxu0 0.0
    %2089 = vmatprep.subr.mxu0 0.0
    %2090 = vmatpush1.msra.mxu0 0.0
    %2091 = vmatprep.subr.mxu0 0.0
    %2092 = vmatpush1.msra.mxu0 0.0
    %2093 = vmatprep.subr.mxu0 0.0
    %2094 = vmatpush1.msra.mxu0 0.0
    %2095 = vmatprep.subr.mxu0 0.0
    %2096 = vmatpush1.msra.mxu0 0.0
    %2097 = vmatprep.subr.mxu0 0.0
    %2098 = vmatpush1.msra.mxu0 0.0
    %2099 = vmatprep.subr.mxu0 0.0
    %2100 = vmatpush1.msra.mxu0 0.0
    %2101 = vmatprep.subr.mxu0 0.0
    %2102 = vmatpush1.msra.mxu0 0.0
    %2103 = vmatprep.subr.mxu0 0.0
    %2104 = vmatpush1.msra.mxu0 0.0
    %2105 = vmatprep.subr.mxu0 0.0
    %2106 = vmatpush1.msra.mxu0 0.0
    %2107 = vmatprep.subr.mxu0 0.0
    %2108 = vmatpush1.msra.mxu0 0.0
    %2109 = vmatprep.subr.mxu0 0.0
    %2110 = vmatpush1.msra.mxu0 0.0
    %2111 = vmatprep.subr.mxu0 0.0
    %2112 = vmatpush1.msra.mxu0 0.0
    %2113 = vmatprep.subr.mxu0 0.0
    %2114 = vmatpush1.msra.mxu0 0.0
    %2115 = vmatprep.subr.mxu0 0.0
    %2116 = vmatpush1.msra.mxu0 0.0
    %2117 = vmatprep.subr.mxu0 0.0
    %2118 = vmatpush1.msra.mxu0 0.0
    %2119 = vmatprep.subr.mxu0 0.0
    %2120 = vmatpush1.msra.mxu0 0.0
    %2121 = vmatprep.subr.mxu0 0.0
    %2122 = vmatpush1.msra.mxu0 0.0
    %2123 = vmatprep.subr.mxu0 0.0
    %2124 = vmatpush1.msra.mxu0 0.0
    %2125 = vmatprep.subr.mxu0 0.0
    %2126 = vmatpush1.msra.mxu0 0.0
    %2127 = vmatprep.subr.mxu0 0.0
    %2128 = vmatpush1.msra.mxu0 0.0
    %2129 = vmatprep.subr.mxu0 0.0
    %2130 = vmatpush1.msra.mxu0 0.0
    %2131 = vmatprep.subr.mxu0 0.0
    %2132 = vmatpush1.msra.mxu0 0.0
    %2133 = vmatprep.subr.mxu0 0.0
    %2134 = vmatpush1.msra.mxu0 0.0
    %2135 = vmatprep.subr.mxu0 0.0
    %2136 = vmatpush1.msra.mxu0 0.0
    %2137 = vmatprep.mubr.f32.mxu0 0.0
    %2138 = vmatmul.mubr.f32.gmra.mrb[0].mxu0 %v2062
    %v2139 = vpop.f32.mrb[0].mxu0
    %v2140 = vadd.f32 0.0, %v2139
    %v2141 = vpop.f32.mrb[0].mxu0
    %2142 = vmatprep.mubr.f32.mxu0 0.0
    %2143 = vmatmul.mubr.f32.gmra.mrb[0].mxu0 %v2065
    %v2144 = vpop.f32.mrb[0].mxu0
    %v2145 = vadd.f32 0.0, %v2144
    %v2146 = vpop.f32.mrb[0].mxu0
    %2147 = vmatprep.mubr.f32.mxu0 0.0
    %2148 = vmatmul.mubr.f32.gmra.mrb[0].mxu0 %v2068
    %v2149 = vpop.f32.mrb[0].mxu0
    %v2150 = vadd.f32 0.0, %v2149
    %v2151 = vpop.f32.mrb[0].mxu0
    %2152 = vmatprep.mubr.f32.mxu0 0.0
    %2153 = vmatmul.mubr.f32.gmra.mrb[0].mxu0 %v2071
    %v2154 = vpop.f32.mrb[0].mxu0
    %v2155 = vadd.f32 0.0, %v2154
    %v2156 = vpop.f32.mrb[0].mxu0
    %2157 = vdwg.mxu0
    %2158 = vrot.lane.b32.xlu0 %v1712, 120
    %v2159 = vpop.permute.xlu0 %2158
    %2160 = vrot.lane.b32.xlu0 %v1717, 120
    %v2161 = vpop.permute.xlu0 %2160
    %2162 = vrot.lane.b32.xlu0 %v1722, 120
    %v2163 = vpop.permute.xlu0 %2162
    %2164 = vrot.lane.b32.xlu0 %v1727, 120
    %v2165 = vpop.permute.xlu0 %2164
    %2166 = vrot.lane.b32.xlu0 %v1818, 120
    %v2167 = vpop.permute.xlu0 %2166
    %2168 = vrot.lane.b32.xlu0 %v1823, 120
    %v2169 = vpop.permute.xlu0 %2168
    %2170 = vrot.lane.b32.xlu0 %v1828, 120
    %v2171 = vpop.permute.xlu0 %2170
    %2172 = vrot.lane.b32.xlu0 %v1833, 120
    %v2173 = vpop.permute.xlu0 %2172
    %v2174 = vsel %vm1891, %v2159, 0
    %v2176 = vsel %vm1891, %v2161, 0
    %v2178 = vsel %vm1891, %v2163, 0
    %v2180 = vsel %vm1891, %v2165, 0
    %v2182 = vsel %vm1891, %v2167, 0
    %v2184 = vsel %vm1891, %v2169, 0
    %v2186 = vsel %vm1891, %v2171, 0
    %v2188 = vsel %vm1891, %v2173, 0
    %2190 = vmatprep.subr.mxu0 0.0
    %2191 = vmatpush1.xpose.msra.mxu0 %v2182
    %2192 = vmatprep.subr.mxu0 0.0
    %2193 = vmatpush1.xpose.msra.mxu0 %v2184
    %2194 = vmatprep.subr.mxu0 0.0
    %2195 = vmatpush1.xpose.msra.mxu0 %v2186
    %2196 = vmatprep.subr.mxu0 0.0
    %2197 = vmatpush1.xpose.msra.mxu0 %v2188
    %2198 = vmatprep.subr.mxu0 0.0
    %2199 = vmatpush1.xpose.msra.mxu0 0.0
    %2200 = vmatprep.subr.mxu0 0.0
    %2201 = vmatpush1.xpose.msra.mxu0 0.0
    %2202 = vmatprep.subr.mxu0 0.0
    %2203 = vmatpush1.xpose.msra.mxu0 0.0
    %2204 = vmatprep.subr.mxu0 0.0
    %2205 = vmatpush1.xpose.msra.mxu0 0.0
    %2206 = vmatprep.subr.mxu0 0.0
    %2207 = vmatpush1.xpose.msra.mxu0 0.0
    %2208 = vmatprep.subr.mxu0 0.0
    %2209 = vmatpush1.xpose.msra.mxu0 0.0
    %2210 = vmatprep.subr.mxu0 0.0
    %2211 = vmatpush1.xpose.msra.mxu0 0.0
    %2212 = vmatprep.subr.mxu0 0.0
    %2213 = vmatpush1.xpose.msra.mxu0 0.0
    %2214 = vmatprep.subr.mxu0 0.0
    %2215 = vmatpush1.xpose.msra.mxu0 0.0
    %2216 = vmatprep.subr.mxu0 0.0
    %2217 = vmatpush1.xpose.msra.mxu0 0.0
    %2218 = vmatprep.subr.mxu0 0.0
    %2219 = vmatpush1.xpose.msra.mxu0 0.0
    %2220 = vmatprep.subr.mxu0 0.0
    %2221 = vmatpush1.xpose.msra.mxu0 0.0
    %2222 = vmatprep.subr.mxu0 0.0
    %2223 = vmatpush1.xpose.msra.mxu0 0.0
    %2224 = vmatprep.subr.mxu0 0.0
    %2225 = vmatpush1.xpose.msra.mxu0 0.0
    %2226 = vmatprep.subr.mxu0 0.0
    %2227 = vmatpush1.xpose.msra.mxu0 0.0
    %2228 = vmatprep.subr.mxu0 0.0
    %2229 = vmatpush1.xpose.msra.mxu0 0.0
    %2230 = vmatprep.subr.mxu0 0.0
    %2231 = vmatpush1.xpose.msra.mxu0 0.0
    %2232 = vmatprep.subr.mxu0 0.0
    %2233 = vmatpush1.xpose.msra.mxu0 0.0
    %2234 = vmatprep.subr.mxu0 0.0
    %2235 = vmatpush1.xpose.msra.mxu0 0.0
    %2236 = vmatprep.subr.mxu0 0.0
    %2237 = vmatpush1.xpose.msra.mxu0 0.0
    %2238 = vmatprep.subr.mxu0 0.0
    %2239 = vmatpush1.xpose.msra.mxu0 0.0
    %2240 = vmatprep.subr.mxu0 0.0
    %2241 = vmatpush1.xpose.msra.mxu0 0.0
    %2242 = vmatprep.subr.mxu0 0.0
    %2243 = vmatpush1.xpose.msra.mxu0 0.0
    %2244 = vmatprep.subr.mxu0 0.0
    %2245 = vmatpush1.xpose.msra.mxu0 0.0
    %2246 = vmatprep.subr.mxu0 0.0
    %2247 = vmatpush1.xpose.msra.mxu0 0.0
    %2248 = vmatprep.subr.mxu0 0.0
    %2249 = vmatpush1.xpose.msra.mxu0 0.0
    %2250 = vmatprep.subr.mxu0 0.0
    %2251 = vmatpush1.xpose.msra.mxu0 0.0
    %2252 = vmatprep.subr.mxu0 0.0
    %2253 = vmatpush1.xpose.msra.mxu0 0.0
    %2254 = vmatprep.mubr.f32.mxu0 0.0
    %2255 = vmatmul.mubr.f32.gmra.mrb[0].mxu0 %v2174
    %v2256 = vpop.f32.mrb[0].mxu0
    %v2257 = vadd.f32 0.0, %v2256
    %v2258 = vpop.f32.mrb[0].mxu0
    %2259 = vmatprep.mubr.f32.mxu0 0.0
    %2260 = vmatmul.mubr.f32.gmra.mrb[0].mxu0 %v2176
    %v2261 = vpop.f32.mrb[0].mxu0
    %v2262 = vadd.f32 0.0, %v2261
    %v2263 = vpop.f32.mrb[0].mxu0
    %2264 = vmatprep.mubr.f32.mxu0 0.0
    %2265 = vmatmul.mubr.f32.gmra.mrb[0].mxu0 %v2178
    %v2266 = vpop.f32.mrb[0].mxu0
    %v2267 = vadd.f32 0.0, %v2266
    %v2268 = vpop.f32.mrb[0].mxu0
    %2269 = vmatprep.mubr.f32.mxu0 0.0
    %2270 = vmatmul.mubr.f32.gmra.mrb[0].mxu0 %v2180
    %v2271 = vpop.f32.mrb[0].mxu0
    %v2272 = vadd.f32 0.0, %v2271
    %v2273 = vpop.f32.mrb[0].mxu0
    %2274 = vdwg.mxu0
    %v2275 = vsel %vm1887, %v2257, -1e+30
    %v2276 = vsel %vm1888, %v2262, -1e+30
    %v2277 = vsel %vm1889, %v2267, -1e+30
    %v2278 = vsel %vm1890, %v2272, -1e+30
    %v2279 = vsel %vm382, %v2275, -inf
    %2280 = vmax.xlane.f32.xlu0 %v2279
    %v2281 = vpop.xlane.xlu0 %2280
    %v2282 = vsel %vm382, %v2276, -inf
    %2283 = vmax.xlane.f32.xlu0 %v2282
    %v2284 = vpop.xlane.xlu0 %2283
    %v2285 = vsel %vm382, %v2277, -inf
    %2286 = vmax.xlane.f32.xlu0 %v2285
    %v2287 = vpop.xlane.xlu0 %2286
    %v2288 = vsel %vm382, %v2278, -inf
    %2289 = vmax.xlane.f32.xlu0 %v2288
    %v2290 = vpop.xlane.xlu0 %2289
    %v2291 = vsub.f32 %v2275, %v2281
    %v2292 = vsub.f32 %v2276, %v2284
    %v2293 = vsub.f32 %v2277, %v2287
    %v2294 = vsub.f32 %v2278, %v2290
    %v2295 = vmul.f32 %v2291, 1.442695
    %v2296 = vpow.pop %v2295
    %v2297 = vmul.f32 %v2292, 1.442695
    %v2298 = vpow.pop %v2297
    %v2299 = vmul.f32 %v2293, 1.442695
    %v2300 = vpow.pop %v2299
    %v2301 = vmul.f32 %v2294, 1.442695
    %v2302 = vpow.pop %v2301
    %v2303 = vsel %vm382, %v2296, 0.0
    %2304 = vadd.xlane.f32.xlu0 %v2303
    %v2305 = vpop.xlane.xlu0 %2304
    %v2306 = vsel %vm382, %v2298, 0.0
    %2307 = vadd.xlane.f32.xlu0 %v2306
    %v2308 = vpop.xlane.xlu0 %2307
    %v2309 = vsel %vm382, %v2300, 0.0
    %2310 = vadd.xlane.f32.xlu0 %v2309
    %v2311 = vpop.xlane.xlu0 %2310
    %v2312 = vsel %vm382, %v2302, 0.0
    %2313 = vadd.xlane.f32.xlu0 %v2312
    %v2314 = vpop.xlane.xlu0 %2313
    %v2315 = vrcp.pop %v2305
    %v2316 = vrcp.pop %v2308
    %v2317 = vrcp.pop %v2311
    %v2318 = vrcp.pop %v2314
    %v2319 = vmul.f32 %v2296, %v2315
    %v2320 = vmul.f32 %v2298, %v2316
    %v2321 = vmul.f32 %v2300, %v2317
    %v2322 = vmul.f32 %v2302, %v2318
    %2323 = vrot.lane.b32.xlu0 %v1818, 88
    %v2324 = vpop.permute.xlu0 %2323
    %2325 = vrot.lane.b32.xlu0 %v1823, 88
    %v2326 = vpop.permute.xlu0 %2325
    %2327 = vrot.lane.b32.xlu0 %v1828, 88
    %v2328 = vpop.permute.xlu0 %2327
    %2329 = vrot.lane.b32.xlu0 %v1833, 88
    %v2330 = vpop.permute.xlu0 %2329
    %v2336 = vsel %vm382, %v2319, 0
    %v2339 = vsel %vm382, %v2320, 0
    %v2342 = vsel %vm382, %v2321, 0
    %v2345 = vsel %vm382, %v2322, 0
    %2347 = vmatprep.subr.mxu0 0.0
    %2348 = vmatpush1.msra.mxu0 %v2324
    %2349 = vmatprep.subr.mxu0 0.0
    %2350 = vmatpush1.msra.mxu0 %v2326
    %2351 = vmatprep.subr.mxu0 0.0
    %2352 = vmatpush1.msra.mxu0 %v2328
    %2353 = vmatprep.subr.mxu0 0.0
    %2354 = vmatpush1.msra.mxu0 %v2330
    %2355 = vmatprep.subr.mxu0 0.0
    %2356 = vmatpush1.msra.mxu0 0.0
    %2357 = vmatprep.subr.mxu0 0.0
    %2358 = vmatpush1.msra.mxu0 0.0
    %2359 = vmatprep.subr.mxu0 0.0
    %2360 = vmatpush1.msra.mxu0 0.0
    %2361 = vmatprep.subr.mxu0 0.0
    %2362 = vmatpush1.msra.mxu0 0.0
    %2363 = vmatprep.subr.mxu0 0.0
    %2364 = vmatpush1.msra.mxu0 0.0
    %2365 = vmatprep.subr.mxu0 0.0
    %2366 = vmatpush1.msra.mxu0 0.0
    %2367 = vmatprep.subr.mxu0 0.0
    %2368 = vmatpush1.msra.mxu0 0.0
    %2369 = vmatprep.subr.mxu0 0.0
    %2370 = vmatpush1.msra.mxu0 0.0
    %2371 = vmatprep.subr.mxu0 0.0
    %2372 = vmatpush1.msra.mxu0 0.0
    %2373 = vmatprep.subr.mxu0 0.0
    %2374 = vmatpush1.msra.mxu0 0.0
    %2375 = vmatprep.subr.mxu0 0.0
    %2376 = vmatpush1.msra.mxu0 0.0
    %2377 = vmatprep.subr.mxu0 0.0
    %2378 = vmatpush1.msra.mxu0 0.0
    %2379 = vmatprep.subr.mxu0 0.0
    %2380 = vmatpush1.msra.mxu0 0.0
    %2381 = vmatprep.subr.mxu0 0.0
    %2382 = vmatpush1.msra.mxu0 0.0
    %2383 = vmatprep.subr.mxu0 0.0
    %2384 = vmatpush1.msra.mxu0 0.0
    %2385 = vmatprep.subr.mxu0 0.0
    %2386 = vmatpush1.msra.mxu0 0.0
    %2387 = vmatprep.subr.mxu0 0.0
    %2388 = vmatpush1.msra.mxu0 0.0
    %2389 = vmatprep.subr.mxu0 0.0
    %2390 = vmatpush1.msra.mxu0 0.0
    %2391 = vmatprep.subr.mxu0 0.0
    %2392 = vmatpush1.msra.mxu0 0.0
    %2393 = vmatprep.subr.mxu0 0.0
    %2394 = vmatpush1.msra.mxu0 0.0
    %2395 = vmatprep.subr.mxu0 0.0
    %2396 = vmatpush1.msra.mxu0 0.0
    %2397 = vmatprep.subr.mxu0 0.0
    %2398 = vmatpush1.msra.mxu0 0.0
    %2399 = vmatprep.subr.mxu0 0.0
    %2400 = vmatpush1.msra.mxu0 0.0
    %2401 = vmatprep.subr.mxu0 0.0
    %2402 = vmatpush1.msra.mxu0 0.0
    %2403 = vmatprep.subr.mxu0 0.0
    %2404 = vmatpush1.msra.mxu0 0.0
    %2405 = vmatprep.subr.mxu0 0.0
    %2406 = vmatpush1.msra.mxu0 0.0
    %2407 = vmatprep.subr.mxu0 0.0
    %2408 = vmatpush1.msra.mxu0 0.0
    %2409 = vmatprep.subr.mxu0 0.0
    %2410 = vmatpush1.msra.mxu0 0.0
    %2411 = vmatprep.mubr.f32.mxu0 0.0
    %2412 = vmatmul.mubr.f32.gmra.mrb[0].mxu0 %v2336
    %v2413 = vpop.f32.mrb[0].mxu0
    %v2414 = vadd.f32 0.0, %v2413
    %v2415 = vpop.f32.mrb[0].mxu0
    %2416 = vmatprep.mubr.f32.mxu0 0.0
    %2417 = vmatmul.mubr.f32.gmra.mrb[0].mxu0 %v2339
    %v2418 = vpop.f32.mrb[0].mxu0
    %v2419 = vadd.f32 0.0, %v2418
    %v2420 = vpop.f32.mrb[0].mxu0
    %2421 = vmatprep.mubr.f32.mxu0 0.0
    %2422 = vmatmul.mubr.f32.gmra.mrb[0].mxu0 %v2342
    %v2423 = vpop.f32.mrb[0].mxu0
    %v2424 = vadd.f32 0.0, %v2423
    %v2425 = vpop.f32.mrb[0].mxu0
    %2426 = vmatprep.mubr.f32.mxu0 0.0
    %2427 = vmatmul.mubr.f32.gmra.mrb[0].mxu0 %v2345
    %v2428 = vpop.f32.mrb[0].mxu0
    %v2429 = vadd.f32 0.0, %v2428
    %v2430 = vpop.f32.mrb[0].mxu0
    %2431 = vdwg.mxu0
    %2432 = vrot.lane.b32.xlu0 %v1712, 112
    %v2433 = vpop.permute.xlu0 %2432
    %2434 = vrot.lane.b32.xlu0 %v1717, 112
    %v2435 = vpop.permute.xlu0 %2434
    %2436 = vrot.lane.b32.xlu0 %v1722, 112
    %v2437 = vpop.permute.xlu0 %2436
    %2438 = vrot.lane.b32.xlu0 %v1727, 112
    %v2439 = vpop.permute.xlu0 %2438
    %2440 = vrot.lane.b32.xlu0 %v1818, 112
    %v2441 = vpop.permute.xlu0 %2440
    %2442 = vrot.lane.b32.xlu0 %v1823, 112
    %v2443 = vpop.permute.xlu0 %2442
    %2444 = vrot.lane.b32.xlu0 %v1828, 112
    %v2445 = vpop.permute.xlu0 %2444
    %2446 = vrot.lane.b32.xlu0 %v1833, 112
    %v2447 = vpop.permute.xlu0 %2446
    %v2448 = vsel %vm1891, %v2433, 0
    %v2450 = vsel %vm1891, %v2435, 0
    %v2452 = vsel %vm1891, %v2437, 0
    %v2454 = vsel %vm1891, %v2439, 0
    %v2456 = vsel %vm1891, %v2441, 0
    %v2458 = vsel %vm1891, %v2443, 0
    %v2460 = vsel %vm1891, %v2445, 0
    %v2462 = vsel %vm1891, %v2447, 0
    %2464 = vmatprep.subr.mxu0 0.0
    %2465 = vmatpush1.xpose.msra.mxu0 %v2456
    %2466 = vmatprep.subr.mxu0 0.0
    %2467 = vmatpush1.xpose.msra.mxu0 %v2458
    %2468 = vmatprep.subr.mxu0 0.0
    %2469 = vmatpush1.xpose.msra.mxu0 %v2460
    %2470 = vmatprep.subr.mxu0 0.0
    %2471 = vmatpush1.xpose.msra.mxu0 %v2462
    %2472 = vmatprep.subr.mxu0 0.0
    %2473 = vmatpush1.xpose.msra.mxu0 0.0
    %2474 = vmatprep.subr.mxu0 0.0
    %2475 = vmatpush1.xpose.msra.mxu0 0.0
    %2476 = vmatprep.subr.mxu0 0.0
    %2477 = vmatpush1.xpose.msra.mxu0 0.0
    %2478 = vmatprep.subr.mxu0 0.0
    %2479 = vmatpush1.xpose.msra.mxu0 0.0
    %2480 = vmatprep.subr.mxu0 0.0
    %2481 = vmatpush1.xpose.msra.mxu0 0.0
    %2482 = vmatprep.subr.mxu0 0.0
    %2483 = vmatpush1.xpose.msra.mxu0 0.0
    %2484 = vmatprep.subr.mxu0 0.0
    %2485 = vmatpush1.xpose.msra.mxu0 0.0
    %2486 = vmatprep.subr.mxu0 0.0
    %2487 = vmatpush1.xpose.msra.mxu0 0.0
    %2488 = vmatprep.subr.mxu0 0.0
    %2489 = vmatpush1.xpose.msra.mxu0 0.0
    %2490 = vmatprep.subr.mxu0 0.0
    %2491 = vmatpush1.xpose.msra.mxu0 0.0
    %2492 = vmatprep.subr.mxu0 0.0
    %2493 = vmatpush1.xpose.msra.mxu0 0.0
    %2494 = vmatprep.subr.mxu0 0.0
    %2495 = vmatpush1.xpose.msra.mxu0 0.0
    %2496 = vmatprep.subr.mxu0 0.0
    %2497 = vmatpush1.xpose.msra.mxu0 0.0
    %2498 = vmatprep.subr.mxu0 0.0
    %2499 = vmatpush1.xpose.msra.mxu0 0.0
    %2500 = vmatprep.subr.mxu0 0.0
    %2501 = vmatpush1.xpose.msra.mxu0 0.0
    %2502 = vmatprep.subr.mxu0 0.0
    %2503 = vmatpush1.xpose.msra.mxu0 0.0
    %2504 = vmatprep.subr.mxu0 0.0
    %2505 = vmatpush1.xpose.msra.mxu0 0.0
    %2506 = vmatprep.subr.mxu0 0.0
    %2507 = vmatpush1.xpose.msra.mxu0 0.0
    %2508 = vmatprep.subr.mxu0 0.0
    %2509 = vmatpush1.xpose.msra.mxu0 0.0
    %2510 = vmatprep.subr.mxu0 0.0
    %2511 = vmatpush1.xpose.msra.mxu0 0.0
    %2512 = vmatprep.subr.mxu0 0.0
    %2513 = vmatpush1.xpose.msra.mxu0 0.0
    %2514 = vmatprep.subr.mxu0 0.0
    %2515 = vmatpush1.xpose.msra.mxu0 0.0
    %2516 = vmatprep.subr.mxu0 0.0
    %2517 = vmatpush1.xpose.msra.mxu0 0.0
    %2518 = vmatprep.subr.mxu0 0.0
    %2519 = vmatpush1.xpose.msra.mxu0 0.0
    %2520 = vmatprep.subr.mxu0 0.0
    %2521 = vmatpush1.xpose.msra.mxu0 0.0
    %2522 = vmatprep.subr.mxu0 0.0
    %2523 = vmatpush1.xpose.msra.mxu0 0.0
    %2524 = vmatprep.subr.mxu0 0.0
    %2525 = vmatpush1.xpose.msra.mxu0 0.0
    %2526 = vmatprep.subr.mxu0 0.0
    %2527 = vmatpush1.xpose.msra.mxu0 0.0
    %2528 = vmatprep.mubr.f32.mxu0 0.0
    %2529 = vmatmul.mubr.f32.gmra.mrb[0].mxu0 %v2448
    %v2530 = vpop.f32.mrb[0].mxu0
    %v2531 = vadd.f32 0.0, %v2530
    %v2532 = vpop.f32.mrb[0].mxu0
    %2533 = vmatprep.mubr.f32.mxu0 0.0
    %2534 = vmatmul.mubr.f32.gmra.mrb[0].mxu0 %v2450
    %v2535 = vpop.f32.mrb[0].mxu0
    %v2536 = vadd.f32 0.0, %v2535
    %v2537 = vpop.f32.mrb[0].mxu0
    %2538 = vmatprep.mubr.f32.mxu0 0.0
    %2539 = vmatmul.mubr.f32.gmra.mrb[0].mxu0 %v2452
    %v2540 = vpop.f32.mrb[0].mxu0
    %v2541 = vadd.f32 0.0, %v2540
    %v2542 = vpop.f32.mrb[0].mxu0
    %2543 = vmatprep.mubr.f32.mxu0 0.0
    %2544 = vmatmul.mubr.f32.gmra.mrb[0].mxu0 %v2454
    %v2545 = vpop.f32.mrb[0].mxu0
    %v2546 = vadd.f32 0.0, %v2545
    %v2547 = vpop.f32.mrb[0].mxu0
    %2548 = vdwg.mxu0
    %v2549 = vsel %vm1887, %v2531, -1e+30
    %v2550 = vsel %vm1888, %v2536, -1e+30
    %v2551 = vsel %vm1889, %v2541, -1e+30
    %v2552 = vsel %vm1890, %v2546, -1e+30
    %v2553 = vsel %vm382, %v2549, -inf
    %2554 = vmax.xlane.f32.xlu0 %v2553
    %v2555 = vpop.xlane.xlu0 %2554
    %v2556 = vsel %vm382, %v2550, -inf
    %2557 = vmax.xlane.f32.xlu0 %v2556
    %v2558 = vpop.xlane.xlu0 %2557
    %v2559 = vsel %vm382, %v2551, -inf
    %2560 = vmax.xlane.f32.xlu0 %v2559
    %v2561 = vpop.xlane.xlu0 %2560
    %v2562 = vsel %vm382, %v2552, -inf
    %2563 = vmax.xlane.f32.xlu0 %v2562
    %v2564 = vpop.xlane.xlu0 %2563
    %v2565 = vsub.f32 %v2549, %v2555
    %v2566 = vsub.f32 %v2550, %v2558
    %v2567 = vsub.f32 %v2551, %v2561
    %v2568 = vsub.f32 %v2552, %v2564
    %v2569 = vmul.f32 %v2565, 1.442695
    %v2570 = vpow.pop %v2569
    %v2571 = vmul.f32 %v2566, 1.442695
    %v2572 = vpow.pop %v2571
    %v2573 = vmul.f32 %v2567, 1.442695
    %v2574 = vpow.pop %v2573
    %v2575 = vmul.f32 %v2568, 1.442695
    %v2576 = vpow.pop %v2575
    %v2577 = vsel %vm382, %v2570, 0.0
    %2578 = vadd.xlane.f32.xlu0 %v2577
    %v2579 = vpop.xlane.xlu0 %2578
    %v2580 = vsel %vm382, %v2572, 0.0
    %2581 = vadd.xlane.f32.xlu0 %v2580
    %v2582 = vpop.xlane.xlu0 %2581
    %v2583 = vsel %vm382, %v2574, 0.0
    %2584 = vadd.xlane.f32.xlu0 %v2583
    %v2585 = vpop.xlane.xlu0 %2584
    %v2586 = vsel %vm382, %v2576, 0.0
    %2587 = vadd.xlane.f32.xlu0 %v2586
    %v2588 = vpop.xlane.xlu0 %2587
    %v2589 = vrcp.pop %v2579
    %v2590 = vrcp.pop %v2582
    %v2591 = vrcp.pop %v2585
    %v2592 = vrcp.pop %v2588
    %v2593 = vmul.f32 %v2570, %v2589
    %v2594 = vmul.f32 %v2572, %v2590
    %v2595 = vmul.f32 %v2574, %v2591
    %v2596 = vmul.f32 %v2576, %v2592
    %2597 = vrot.lane.b32.xlu0 %v1818, 80
    %v2598 = vpop.permute.xlu0 %2597
    %2599 = vrot.lane.b32.xlu0 %v1823, 80
    %v2600 = vpop.permute.xlu0 %2599
    %2601 = vrot.lane.b32.xlu0 %v1828, 80
    %v2602 = vpop.permute.xlu0 %2601
    %2603 = vrot.lane.b32.xlu0 %v1833, 80
    %v2604 = vpop.permute.xlu0 %2603
    %v2610 = vsel %vm382, %v2593, 0
    %v2613 = vsel %vm382, %v2594, 0
    %v2616 = vsel %vm382, %v2595, 0
    %v2619 = vsel %vm382, %v2596, 0
    %2621 = vmatprep.subr.mxu0 0.0
    %2622 = vmatpush1.msra.mxu0 %v2598
    %2623 = vmatprep.subr.mxu0 0.0
    %2624 = vmatpush1.msra.mxu0 %v2600
    %2625 = vmatprep.subr.mxu0 0.0
    %2626 = vmatpush1.msra.mxu0 %v2602
    %2627 = vmatprep.subr.mxu0 0.0
    %2628 = vmatpush1.msra.mxu0 %v2604
    %2629 = vmatprep.subr.mxu0 0.0
    %2630 = vmatpush1.msra.mxu0 0.0
    %2631 = vmatprep.subr.mxu0 0.0
    %2632 = vmatpush1.msra.mxu0 0.0
    %2633 = vmatprep.subr.mxu0 0.0
    %2634 = vmatpush1.msra.mxu0 0.0
    %2635 = vmatprep.subr.mxu0 0.0
    %2636 = vmatpush1.msra.mxu0 0.0
    %2637 = vmatprep.subr.mxu0 0.0
    %2638 = vmatpush1.msra.mxu0 0.0
    %2639 = vmatprep.subr.mxu0 0.0
    %2640 = vmatpush1.msra.mxu0 0.0
    %2641 = vmatprep.subr.mxu0 0.0
    %2642 = vmatpush1.msra.mxu0 0.0
    %2643 = vmatprep.subr.mxu0 0.0
    %2644 = vmatpush1.msra.mxu0 0.0
    %2645 = vmatprep.subr.mxu0 0.0
    %2646 = vmatpush1.msra.mxu0 0.0
    %2647 = vmatprep.subr.mxu0 0.0
    %2648 = vmatpush1.msra.mxu0 0.0
    %2649 = vmatprep.subr.mxu0 0.0
    %2650 = vmatpush1.msra.mxu0 0.0
    %2651 = vmatprep.subr.mxu0 0.0
    %2652 = vmatpush1.msra.mxu0 0.0
    %2653 = vmatprep.subr.mxu0 0.0
    %2654 = vmatpush1.msra.mxu0 0.0
    %2655 = vmatprep.subr.mxu0 0.0
    %2656 = vmatpush1.msra.mxu0 0.0
    %2657 = vmatprep.subr.mxu0 0.0
    %2658 = vmatpush1.msra.mxu0 0.0
    %2659 = vmatprep.subr.mxu0 0.0
    %2660 = vmatpush1.msra.mxu0 0.0
    %2661 = vmatprep.subr.mxu0 0.0
    %2662 = vmatpush1.msra.mxu0 0.0
    %2663 = vmatprep.subr.mxu0 0.0
    %2664 = vmatpush1.msra.mxu0 0.0
    %2665 = vmatprep.subr.mxu0 0.0
    %2666 = vmatpush1.msra.mxu0 0.0
    %2667 = vmatprep.subr.mxu0 0.0
    %2668 = vmatpush1.msra.mxu0 0.0
    %2669 = vmatprep.subr.mxu0 0.0
    %2670 = vmatpush1.msra.mxu0 0.0
    %2671 = vmatprep.subr.mxu0 0.0
    %2672 = vmatpush1.msra.mxu0 0.0
    %2673 = vmatprep.subr.mxu0 0.0
    %2674 = vmatpush1.msra.mxu0 0.0
    %2675 = vmatprep.subr.mxu0 0.0
    %2676 = vmatpush1.msra.mxu0 0.0
    %2677 = vmatprep.subr.mxu0 0.0
    %2678 = vmatpush1.msra.mxu0 0.0
    %2679 = vmatprep.subr.mxu0 0.0
    %2680 = vmatpush1.msra.mxu0 0.0
    %2681 = vmatprep.subr.mxu0 0.0
    %2682 = vmatpush1.msra.mxu0 0.0
    %2683 = vmatprep.subr.mxu0 0.0
    %2684 = vmatpush1.msra.mxu0 0.0
    %2685 = vmatprep.mubr.f32.mxu0 0.0
    %2686 = vmatmul.mubr.f32.gmra.mrb[0].mxu0 %v2610
    %v2687 = vpop.f32.mrb[0].mxu0
    %v2688 = vadd.f32 0.0, %v2687
    %v2689 = vpop.f32.mrb[0].mxu0
    %2690 = vmatprep.mubr.f32.mxu0 0.0
    %2691 = vmatmul.mubr.f32.gmra.mrb[0].mxu0 %v2613
    %v2692 = vpop.f32.mrb[0].mxu0
    %v2693 = vadd.f32 0.0, %v2692
    %v2694 = vpop.f32.mrb[0].mxu0
    %2695 = vmatprep.mubr.f32.mxu0 0.0
    %2696 = vmatmul.mubr.f32.gmra.mrb[0].mxu0 %v2616
    %v2697 = vpop.f32.mrb[0].mxu0
    %v2698 = vadd.f32 0.0, %v2697
    %v2699 = vpop.f32.mrb[0].mxu0
    %2700 = vmatprep.mubr.f32.mxu0 0.0
    %2701 = vmatmul.mubr.f32.gmra.mrb[0].mxu0 %v2619
    %v2702 = vpop.f32.mrb[0].mxu0
    %v2703 = vadd.f32 0.0, %v2702
    %v2704 = vpop.f32.mrb[0].mxu0
    %2705 = vdwg.mxu0
    %2706 = vrot.lane.b32.xlu0 %v1712, 104
    %v2707 = vpop.permute.xlu0 %2706
    %2708 = vrot.lane.b32.xlu0 %v1717, 104
    %v2709 = vpop.permute.xlu0 %2708
    %2710 = vrot.lane.b32.xlu0 %v1722, 104
    %v2711 = vpop.permute.xlu0 %2710
    %2712 = vrot.lane.b32.xlu0 %v1727, 104
    %v2713 = vpop.permute.xlu0 %2712
    %2714 = vrot.lane.b32.xlu0 %v1818, 104
    %v2715 = vpop.permute.xlu0 %2714
    %2716 = vrot.lane.b32.xlu0 %v1823, 104
    %v2717 = vpop.permute.xlu0 %2716
    %2718 = vrot.lane.b32.xlu0 %v1828, 104
    %v2719 = vpop.permute.xlu0 %2718
    %2720 = vrot.lane.b32.xlu0 %v1833, 104
    %v2721 = vpop.permute.xlu0 %2720
    %v2722 = vsel %vm1891, %v2707, 0
    %v2724 = vsel %vm1891, %v2709, 0
    %v2726 = vsel %vm1891, %v2711, 0
    %v2728 = vsel %vm1891, %v2713, 0
    %v2730 = vsel %vm1891, %v2715, 0
    %v2732 = vsel %vm1891, %v2717, 0
    %v2734 = vsel %vm1891, %v2719, 0
    %v2736 = vsel %vm1891, %v2721, 0
    %2738 = vmatprep.subr.mxu0 0.0
    %2739 = vmatpush1.xpose.msra.mxu0 %v2730
    %2740 = vmatprep.subr.mxu0 0.0
    %2741 = vmatpush1.xpose.msra.mxu0 %v2732
    %2742 = vmatprep.subr.mxu0 0.0
    %2743 = vmatpush1.xpose.msra.mxu0 %v2734
    %2744 = vmatprep.subr.mxu0 0.0
    %2745 = vmatpush1.xpose.msra.mxu0 %v2736
    %2746 = vmatprep.subr.mxu0 0.0
    %2747 = vmatpush1.xpose.msra.mxu0 0.0
    %2748 = vmatprep.subr.mxu0 0.0
    %2749 = vmatpush1.xpose.msra.mxu0 0.0
    %2750 = vmatprep.subr.mxu0 0.0
    %2751 = vmatpush1.xpose.msra.mxu0 0.0
    %2752 = vmatprep.subr.mxu0 0.0
    %2753 = vmatpush1.xpose.msra.mxu0 0.0
    %2754 = vmatprep.subr.mxu0 0.0
    %2755 = vmatpush1.xpose.msra.mxu0 0.0
    %2756 = vmatprep.subr.mxu0 0.0
    %2757 = vmatpush1.xpose.msra.mxu0 0.0
    %2758 = vmatprep.subr.mxu0 0.0
    %2759 = vmatpush1.xpose.msra.mxu0 0.0
    %2760 = vmatprep.subr.mxu0 0.0
    %2761 = vmatpush1.xpose.msra.mxu0 0.0
    %2762 = vmatprep.subr.mxu0 0.0
    %2763 = vmatpush1.xpose.msra.mxu0 0.0
    %2764 = vmatprep.subr.mxu0 0.0
    %2765 = vmatpush1.xpose.msra.mxu0 0.0
    %2766 = vmatprep.subr.mxu0 0.0
    %2767 = vmatpush1.xpose.msra.mxu0 0.0
    %2768 = vmatprep.subr.mxu0 0.0
    %2769 = vmatpush1.xpose.msra.mxu0 0.0
    %2770 = vmatprep.subr.mxu0 0.0
    %2771 = vmatpush1.xpose.msra.mxu0 0.0
    %2772 = vmatprep.subr.mxu0 0.0
    %2773 = vmatpush1.xpose.msra.mxu0 0.0
    %2774 = vmatprep.subr.mxu0 0.0
    %2775 = vmatpush1.xpose.msra.mxu0 0.0
    %2776 = vmatprep.subr.mxu0 0.0
    %2777 = vmatpush1.xpose.msra.mxu0 0.0
    %2778 = vmatprep.subr.mxu0 0.0
    %2779 = vmatpush1.xpose.msra.mxu0 0.0
    %2780 = vmatprep.subr.mxu0 0.0
    %2781 = vmatpush1.xpose.msra.mxu0 0.0
    %2782 = vmatprep.subr.mxu0 0.0
    %2783 = vmatpush1.xpose.msra.mxu0 0.0
    %2784 = vmatprep.subr.mxu0 0.0
    %2785 = vmatpush1.xpose.msra.mxu0 0.0
    %2786 = vmatprep.subr.mxu0 0.0
    %2787 = vmatpush1.xpose.msra.mxu0 0.0
    %2788 = vmatprep.subr.mxu0 0.0
    %2789 = vmatpush1.xpose.msra.mxu0 0.0
    %2790 = vmatprep.subr.mxu0 0.0
    %2791 = vmatpush1.xpose.msra.mxu0 0.0
    %2792 = vmatprep.subr.mxu0 0.0
    %2793 = vmatpush1.xpose.msra.mxu0 0.0
    %2794 = vmatprep.subr.mxu0 0.0
    %2795 = vmatpush1.xpose.msra.mxu0 0.0
    %2796 = vmatprep.subr.mxu0 0.0
    %2797 = vmatpush1.xpose.msra.mxu0 0.0
    %2798 = vmatprep.subr.mxu0 0.0
    %2799 = vmatpush1.xpose.msra.mxu0 0.0
    %2800 = vmatprep.subr.mxu0 0.0
    %2801 = vmatpush1.xpose.msra.mxu0 0.0
    %2802 = vmatprep.mubr.f32.mxu0 0.0
    %2803 = vmatmul.mubr.f32.gmra.mrb[0].mxu0 %v2722
    %v2804 = vpop.f32.mrb[0].mxu0
    %v2805 = vadd.f32 0.0, %v2804
    %v2806 = vpop.f32.mrb[0].mxu0
    %2807 = vmatprep.mubr.f32.mxu0 0.0
    %2808 = vmatmul.mubr.f32.gmra.mrb[0].mxu0 %v2724
    %v2809 = vpop.f32.mrb[0].mxu0
    %v2810 = vadd.f32 0.0, %v2809
    %v2811 = vpop.f32.mrb[0].mxu0
    %2812 = vmatprep.mubr.f32.mxu0 0.0
    %2813 = vmatmul.mubr.f32.gmra.mrb[0].mxu0 %v2726
    %v2814 = vpop.f32.mrb[0].mxu0
    %v2815 = vadd.f32 0.0, %v2814
    %v2816 = vpop.f32.mrb[0].mxu0
    %2817 = vmatprep.mubr.f32.mxu0 0.0
    %2818 = vmatmul.mubr.f32.gmra.mrb[0].mxu0 %v2728
    %v2819 = vpop.f32.mrb[0].mxu0
    %v2820 = vadd.f32 0.0, %v2819
    %v2821 = vpop.f32.mrb[0].mxu0
    %2822 = vdwg.mxu0
    %v2823 = vsel %vm1887, %v2805, -1e+30
    %v2824 = vsel %vm1888, %v2810, -1e+30
    %v2825 = vsel %vm1889, %v2815, -1e+30
    %v2826 = vsel %vm1890, %v2820, -1e+30
    %v2827 = vsel %vm382, %v2823, -inf
    %2828 = vmax.xlane.f32.xlu0 %v2827
    %v2829 = vpop.xlane.xlu0 %2828
    %v2830 = vsel %vm382, %v2824, -inf
    %2831 = vmax.xlane.f32.xlu0 %v2830
    %v2832 = vpop.xlane.xlu0 %2831
    %v2833 = vsel %vm382, %v2825, -inf
    %2834 = vmax.xlane.f32.xlu0 %v2833
    %v2835 = vpop.xlane.xlu0 %2834
    %v2836 = vsel %vm382, %v2826, -inf
    %2837 = vmax.xlane.f32.xlu0 %v2836
    %v2838 = vpop.xlane.xlu0 %2837
    %v2839 = vsub.f32 %v2823, %v2829
    %v2840 = vsub.f32 %v2824, %v2832
    %v2841 = vsub.f32 %v2825, %v2835
    %v2842 = vsub.f32 %v2826, %v2838
    %v2843 = vmul.f32 %v2839, 1.442695
    %v2844 = vpow.pop %v2843
    %v2845 = vmul.f32 %v2840, 1.442695
    %v2846 = vpow.pop %v2845
    %v2847 = vmul.f32 %v2841, 1.442695
    %v2848 = vpow.pop %v2847
    %v2849 = vmul.f32 %v2842, 1.442695
    %v2850 = vpow.pop %v2849
    %v2851 = vsel %vm382, %v2844, 0.0
    %2852 = vadd.xlane.f32.xlu0 %v2851
    %v2853 = vpop.xlane.xlu0 %2852
    %v2854 = vsel %vm382, %v2846, 0.0
    %2855 = vadd.xlane.f32.xlu0 %v2854
    %v2856 = vpop.xlane.xlu0 %2855
    %v2857 = vsel %vm382, %v2848, 0.0
    %2858 = vadd.xlane.f32.xlu0 %v2857
    %v2859 = vpop.xlane.xlu0 %2858
    %v2860 = vsel %vm382, %v2850, 0.0
    %2861 = vadd.xlane.f32.xlu0 %v2860
    %v2862 = vpop.xlane.xlu0 %2861
    %v2863 = vrcp.pop %v2853
    %v2864 = vrcp.pop %v2856
    %v2865 = vrcp.pop %v2859
    %v2866 = vrcp.pop %v2862
    %v2867 = vmul.f32 %v2844, %v2863
    %v2868 = vmul.f32 %v2846, %v2864
    %v2869 = vmul.f32 %v2848, %v2865
    %v2870 = vmul.f32 %v2850, %v2866
    %2871 = vrot.lane.b32.xlu0 %v1818, 72
    %v2872 = vpop.permute.xlu0 %2871
    %2873 = vrot.lane.b32.xlu0 %v1823, 72
    %v2874 = vpop.permute.xlu0 %2873
    %2875 = vrot.lane.b32.xlu0 %v1828, 72
    %v2876 = vpop.permute.xlu0 %2875
    %2877 = vrot.lane.b32.xlu0 %v1833, 72
    %v2878 = vpop.permute.xlu0 %2877
    %v2884 = vsel %vm382, %v2867, 0
    %v2887 = vsel %vm382, %v2868, 0
    %v2890 = vsel %vm382, %v2869, 0
    %v2893 = vsel %vm382, %v2870, 0
    %2895 = vmatprep.subr.mxu0 0.0
    %2896 = vmatpush1.msra.mxu0 %v2872
    %2897 = vmatprep.subr.mxu0 0.0
    %2898 = vmatpush1.msra.mxu0 %v2874
    %2899 = vmatprep.subr.mxu0 0.0
    %2900 = vmatpush1.msra.mxu0 %v2876
    %2901 = vmatprep.subr.mxu0 0.0
    %2902 = vmatpush1.msra.mxu0 %v2878
    %2903 = vmatprep.subr.mxu0 0.0
    %2904 = vmatpush1.msra.mxu0 0.0
    %2905 = vmatprep.subr.mxu0 0.0
    %2906 = vmatpush1.msra.mxu0 0.0
    %2907 = vmatprep.subr.mxu0 0.0
    %2908 = vmatpush1.msra.mxu0 0.0
    %2909 = vmatprep.subr.mxu0 0.0
    %2910 = vmatpush1.msra.mxu0 0.0
    %2911 = vmatprep.subr.mxu0 0.0
    %2912 = vmatpush1.msra.mxu0 0.0
    %2913 = vmatprep.subr.mxu0 0.0
    %2914 = vmatpush1.msra.mxu0 0.0
    %2915 = vmatprep.subr.mxu0 0.0
    %2916 = vmatpush1.msra.mxu0 0.0
    %2917 = vmatprep.subr.mxu0 0.0
    %2918 = vmatpush1.msra.mxu0 0.0
    %2919 = vmatprep.subr.mxu0 0.0
    %2920 = vmatpush1.msra.mxu0 0.0
    %2921 = vmatprep.subr.mxu0 0.0
    %2922 = vmatpush1.msra.mxu0 0.0
    %2923 = vmatprep.subr.mxu0 0.0
    %2924 = vmatpush1.msra.mxu0 0.0
    %2925 = vmatprep.subr.mxu0 0.0
    %2926 = vmatpush1.msra.mxu0 0.0
    %2927 = vmatprep.subr.mxu0 0.0
    %2928 = vmatpush1.msra.mxu0 0.0
    %2929 = vmatprep.subr.mxu0 0.0
    %2930 = vmatpush1.msra.mxu0 0.0
    %2931 = vmatprep.subr.mxu0 0.0
    %2932 = vmatpush1.msra.mxu0 0.0
    %2933 = vmatprep.subr.mxu0 0.0
    %2934 = vmatpush1.msra.mxu0 0.0
    %2935 = vmatprep.subr.mxu0 0.0
    %2936 = vmatpush1.msra.mxu0 0.0
    %2937 = vmatprep.subr.mxu0 0.0
    %2938 = vmatpush1.msra.mxu0 0.0
    %2939 = vmatprep.subr.mxu0 0.0
    %2940 = vmatpush1.msra.mxu0 0.0
    %2941 = vmatprep.subr.mxu0 0.0
    %2942 = vmatpush1.msra.mxu0 0.0
    %2943 = vmatprep.subr.mxu0 0.0
    %2944 = vmatpush1.msra.mxu0 0.0
    %2945 = vmatprep.subr.mxu0 0.0
    %2946 = vmatpush1.msra.mxu0 0.0
    %2947 = vmatprep.subr.mxu0 0.0
    %2948 = vmatpush1.msra.mxu0 0.0
    %2949 = vmatprep.subr.mxu0 0.0
    %2950 = vmatpush1.msra.mxu0 0.0
    %2951 = vmatprep.subr.mxu0 0.0
    %2952 = vmatpush1.msra.mxu0 0.0
    %2953 = vmatprep.subr.mxu0 0.0
    %2954 = vmatpush1.msra.mxu0 0.0
    %2955 = vmatprep.subr.mxu0 0.0
    %2956 = vmatpush1.msra.mxu0 0.0
    %2957 = vmatprep.subr.mxu0 0.0
    %2958 = vmatpush1.msra.mxu0 0.0
    %2959 = vmatprep.mubr.f32.mxu0 0.0
    %2960 = vmatmul.mubr.f32.gmra.mrb[0].mxu0 %v2884
    %v2961 = vpop.f32.mrb[0].mxu0
    %v2962 = vadd.f32 0.0, %v2961
    %v2963 = vpop.f32.mrb[0].mxu0
    %2964 = vmatprep.mubr.f32.mxu0 0.0
    %2965 = vmatmul.mubr.f32.gmra.mrb[0].mxu0 %v2887
    %v2966 = vpop.f32.mrb[0].mxu0
    %v2967 = vadd.f32 0.0, %v2966
    %v2968 = vpop.f32.mrb[0].mxu0
    %2969 = vmatprep.mubr.f32.mxu0 0.0
    %2970 = vmatmul.mubr.f32.gmra.mrb[0].mxu0 %v2890
    %v2971 = vpop.f32.mrb[0].mxu0
    %v2972 = vadd.f32 0.0, %v2971
    %v2973 = vpop.f32.mrb[0].mxu0
    %2974 = vmatprep.mubr.f32.mxu0 0.0
    %2975 = vmatmul.mubr.f32.gmra.mrb[0].mxu0 %v2893
    %v2976 = vpop.f32.mrb[0].mxu0
    %v2977 = vadd.f32 0.0, %v2976
    %v2978 = vpop.f32.mrb[0].mxu0
    %2979 = vdwg.mxu0
    %2984 = vrot.lane.b32.xlu0 %v2414, 8
    %v2985 = vpop.permute.xlu0 %2984
    %2986 = vrot.lane.b32.xlu0 %v2419, 8
    %v2987 = vpop.permute.xlu0 %2986
    %2988 = vrot.lane.b32.xlu0 %v2424, 8
    %v2989 = vpop.permute.xlu0 %2988
    %2990 = vrot.lane.b32.xlu0 %v2429, 8
    %v2991 = vpop.permute.xlu0 %2990
    %3000 = vrot.lane.b32.xlu0 %v2688, 16
    %v3001 = vpop.permute.xlu0 %3000
    %3002 = vrot.lane.b32.xlu0 %v2693, 16
    %v3003 = vpop.permute.xlu0 %3002
    %3004 = vrot.lane.b32.xlu0 %v2698, 16
    %v3005 = vpop.permute.xlu0 %3004
    %3006 = vrot.lane.b32.xlu0 %v2703, 16
    %v3007 = vpop.permute.xlu0 %3006
    %3016 = vrot.lane.b32.xlu0 %v2962, 24
    %v3017 = vpop.permute.xlu0 %3016
    %3018 = vrot.lane.b32.xlu0 %v2967, 24
    %v3019 = vpop.permute.xlu0 %3018
    %3020 = vrot.lane.b32.xlu0 %v2972, 24
    %v3021 = vpop.permute.xlu0 %3020
    %3022 = vrot.lane.b32.xlu0 %v2977, 24
    %v3023 = vpop.permute.xlu0 %3022
    %v3028 = vsel %vm1891, %v2140, %v2985
    %v3029 = vsel %vm1891, %v2145, %v2987
    %v3030 = vsel %vm1891, %v2150, %v2989
    %v3031 = vsel %vm1891, %v2155, %v2991
    %vm3032 = vcmask 130048
    %v3033 = vsel %vm3032, %v3028, %v3001
    %v3034 = vsel %vm3032, %v3029, %v3003
    %v3035 = vsel %vm3032, %v3030, %v3005
    %v3036 = vsel %vm3032, %v3031, %v3007
    %vm3037 = vcmask 195584
    %v3038 = vsel %vm3037, %v3033, %v3017
    %v3039 = vsel %vm3037, %v3034, %v3019
    %v3040 = vsel %vm3037, %v3035, %v3021
    %v3041 = vsel %vm3037, %v3036, %v3023
    %v3042 = vld [vmem:[#allocation2 + $0x180] sm:$0xff]
    %v3043 = vld [vmem:[#allocation2 + $0x188] sm:$0xff]
    %v3044 = vld [vmem:[#allocation2 + $0x190] sm:$0xff]
    %v3045 = vld [vmem:[#allocation2 + $0x198] sm:$0xff]
    %v3046 = vld [vmem:[#allocation2 + $0x1a0] sm:$0x1]
    %v3047 = vlaneseq
    %v3048 = vshrl.u32 %v3047, 7
    %v3049 = vsub.s32 0, %v3048
    %v3050 = vrot.slane %v3046, %v3049
    %v3052 = vsel %vm382, %v3038, 0
    %v3055 = vsel %vm382, %v3039, 0
    %v3058 = vsel %vm382, %v3040, 0
    %v3061 = vsel %vm382, %v3041, 0
    %3063 = vmatprep.subr.mxu0 0.0
    %3064 = vmatpush1.msra.mxu0 %v3042
    %3065 = vmatprep.subr.mxu0 0.0
    %3066 = vmatpush1.msra.mxu0 %v3043
    %3067 = vmatprep.subr.mxu0 0.0
    %3068 = vmatpush1.msra.mxu0 %v3044
    %3069 = vmatprep.subr.mxu0 0.0
    %3070 = vmatpush1.msra.mxu0 %v3045
    %3071 = vmatprep.subr.mxu0 0.0
    %3072 = vmatpush1.msra.mxu0 0.0
    %3073 = vmatprep.subr.mxu0 0.0
    %3074 = vmatpush1.msra.mxu0 0.0
    %3075 = vmatprep.subr.mxu0 0.0
    %3076 = vmatpush1.msra.mxu0 0.0
    %3077 = vmatprep.subr.mxu0 0.0
    %3078 = vmatpush1.msra.mxu0 0.0
    %3079 = vmatprep.subr.mxu0 0.0
    %3080 = vmatpush1.msra.mxu0 0.0
    %3081 = vmatprep.subr.mxu0 0.0
    %3082 = vmatpush1.msra.mxu0 0.0
    %3083 = vmatprep.subr.mxu0 0.0
    %3084 = vmatpush1.msra.mxu0 0.0
    %3085 = vmatprep.subr.mxu0 0.0
    %3086 = vmatpush1.msra.mxu0 0.0
    %3087 = vmatprep.subr.mxu0 0.0
    %3088 = vmatpush1.msra.mxu0 0.0
    %3089 = vmatprep.subr.mxu0 0.0
    %3090 = vmatpush1.msra.mxu0 0.0
    %3091 = vmatprep.subr.mxu0 0.0
    %3092 = vmatpush1.msra.mxu0 0.0
    %3093 = vmatprep.subr.mxu0 0.0
    %3094 = vmatpush1.msra.mxu0 0.0
    %3095 = vmatprep.subr.mxu0 0.0
    %3096 = vmatpush1.msra.mxu0 0.0
    %3097 = vmatprep.subr.mxu0 0.0
    %3098 = vmatpush1.msra.mxu0 0.0
    %3099 = vmatprep.subr.mxu0 0.0
    %3100 = vmatpush1.msra.mxu0 0.0
    %3101 = vmatprep.subr.mxu0 0.0
    %3102 = vmatpush1.msra.mxu0 0.0
    %3103 = vmatprep.subr.mxu0 0.0
    %3104 = vmatpush1.msra.mxu0 0.0
    %3105 = vmatprep.subr.mxu0 0.0
    %3106 = vmatpush1.msra.mxu0 0.0
    %3107 = vmatprep.subr.mxu0 0.0
    %3108 = vmatpush1.msra.mxu0 0.0
    %3109 = vmatprep.subr.mxu0 0.0
    %3110 = vmatpush1.msra.mxu0 0.0
    %3111 = vmatprep.subr.mxu0 0.0
    %3112 = vmatpush1.msra.mxu0 0.0
    %3113 = vmatprep.subr.mxu0 0.0
    %3114 = vmatpush1.msra.mxu0 0.0
    %3115 = vmatprep.subr.mxu0 0.0
    %3116 = vmatpush1.msra.mxu0 0.0
    %3117 = vmatprep.subr.mxu0 0.0
    %3118 = vmatpush1.msra.mxu0 0.0
    %3119 = vmatprep.subr.mxu0 0.0
    %3120 = vmatpush1.msra.mxu0 0.0
    %3121 = vmatprep.subr.mxu0 0.0
    %3122 = vmatpush1.msra.mxu0 0.0
    %3123 = vmatprep.subr.mxu0 0.0
    %3124 = vmatpush1.msra.mxu0 0.0
    %3125 = vmatprep.subr.mxu0 0.0
    %3126 = vmatpush1.msra.mxu0 0.0
    %3127 = vmatprep.mubr.f32.mxu0 0.0
    %3128 = vmatmul.mubr.f32.gmra.mrb[0].mxu0 %v3052
    %v3129 = vpop.f32.mrb[0].mxu0
    %v3130 = vadd.f32 %v3050, %v3129
    %v3131 = vpop.f32.mrb[0].mxu0
    %3132 = vmatprep.mubr.f32.mxu0 0.0
    %3133 = vmatmul.mubr.f32.gmra.mrb[0].mxu0 %v3055
    %v3134 = vpop.f32.mrb[0].mxu0
    %v3135 = vadd.f32 %v3050, %v3134
    %v3136 = vpop.f32.mrb[0].mxu0
    %3137 = vmatprep.mubr.f32.mxu0 0.0
    %3138 = vmatmul.mubr.f32.gmra.mrb[0].mxu0 %v3058
    %v3139 = vpop.f32.mrb[0].mxu0
    %v3140 = vadd.f32 %v3050, %v3139
    %v3141 = vpop.f32.mrb[0].mxu0
    %3142 = vmatprep.mubr.f32.mxu0 0.0
    %3143 = vmatmul.mubr.f32.gmra.mrb[0].mxu0 %v3061
    %v3144 = vpop.f32.mrb[0].mxu0
    %v3145 = vadd.f32 %v3050, %v3144
    %v3146 = vpop.f32.mrb[0].mxu0
    %3147 = vdwg.mxu0
    %v3148 = vadd.f32 %v730, %v3130
    %v3149 = vadd.f32 %v735, %v3135
    %v3150 = vadd.f32 %v973, %v3140
    %v3151 = vadd.f32 %v978, %v3145
    %v3152 = vld [vmem:[#allocation2 + $0x1a8] sm:$0x1]
    %v3153 = vld [vmem:[#allocation2 + $0x1a9] sm:$0x1]
    %v3154 = vsel %vm382, %v3148, 0.0
    %3155 = vadd.xlane.f32.xlu0 %v3154
    %v3156 = vpop.xlane.xlu0 %3155
    %v3157 = vsel %vm382, %v3149, 0.0
    %3158 = vadd.xlane.f32.xlu0 %v3157
    %v3159 = vpop.xlane.xlu0 %3158
    %v3160 = vsel %vm382, %v3150, 0.0
    %3161 = vadd.xlane.f32.xlu0 %v3160
    %v3162 = vpop.xlane.xlu0 %3161
    %v3163 = vsel %vm382, %v3151, 0.0
    %3164 = vadd.xlane.f32.xlu0 %v3163
    %v3165 = vpop.xlane.xlu0 %3164
    %v3166 = vrcp.pop 32.0
    %v3167 = vmul.f32 %v3156, %v3166
    %v3168 = vmul.f32 %v3159, %v3166
    %v3169 = vmul.f32 %v3162, %v3166
    %v3170 = vmul.f32 %v3165, %v3166
    %v3171 = vsub.f32 %v3148, %v3167
    %v3172 = vsub.f32 %v3149, %v3168
    %v3173 = vsub.f32 %v3150, %v3169
    %v3174 = vsub.f32 %v3151, %v3170
    %v3175 = vmul.f32 %v3171, %v3171
    %v3176 = vmul.f32 %v3172, %v3172
    %v3177 = vmul.f32 %v3173, %v3173
    %v3178 = vmul.f32 %v3174, %v3174
    %v3179 = vsel %vm382, %v3175, 0.0
    %3180 = vadd.xlane.f32.xlu0 %v3179
    %v3181 = vpop.xlane.xlu0 %3180
    %v3182 = vsel %vm382, %v3176, 0.0
    %3183 = vadd.xlane.f32.xlu0 %v3182
    %v3184 = vpop.xlane.xlu0 %3183
    %v3185 = vsel %vm382, %v3177, 0.0
    %3186 = vadd.xlane.f32.xlu0 %v3185
    %v3187 = vpop.xlane.xlu0 %3186
    %v3188 = vsel %vm382, %v3178, 0.0
    %3189 = vadd.xlane.f32.xlu0 %v3188
    %v3190 = vpop.xlane.xlu0 %3189
    %v3191 = vmul.f32 %v3181, %v3166
    %v3192 = vmul.f32 %v3184, %v3166
    %v3193 = vmul.f32 %v3187, %v3166
    %v3194 = vmul.f32 %v3190, %v3166
    %v3195 = vadd.f32 %v3191, 1e-05
    %v3196 = vadd.f32 %v3192, 1e-05
    %v3197 = vadd.f32 %v3193, 1e-05
    %v3198 = vadd.f32 %v3194, 1e-05
    %v3199 = vrsqrt.pop %v3195
    %v3200 = vrsqrt.pop %v3196
    %v3201 = vrsqrt.pop %v3197
    %v3202 = vrsqrt.pop %v3198
    %v3203 = vmul.f32 %v3171, %v3199
    %v3204 = vmul.f32 %v3172, %v3200
    %v3205 = vmul.f32 %v3173, %v3201
    %v3206 = vmul.f32 %v3174, %v3202
    %v3207 = vlaneseq
    %v3208 = vshrl.u32 %v3207, 7
    %v3209 = vsub.s32 0, %v3208
    %v3210 = vrot.slane %v3152, %v3209
    %v3211 = vmul.f32 %v3203, %v3210
    %v3212 = vmul.f32 %v3204, %v3210
    %v3213 = vmul.f32 %v3205, %v3210
    %v3214 = vmul.f32 %v3206, %v3210
    %v3215 = vlaneseq
    %v3216 = vshrl.u32 %v3215, 7
    %v3217 = vsub.s32 0, %v3216
    %v3218 = vrot.slane %v3153, %v3217
    %v3219 = vadd.f32 %v3211, %v3218
    %v3220 = vadd.f32 %v3212, %v3218
    %v3221 = vadd.f32 %v3213, %v3218
    %v3222 = vadd.f32 %v3214, %v3218
    %v3223 = vld [vmem:[#allocation2 + $0x1b0] sm:$0xff]
    %v3224 = vld [vmem:[#allocation2 + $0x1b8] sm:$0xff]
    %v3225 = vld [vmem:[#allocation2 + $0x1c0] sm:$0xff]
    %v3226 = vld [vmem:[#allocation2 + $0x1c8] sm:$0xff]
    %v3227 = vld [vmem:[#allocation2 + $0x1d0] sm:$0x1]
    %v3228 = vlaneseq
    %v3229 = vshrl.u32 %v3228, 7
    %v3230 = vsub.s32 0, %v3229
    %v3231 = vrot.slane %v3227, %v3230
    %v3233 = vsel %vm382, %v3219, 0
    %v3236 = vsel %vm382, %v3220, 0
    %v3239 = vsel %vm382, %v3221, 0
    %v3242 = vsel %vm382, %v3222, 0
    %3244 = vmatprep.subr.mxu0 0.0
    %3245 = vmatpush1.msra.mxu0 %v3223
    %3246 = vmatprep.subr.mxu0 0.0
    %3247 = vmatpush1.msra.mxu0 %v3224
    %3248 = vmatprep.subr.mxu0 0.0
    %3249 = vmatpush1.msra.mxu0 %v3225
    %3250 = vmatprep.subr.mxu0 0.0
    %3251 = vmatpush1.msra.mxu0 %v3226
    %3252 = vmatprep.subr.mxu0 0.0
    %3253 = vmatpush1.msra.mxu0 0.0
    %3254 = vmatprep.subr.mxu0 0.0
    %3255 = vmatpush1.msra.mxu0 0.0
    %3256 = vmatprep.subr.mxu0 0.0
    %3257 = vmatpush1.msra.mxu0 0.0
    %3258 = vmatprep.subr.mxu0 0.0
    %3259 = vmatpush1.msra.mxu0 0.0
    %3260 = vmatprep.subr.mxu0 0.0
    %3261 = vmatpush1.msra.mxu0 0.0
    %3262 = vmatprep.subr.mxu0 0.0
    %3263 = vmatpush1.msra.mxu0 0.0
    %3264 = vmatprep.subr.mxu0 0.0
    %3265 = vmatpush1.msra.mxu0 0.0
    %3266 = vmatprep.subr.mxu0 0.0
    %3267 = vmatpush1.msra.mxu0 0.0
    %3268 = vmatprep.subr.mxu0 0.0
    %3269 = vmatpush1.msra.mxu0 0.0
    %3270 = vmatprep.subr.mxu0 0.0
    %3271 = vmatpush1.msra.mxu0 0.0
    %3272 = vmatprep.subr.mxu0 0.0
    %3273 = vmatpush1.msra.mxu0 0.0
    %3274 = vmatprep.subr.mxu0 0.0
    %3275 = vmatpush1.msra.mxu0 0.0
    %3276 = vmatprep.subr.mxu0 0.0
    %3277 = vmatpush1.msra.mxu0 0.0
    %3278 = vmatprep.subr.mxu0 0.0
    %3279 = vmatpush1.msra.mxu0 0.0
    %3280 = vmatprep.subr.mxu0 0.0
    %3281 = vmatpush1.msra.mxu0 0.0
    %3282 = vmatprep.subr.mxu0 0.0
    %3283 = vmatpush1.msra.mxu0 0.0
    %3284 = vmatprep.subr.mxu0 0.0
    %3285 = vmatpush1.msra.mxu0 0.0
    %3286 = vmatprep.subr.mxu0 0.0
    %3287 = vmatpush1.msra.mxu0 0.0
    %3288 = vmatprep.subr.mxu0 0.0
    %3289 = vmatpush1.msra.mxu0 0.0
    %3290 = vmatprep.subr.mxu0 0.0
    %3291 = vmatpush1.msra.mxu0 0.0
    %3292 = vmatprep.subr.mxu0 0.0
    %3293 = vmatpush1.msra.mxu0 0.0
    %3294 = vmatprep.subr.mxu0 0.0
    %3295 = vmatpush1.msra.mxu0 0.0
    %3296 = vmatprep.subr.mxu0 0.0
    %3297 = vmatpush1.msra.mxu0 0.0
    %3298 = vmatprep.subr.mxu0 0.0
    %3299 = vmatpush1.msra.mxu0 0.0
    %3300 = vmatprep.subr.mxu0 0.0
    %3301 = vmatpush1.msra.mxu0 0.0
    %3302 = vmatprep.subr.mxu0 0.0
    %3303 = vmatpush1.msra.mxu0 0.0
    %3304 = vmatprep.subr.mxu0 0.0
    %3305 = vmatpush1.msra.mxu0 0.0
    %3306 = vmatprep.subr.mxu0 0.0
    %3307 = vmatpush1.msra.mxu0 0.0
    %3308 = vmatprep.mubr.f32.mxu0 0.0
    %3309 = vmatmul.mubr.f32.gmra.mrb[0].mxu0 %v3233
    %v3310 = vpop.f32.mrb[0].mxu0
    %v3311 = vadd.f32 %v3231, %v3310
    %v3312 = vpop.f32.mrb[0].mxu0
    %3313 = vmatprep.mubr.f32.mxu0 0.0
    %3314 = vmatmul.mubr.f32.gmra.mrb[0].mxu0 %v3236
    %v3315 = vpop.f32.mrb[0].mxu0
    %v3316 = vadd.f32 %v3231, %v3315
    %v3317 = vpop.f32.mrb[0].mxu0
    %3318 = vmatprep.mubr.f32.mxu0 0.0
    %3319 = vmatmul.mubr.f32.gmra.mrb[0].mxu0 %v3239
    %v3320 = vpop.f32.mrb[0].mxu0
    %v3321 = vadd.f32 %v3231, %v3320
    %v3322 = vpop.f32.mrb[0].mxu0
    %3323 = vmatprep.mubr.f32.mxu0 0.0
    %3324 = vmatmul.mubr.f32.gmra.mrb[0].mxu0 %v3242
    %v3325 = vpop.f32.mrb[0].mxu0
    %v3326 = vadd.f32 %v3231, %v3325
    %v3327 = vpop.f32.mrb[0].mxu0
    %3328 = vdwg.mxu0
    %v3329 = vmax.f32 %v3311, 0.0
    %v3330 = vmax.f32 %v3316, 0.0
    %v3331 = vmax.f32 %v3321, 0.0
    %v3332 = vmax.f32 %v3326, 0.0
    %v3333 = vld [vmem:[#allocation2 + $0x1d8] sm:$0xff]
    %v3334 = vld [vmem:[#allocation2 + $0x1e0] sm:$0xff]
    %v3335 = vld [vmem:[#allocation2 + $0x1e8] sm:$0xff]
    %v3336 = vld [vmem:[#allocation2 + $0x1f0] sm:$0xff]
    %v3337 = vld [vmem:[#allocation2 + $0x1f8] sm:$0xff]
    %v3338 = vld [vmem:[#allocation2 + $0x200] sm:$0xff]
    %v3339 = vld [vmem:[#allocation2 + $0x208] sm:$0xff]
    %v3340 = vld [vmem:[#allocation2 + $0x210] sm:$0xff]
    %v3341 = vld [vmem:[#allocation2 + $0x218] sm:$0x1]
    %v3342 = vlaneseq
    %v3343 = vshrl.u32 %v3342, 7
    %v3344 = vsub.s32 0, %v3343
    %v3345 = vrot.slane %v3341, %v3344
    %v3347 = vsel %vm36, %v3329, 0
    %v3350 = vsel %vm36, %v3330, 0
    %v3353 = vsel %vm36, %v3331, 0
    %v3356 = vsel %vm36, %v3332, 0
    %3358 = vmatprep.subr.mxu0 0.0
    %3359 = vmatpush1.msra.mxu0 %v3333
    %3360 = vmatprep.subr.mxu0 0.0
    %3361 = vmatpush1.msra.mxu0 %v3334
    %3362 = vmatprep.subr.mxu0 0.0
    %3363 = vmatpush1.msra.mxu0 %v3335
    %3364 = vmatprep.subr.mxu0 0.0
    %3365 = vmatpush1.msra.mxu0 %v3336
    %3366 = vmatprep.subr.mxu0 0.0
    %3367 = vmatpush1.msra.mxu0 %v3337
    %3368 = vmatprep.subr.mxu0 0.0
    %3369 = vmatpush1.msra.mxu0 %v3338
    %3370 = vmatprep.subr.mxu0 0.0
    %3371 = vmatpush1.msra.mxu0 %v3339
    %3372 = vmatprep.subr.mxu0 0.0
    %3373 = vmatpush1.msra.mxu0 %v3340
    %3374 = vmatprep.subr.mxu0 0.0
    %3375 = vmatpush1.msra.mxu0 0.0
    %3376 = vmatprep.subr.mxu0 0.0
    %3377 = vmatpush1.msra.mxu0 0.0
    %3378 = vmatprep.subr.mxu0 0.0
    %3379 = vmatpush1.msra.mxu0 0.0
    %3380 = vmatprep.subr.mxu0 0.0
    %3381 = vmatpush1.msra.mxu0 0.0
    %3382 = vmatprep.subr.mxu0 0.0
    %3383 = vmatpush1.msra.mxu0 0.0
    %3384 = vmatprep.subr.mxu0 0.0
    %3385 = vmatpush1.msra.mxu0 0.0
    %3386 = vmatprep.subr.mxu0 0.0
    %3387 = vmatpush1.msra.mxu0 0.0
    %3388 = vmatprep.subr.mxu0 0.0
    %3389 = vmatpush1.msra.mxu0 0.0
    %3390 = vmatprep.subr.mxu0 0.0
    %3391 = vmatpush1.msra.mxu0 0.0
    %3392 = vmatprep.subr.mxu0 0.0
    %3393 = vmatpush1.msra.mxu0 0.0
    %3394 = vmatprep.subr.mxu0 0.0
    %3395 = vmatpush1.msra.mxu0 0.0
    %3396 = vmatprep.subr.mxu0 0.0
    %3397 = vmatpush1.msra.mxu0 0.0
    %3398 = vmatprep.subr.mxu0 0.0
    %3399 = vmatpush1.msra.mxu0 0.0
    %3400 = vmatprep.subr.mxu0 0.0
    %3401 = vmatpush1.msra.mxu0 0.0
    %3402 = vmatprep.subr.mxu0 0.0
    %3403 = vmatpush1.msra.mxu0 0.0
    %3404 = vmatprep.subr.mxu0 0.0
    %3405 = vmatpush1.msra.mxu0 0.0
    %3406 = vmatprep.subr.mxu0 0.0
    %3407 = vmatpush1.msra.mxu0 0.0
    %3408 = vmatprep.subr.mxu0 0.0
    %3409 = vmatpush1.msra.mxu0 0.0
    %3410 = vmatprep.subr.mxu0 0.0
    %3411 = vmatpush1.msra.mxu0 0.0
    %3412 = vmatprep.subr.mxu0 0.0
    %3413 = vmatpush1.msra.mxu0 0.0
    %3414 = vmatprep.subr.mxu0 0.0
    %3415 = vmatpush1.msra.mxu0 0.0
    %3416 = vmatprep.subr.mxu0 0.0
    %3417 = vmatpush1.msra.mxu0 0.0
    %3418 = vmatprep.subr.mxu0 0.0
    %3419 = vmatpush1.msra.mxu0 0.0
    %3420 = vmatprep.subr.mxu0 0.0
    %3421 = vmatpush1.msra.mxu0 0.0
    %3422 = vmatprep.mubr.f32.mxu0 0.0
    %3423 = vmatmul.mubr.f32.gmra.mrb[0].mxu0 %v3347
    %v3424 = vpop.f32.mrb[0].mxu0
    %v3425 = vadd.f32 %v3345, %v3424
    %v3426 = vpop.f32.mrb[0].mxu0
    %3427 = vmatprep.mubr.f32.mxu0 0.0
    %3428 = vmatmul.mubr.f32.gmra.mrb[0].mxu0 %v3350
    %v3429 = vpop.f32.mrb[0].mxu0
    %v3430 = vadd.f32 %v3345, %v3429
    %v3431 = vpop.f32.mrb[0].mxu0
    %3432 = vmatprep.mubr.f32.mxu0 0.0
    %3433 = vmatmul.mubr.f32.gmra.mrb[0].mxu0 %v3353
    %v3434 = vpop.f32.mrb[0].mxu0
    %v3435 = vadd.f32 %v3345, %v3434
    %v3436 = vpop.f32.mrb[0].mxu0
    %3437 = vmatprep.mubr.f32.mxu0 0.0
    %3438 = vmatmul.mubr.f32.gmra.mrb[0].mxu0 %v3356
    %v3439 = vpop.f32.mrb[0].mxu0
    %v3440 = vadd.f32 %v3345, %v3439
    %v3441 = vpop.f32.mrb[0].mxu0
    %3442 = vdwg.mxu0
    %v3443 = vadd.f32 %v3219, %v3425
    %v3444 = vadd.f32 %v3220, %v3430
    %v3445 = vadd.f32 %v3221, %v3435
    %v3446 = vadd.f32 %v3222, %v3440
    %v3447 = vld [vmem:[#allocation2 + $0x1aa] sm:$0x1]
    %v3448 = vld [vmem:[#allocation2 + $0x1ab] sm:$0x1]
    %v3449 = vsel %vm382, %v3443, 0.0
    %3450 = vadd.xlane.f32.xlu0 %v3449
    %v3451 = vpop.xlane.xlu0 %3450
    %v3452 = vsel %vm382, %v3444, 0.0
    %3453 = vadd.xlane.f32.xlu0 %v3452
    %v3454 = vpop.xlane.xlu0 %3453
    %v3455 = vsel %vm382, %v3445, 0.0
    %3456 = vadd.xlane.f32.xlu0 %v3455
    %v3457 = vpop.xlane.xlu0 %3456
    %v3458 = vsel %vm382, %v3446, 0.0
    %3459 = vadd.xlane.f32.xlu0 %v3458
    %v3460 = vpop.xlane.xlu0 %3459
    %v3461 = vmul.f32 %v3451, %v3166
    %v3462 = vmul.f32 %v3454, %v3166
    %v3463 = vmul.f32 %v3457, %v3166
    %v3464 = vmul.f32 %v3460, %v3166
    %v3465 = vsub.f32 %v3443, %v3461
    %v3466 = vsub.f32 %v3444, %v3462
    %v3467 = vsub.f32 %v3445, %v3463
    %v3468 = vsub.f32 %v3446, %v3464
    %v3469 = vmul.f32 %v3465, %v3465
    %v3470 = vmul.f32 %v3466, %v3466
    %v3471 = vmul.f32 %v3467, %v3467
    %v3472 = vmul.f32 %v3468, %v3468
    %v3473 = vsel %vm382, %v3469, 0.0
    %3474 = vadd.xlane.f32.xlu0 %v3473
    %v3475 = vpop.xlane.xlu0 %3474
    %v3476 = vsel %vm382, %v3470, 0.0
    %3477 = vadd.xlane.f32.xlu0 %v3476
    %v3478 = vpop.xlane.xlu0 %3477
    %v3479 = vsel %vm382, %v3471, 0.0
    %3480 = vadd.xlane.f32.xlu0 %v3479
    %v3481 = vpop.xlane.xlu0 %3480
    %v3482 = vsel %vm382, %v3472, 0.0
    %3483 = vadd.xlane.f32.xlu0 %v3482
    %v3484 = vpop.xlane.xlu0 %3483
    %v3485 = vmul.f32 %v3475, %v3166
    %v3486 = vmul.f32 %v3478, %v3166
    %v3487 = vmul.f32 %v3481, %v3166
    %v3488 = vmul.f32 %v3484, %v3166
    %v3489 = vadd.f32 %v3485, 1e-05
    %v3490 = vadd.f32 %v3486, 1e-05
    %v3491 = vadd.f32 %v3487, 1e-05
    %v3492 = vadd.f32 %v3488, 1e-05
    %v3493 = vrsqrt.pop %v3489
    %v3494 = vrsqrt.pop %v3490
    %v3495 = vrsqrt.pop %v3491
    %v3496 = vrsqrt.pop %v3492
    %v3497 = vmul.f32 %v3465, %v3493
    %v3498 = vmul.f32 %v3466, %v3494
    %v3499 = vmul.f32 %v3467, %v3495
    %v3500 = vmul.f32 %v3468, %v3496
    %v3501 = vlaneseq
    %v3502 = vshrl.u32 %v3501, 7
    %v3503 = vsub.s32 0, %v3502
    %v3504 = vrot.slane %v3447, %v3503
    %v3505 = vmul.f32 %v3497, %v3504
    %v3506 = vmul.f32 %v3498, %v3504
    %v3507 = vmul.f32 %v3499, %v3504
    %v3508 = vmul.f32 %v3500, %v3504
    %v3509 = vlaneseq
    %v3510 = vshrl.u32 %v3509, 7
    %v3511 = vsub.s32 0, %v3510
    %v3512 = vrot.slane %v3448, %v3511
    %v3513 = vadd.f32 %v3505, %v3512
    %v3514 = vadd.f32 %v3506, %v3512
    %v3515 = vadd.f32 %v3507, %v3512
    %v3516 = vadd.f32 %v3508, %v3512
    %v3517 = vadd.f32 %v730, %v3513
    %v3518 = vadd.f32 %v735, %v3514
    %v3519 = vadd.f32 %v973, %v3515
    %v3520 = vadd.f32 %v978, %v3516
    %v3521 = vadd.f32 %v3517, %v1620
    %v3522 = vadd.f32 %v3518, %v1621
    %v3523 = vadd.f32 %v3519, %v1622
    %v3524 = vadd.f32 %v3520, %v1623
    %v3525 = vld [vmem:[#allocation2 + $0x220] sm:$0xff]
    %v3526 = vld [vmem:[#allocation2 + $0x228] sm:$0xff]
    %v3527 = vld [vmem:[#allocation2 + $0x230] sm:$0xff]
    %v3528 = vld [vmem:[#allocation2 + $0x238] sm:$0xff]
    %v3529 = vld [vmem:[#allocation2 + $0x240] sm:$0x1]
    %v3530 = vld [vmem:[#allocation2 + $0x241] sm:$0x1]
    %v3531 = vld [vmem:[#allocation2 + $0x242] sm:$0x1]
    %v3532 = vlaneseq
    %v3533 = vshrl.u32 %v3532, 7
    %v3534 = vsub.s32 0, %v3533
    %v3535 = vrot.slane %v3529, %v3534
    %v3537 = vsel %vm382, %v3521, 0
    %v3540 = vsel %vm382, %v3522, 0
    %v3543 = vsel %vm382, %v3523, 0
    %v3546 = vsel %vm382, %v3524, 0
    %3548 = vmatprep.subr.mxu0 0.0
    %3549 = vmatpush1.msra.mxu0 %v3525
    %3550 = vmatprep.subr.mxu0 0.0
    %3551 = vmatpush1.msra.mxu0 %v3526
    %3552 = vmatprep.subr.mxu0 0.0
    %3553 = vmatpush1.msra.mxu0 %v3527
    %3554 = vmatprep.subr.mxu0 0.0
    %3555 = vmatpush1.msra.mxu0 %v3528
    %3556 = vmatprep.subr.mxu0 0.0
    %3557 = vmatpush1.msra.mxu0 0.0
    %3558 = vmatprep.subr.mxu0 0.0
    %3559 = vmatpush1.msra.mxu0 0.0
    %3560 = vmatprep.subr.mxu0 0.0
    %3561 = vmatpush1.msra.mxu0 0.0
    %3562 = vmatprep.subr.mxu0 0.0
    %3563 = vmatpush1.msra.mxu0 0.0
    %3564 = vmatprep.subr.mxu0 0.0
    %3565 = vmatpush1.msra.mxu0 0.0
    %3566 = vmatprep.subr.mxu0 0.0
    %3567 = vmatpush1.msra.mxu0 0.0
    %3568 = vmatprep.subr.mxu0 0.0
    %3569 = vmatpush1.msra.mxu0 0.0
    %3570 = vmatprep.subr.mxu0 0.0
    %3571 = vmatpush1.msra.mxu0 0.0
    %3572 = vmatprep.subr.mxu0 0.0
    %3573 = vmatpush1.msra.mxu0 0.0
    %3574 = vmatprep.subr.mxu0 0.0
    %3575 = vmatpush1.msra.mxu0 0.0
    %3576 = vmatprep.subr.mxu0 0.0
    %3577 = vmatpush1.msra.mxu0 0.0
    %3578 = vmatprep.subr.mxu0 0.0
    %3579 = vmatpush1.msra.mxu0 0.0
    %3580 = vmatprep.subr.mxu0 0.0
    %3581 = vmatpush1.msra.mxu0 0.0
    %3582 = vmatprep.subr.mxu0 0.0
    %3583 = vmatpush1.msra.mxu0 0.0
    %3584 = vmatprep.subr.mxu0 0.0
    %3585 = vmatpush1.msra.mxu0 0.0
    %3586 = vmatprep.subr.mxu0 0.0
    %3587 = vmatpush1.msra.mxu0 0.0
    %3588 = vmatprep.subr.mxu0 0.0
    %3589 = vmatpush1.msra.mxu0 0.0
    %3590 = vmatprep.subr.mxu0 0.0
    %3591 = vmatpush1.msra.mxu0 0.0
    %3592 = vmatprep.subr.mxu0 0.0
    %3593 = vmatpush1.msra.mxu0 0.0
    %3594 = vmatprep.subr.mxu0 0.0
    %3595 = vmatpush1.msra.mxu0 0.0
    %3596 = vmatprep.subr.mxu0 0.0
    %3597 = vmatpush1.msra.mxu0 0.0
    %3598 = vmatprep.subr.mxu0 0.0
    %3599 = vmatpush1.msra.mxu0 0.0
    %3600 = vmatprep.subr.mxu0 0.0
    %3601 = vmatpush1.msra.mxu0 0.0
    %3602 = vmatprep.subr.mxu0 0.0
    %3603 = vmatpush1.msra.mxu0 0.0
    %3604 = vmatprep.subr.mxu0 0.0
    %3605 = vmatpush1.msra.mxu0 0.0
    %3606 = vmatprep.subr.mxu0 0.0
    %3607 = vmatpush1.msra.mxu0 0.0
    %3608 = vmatprep.subr.mxu0 0.0
    %3609 = vmatpush1.msra.mxu0 0.0
    %3610 = vmatprep.subr.mxu0 0.0
    %3611 = vmatpush1.msra.mxu0 0.0
    %3612 = vmatprep.mubr.f32.mxu0 0.0
    %3613 = vmatmul.mubr.f32.gmra.mrb[0].mxu0 %v3537
    %v3614 = vpop.f32.mrb[0].mxu0
    %v3615 = vadd.f32 %v3535, %v3614
    %v3616 = vpop.f32.mrb[0].mxu0
    %3617 = vmatprep.mubr.f32.mxu0 0.0
    %3618 = vmatmul.mubr.f32.gmra.mrb[0].mxu0 %v3540
    %v3619 = vpop.f32.mrb[0].mxu0
    %v3620 = vadd.f32 %v3535, %v3619
    %v3621 = vpop.f32.mrb[0].mxu0
    %3622 = vmatprep.mubr.f32.mxu0 0.0
    %3623 = vmatmul.mubr.f32.gmra.mrb[0].mxu0 %v3543
    %v3624 = vpop.f32.mrb[0].mxu0
    %v3625 = vadd.f32 %v3535, %v3624
    %v3626 = vpop.f32.mrb[0].mxu0
    %3627 = vmatprep.mubr.f32.mxu0 0.0
    %3628 = vmatmul.mubr.f32.gmra.mrb[0].mxu0 %v3546
    %v3629 = vpop.f32.mrb[0].mxu0
    %v3630 = vadd.f32 %v3535, %v3629
    %v3631 = vpop.f32.mrb[0].mxu0
    %3632 = vdwg.mxu0
    %v3633 = vlaneseq
    %v3634 = vshrl.u32 %v3633, 7
    %v3635 = vsub.s32 0, %v3634
    %v3636 = vrot.slane %v3530, %v3635
    %v3637 = vmul.f32 %v3615, %v3636
    %v3638 = vmul.f32 %v3620, %v3636
    %v3639 = vmul.f32 %v3625, %v3636
    %v3640 = vmul.f32 %v3630, %v3636
    %v3641 = vlaneseq
    %v3642 = vshrl.u32 %v3641, 7
    %v3643 = vsub.s32 0, %v3642
    %v3644 = vrot.slane %v3531, %v3643
    %v3645 = vadd.f32 %v3637, %v3644
    %v3646 = vadd.f32 %v3638, %v3644
    %v3647 = vadd.f32 %v3639, %v3644
    %v3648 = vadd.f32 %v3640, %v3644
    %v3649 = vmax.f32 %v3645, 0.0
    %v3650 = vmax.f32 %v3646, 0.0
    %v3651 = vmax.f32 %v3647, 0.0
    %v3652 = vmax.f32 %v3648, 0.0
    %v3653 = vld [vmem:[#allocation2 + $0x248] sm:$0xff]
    %v3654 = vld [vmem:[#allocation2 + $0x250] sm:$0x1]
    %v3655 = vld [vmem:[#allocation2 + $0x251] sm:$0x1]
    %v3656 = vld [vmem:[#allocation2 + $0x252] sm:$0x1]
    %v3657 = vlaneseq
    %v3658 = vshrl.u32 %v3657, 7
    %v3659 = vsub.s32 0, %v3658
    %v3660 = vrot.slane %v3654, %v3659
    %v3662 = vsel %vm1891, %v3649, 0
    %v3665 = vsel %vm1891, %v3650, 0
    %v3668 = vsel %vm1891, %v3651, 0
    %v3671 = vsel %vm1891, %v3652, 0
    %3673 = vmatprep.subr.mxu0 0.0
    %3674 = vmatpush1.msra.mxu0 %v3653
    %3675 = vmatprep.subr.mxu0 0.0
    %3676 = vmatpush1.msra.mxu0 0.0
    %3677 = vmatprep.subr.mxu0 0.0
    %3678 = vmatpush1.msra.mxu0 0.0
    %3679 = vmatprep.subr.mxu0 0.0
    %3680 = vmatpush1.msra.mxu0 0.0
    %3681 = vmatprep.subr.mxu0 0.0
    %3682 = vmatpush1.msra.mxu0 0.0
    %3683 = vmatprep.subr.mxu0 0.0
    %3684 = vmatpush1.msra.mxu0 0.0
    %3685 = vmatprep.subr.mxu0 0.0
    %3686 = vmatpush1.msra.mxu0 0.0
    %3687 = vmatprep.subr.mxu0 0.0
    %3688 = vmatpush1.msra.mxu0 0.0
    %3689 = vmatprep.subr.mxu0 0.0
    %3690 = vmatpush1.msra.mxu0 0.0
    %3691 = vmatprep.subr.mxu0 0.0
    %3692 = vmatpush1.msra.mxu0 0.0
    %3693 = vmatprep.subr.mxu0 0.0
    %3694 = vmatpush1.msra.mxu0 0.0
    %3695 = vmatprep.subr.mxu0 0.0
    %3696 = vmatpush1.msra.mxu0 0.0
    %3697 = vmatprep.subr.mxu0 0.0
    %3698 = vmatpush1.msra.mxu0 0.0
    %3699 = vmatprep.subr.mxu0 0.0
    %3700 = vmatpush1.msra.mxu0 0.0
    %3701 = vmatprep.subr.mxu0 0.0
    %3702 = vmatpush1.msra.mxu0 0.0
    %3703 = vmatprep.subr.mxu0 0.0
    %3704 = vmatpush1.msra.mxu0 0.0
    %3705 = vmatprep.subr.mxu0 0.0
    %3706 = vmatpush1.msra.mxu0 0.0
    %3707 = vmatprep.subr.mxu0 0.0
    %3708 = vmatpush1.msra.mxu0 0.0
    %3709 = vmatprep.subr.mxu0 0.0
    %3710 = vmatpush1.msra.mxu0 0.0
    %3711 = vmatprep.subr.mxu0 0.0
    %3712 = vmatpush1.msra.mxu0 0.0
    %3713 = vmatprep.subr.mxu0 0.0
    %3714 = vmatpush1.msra.mxu0 0.0
    %3715 = vmatprep.subr.mxu0 0.0
    %3716 = vmatpush1.msra.mxu0 0.0
    %3717 = vmatprep.subr.mxu0 0.0
    %3718 = vmatpush1.msra.mxu0 0.0
    %3719 = vmatprep.subr.mxu0 0.0
    %3720 = vmatpush1.msra.mxu0 0.0
    %3721 = vmatprep.subr.mxu0 0.0
    %3722 = vmatpush1.msra.mxu0 0.0
    %3723 = vmatprep.subr.mxu0 0.0
    %3724 = vmatpush1.msra.mxu0 0.0
    %3725 = vmatprep.subr.mxu0 0.0
    %3726 = vmatpush1.msra.mxu0 0.0
    %3727 = vmatprep.subr.mxu0 0.0
    %3728 = vmatpush1.msra.mxu0 0.0
    %3729 = vmatprep.subr.mxu0 0.0
    %3730 = vmatpush1.msra.mxu0 0.0
    %3731 = vmatprep.subr.mxu0 0.0
    %3732 = vmatpush1.msra.mxu0 0.0
    %3733 = vmatprep.subr.mxu0 0.0
    %3734 = vmatpush1.msra.mxu0 0.0
    %3735 = vmatprep.subr.mxu0 0.0
    %3736 = vmatpush1.msra.mxu0 0.0
    %3737 = vmatprep.mubr.f32.mxu0 0.0
    %3738 = vmatmul.mubr.f32.gmra.mrb[0].mxu0 %v3662
    %v3739 = vpop.f32.mrb[0].mxu0
    %v3740 = vadd.f32 %v3660, %v3739
    %v3741 = vpop.f32.mrb[0].mxu0
    %3742 = vmatprep.mubr.f32.mxu0 0.0
    %3743 = vmatmul.mubr.f32.gmra.mrb[0].mxu0 %v3665
    %v3744 = vpop.f32.mrb[0].mxu0
    %v3745 = vadd.f32 %v3660, %v3744
    %v3746 = vpop.f32.mrb[0].mxu0
    %3747 = vmatprep.mubr.f32.mxu0 0.0
    %3748 = vmatmul.mubr.f32.gmra.mrb[0].mxu0 %v3668
    %v3749 = vpop.f32.mrb[0].mxu0
    %v3750 = vadd.f32 %v3660, %v3749
    %v3751 = vpop.f32.mrb[0].mxu0
    %3752 = vmatprep.mubr.f32.mxu0 0.0
    %3753 = vmatmul.mubr.f32.gmra.mrb[0].mxu0 %v3671
    %v3754 = vpop.f32.mrb[0].mxu0
    %v3755 = vadd.f32 %v3660, %v3754
    %v3756 = vpop.f32.mrb[0].mxu0
    %3757 = vdwg.mxu0
    %v3758 = vlaneseq
    %v3759 = vshrl.u32 %v3758, 7
    %v3760 = vsub.s32 0, %v3759
    %v3761 = vrot.slane %v3655, %v3760
    %v3762 = vmul.f32 %v3740, %v3761
    %v3763 = vmul.f32 %v3745, %v3761
    %v3764 = vmul.f32 %v3750, %v3761
    %v3765 = vmul.f32 %v3755, %v3761
    %v3766 = vlaneseq
    %v3767 = vshrl.u32 %v3766, 7
    %v3768 = vsub.s32 0, %v3767
    %v3769 = vrot.slane %v3656, %v3768
    %v3770 = vadd.f32 %v3762, %v3769
    %v3771 = vadd.f32 %v3763, %v3769
    %v3772 = vadd.f32 %v3764, %v3769
    %v3773 = vadd.f32 %v3765, %v3769
    %v3774 = vsel %vm382, %v3521, 0.0
    %v3775 = vsel %vm382, %v3522, 0.0
    %v3776 = vadd.f32 %v3774, %v3775
    %v3777 = vrot.slane %v3776, 4
    %v3778 = vadd.f32 %v3776, %v3777
    %v3779 = vrot.slane %v3778, 2
    %v3780 = vadd.f32 %v3778, %v3779
    %v3781 = vrot.slane %v3780, 1
    %v3782 = vadd.f32 %v3780, %v3781
    %v3783 = vmul.f32 %v3782, %v1083
    %v3784 = vsel %vm382, %v3523, 0.0
    %v3785 = vsel %vm382, %v3524, 0.0
    %v3786 = vadd.f32 %v3784, %v3785
    %v3787 = vrot.slane %v3786, 4
    %v3788 = vadd.f32 %v3786, %v3787
    %v3789 = vrot.slane %v3788, 2
    %v3790 = vadd.f32 %v3788, %v3789
    %v3791 = vrot.slane %v3790, 1
    %v3792 = vadd.f32 %v3790, %v3791
    %v3793 = vmul.f32 %v3792, %v1083
    %vm3794 = vcmask 1040384
    %v3795 = vsel %vm3794, %v3783, %v3793
    %v3796 = vld [vmem:[#allocation2 + $0x258] sm:$0xff]
    %v3797 = vld [vmem:[#allocation2 + $0x260] sm:$0xff]
    %v3798 = vld [vmem:[#allocation2 + $0x268] sm:$0xff]
    %v3799 = vld [vmem:[#allocation2 + $0x270] sm:$0xff]
    %v3800 = vld [vmem:[#allocation2 + $0x278] sm:$0x1]
    %v3801 = vld [vmem:[#allocation2 + $0x279] sm:$0x1]
    %v3802 = vld [vmem:[#allocation2 + $0x27a] sm:$0x1]
    %v3803 = vlaneseq
    %v3804 = vshrl.u32 %v3803, 7
    %v3805 = vsub.s32 0, %v3804
    %v3806 = vrot.slane %v3800, %v3805
    %v3808 = vsel %vm382, %v3795, 0
    %3810 = vmatprep.subr.mxu0 0.0
    %3811 = vmatpush1.msra.mxu0 %v3796
    %3812 = vmatprep.subr.mxu0 0.0
    %3813 = vmatpush1.msra.mxu0 %v3797
    %3814 = vmatprep.subr.mxu0 0.0
    %3815 = vmatpush1.msra.mxu0 %v3798
    %3816 = vmatprep.subr.mxu0 0.0
    %3817 = vmatpush1.msra.mxu0 %v3799
    %3818 = vmatprep.subr.mxu0 0.0
    %3819 = vmatpush1.msra.mxu0 0.0
    %3820 = vmatprep.subr.mxu0 0.0
    %3821 = vmatpush1.msra.mxu0 0.0
    %3822 = vmatprep.subr.mxu0 0.0
    %3823 = vmatpush1.msra.mxu0 0.0
    %3824 = vmatprep.subr.mxu0 0.0
    %3825 = vmatpush1.msra.mxu0 0.0
    %3826 = vmatprep.subr.mxu0 0.0
    %3827 = vmatpush1.msra.mxu0 0.0
    %3828 = vmatprep.subr.mxu0 0.0
    %3829 = vmatpush1.msra.mxu0 0.0
    %3830 = vmatprep.subr.mxu0 0.0
    %3831 = vmatpush1.msra.mxu0 0.0
    %3832 = vmatprep.subr.mxu0 0.0
    %3833 = vmatpush1.msra.mxu0 0.0
    %3834 = vmatprep.subr.mxu0 0.0
    %3835 = vmatpush1.msra.mxu0 0.0
    %3836 = vmatprep.subr.mxu0 0.0
    %3837 = vmatpush1.msra.mxu0 0.0
    %3838 = vmatprep.subr.mxu0 0.0
    %3839 = vmatpush1.msra.mxu0 0.0
    %3840 = vmatprep.subr.mxu0 0.0
    %3841 = vmatpush1.msra.mxu0 0.0
    %3842 = vmatprep.subr.mxu0 0.0
    %3843 = vmatpush1.msra.mxu0 0.0
    %3844 = vmatprep.subr.mxu0 0.0
    %3845 = vmatpush1.msra.mxu0 0.0
    %3846 = vmatprep.subr.mxu0 0.0
    %3847 = vmatpush1.msra.mxu0 0.0
    %3848 = vmatprep.subr.mxu0 0.0
    %3849 = vmatpush1.msra.mxu0 0.0
    %3850 = vmatprep.subr.mxu0 0.0
    %3851 = vmatpush1.msra.mxu0 0.0
    %3852 = vmatprep.subr.mxu0 0.0
    %3853 = vmatpush1.msra.mxu0 0.0
    %3854 = vmatprep.subr.mxu0 0.0
    %3855 = vmatpush1.msra.mxu0 0.0
    %3856 = vmatprep.subr.mxu0 0.0
    %3857 = vmatpush1.msra.mxu0 0.0
    %3858 = vmatprep.subr.mxu0 0.0
    %3859 = vmatpush1.msra.mxu0 0.0
    %3860 = vmatprep.subr.mxu0 0.0
    %3861 = vmatpush1.msra.mxu0 0.0
    %3862 = vmatprep.subr.mxu0 0.0
    %3863 = vmatpush1.msra.mxu0 0.0
    %3864 = vmatprep.subr.mxu0 0.0
    %3865 = vmatpush1.msra.mxu0 0.0
    %3866 = vmatprep.subr.mxu0 0.0
    %3867 = vmatpush1.msra.mxu0 0.0
    %3868 = vmatprep.subr.mxu0 0.0
    %3869 = vmatpush1.msra.mxu0 0.0
    %3870 = vmatprep.subr.mxu0 0.0
    %3871 = vmatpush1.msra.mxu0 0.0
    %3872 = vmatprep.subr.mxu0 0.0
    %3873 = vmatpush1.msra.mxu0 0.0
    %3874 = vmatprep.mubr.f32.mxu0 0.0
    %3875 = vmatmul.mubr.f32.gmra.mrb[0].mxu0 %v3808
    %v3876 = vpop.f32.mrb[0].mxu0
    %v3877 = vadd.f32 %v3806, %v3876
    %v3878 = vpop.f32.mrb[0].mxu0
    %3879 = vdwg.mxu0
    %v3880 = vlaneseq
    %v3881 = vshrl.u32 %v3880, 7
    %v3882 = vsub.s32 0, %v3881
    %v3883 = vrot.slane %v3801, %v3882
    %v3884 = vmul.f32 %v3877, %v3883
    %v3885 = vlaneseq
    %v3886 = vshrl.u32 %v3885, 7
    %v3887 = vsub.s32 0, %v3886
    %v3888 = vrot.slane %v3802, %v3887
    %v3889 = vadd.f32 %v3884, %v3888
    %v3890 = vmax.f32 %v3889, 0.0
    %v3891 = vld [vmem:[#allocation2 + $0x280] sm:$0xff]
    %v3892 = vld [vmem:[#allocation2 + $0x288] sm:$0x1]
    %v3893 = vld [vmem:[#allocation2 + $0x289] sm:$0x1]
    %v3894 = vld [vmem:[#allocation2 + $0x28a] sm:$0x1]
    %v3895 = vlaneseq
    %v3896 = vshrl.u32 %v3895, 7
    %v3897 = vsub.s32 0, %v3896
    %v3898 = vrot.slane %v3892, %v3897
    %v3900 = vsel %vm1891, %v3890, 0
    %3902 = vmatprep.subr.mxu0 0.0
    %3903 = vmatpush1.msra.mxu0 %v3891
    %3904 = vmatprep.subr.mxu0 0.0
    %3905 = vmatpush1.msra.mxu0 0.0
    %3906 = vmatprep.subr.mxu0 0.0
    %3907 = vmatpush1.msra.mxu0 0.0
    %3908 = vmatprep.subr.mxu0 0.0
    %3909 = vmatpush1.msra.mxu0 0.0
    %3910 = vmatprep.subr.mxu0 0.0
    %3911 = vmatpush1.msra.mxu0 0.0
    %3912 = vmatprep.subr.mxu0 0.0
    %3913 = vmatpush1.msra.mxu0 0.0
    %3914 = vmatprep.subr.mxu0 0.0
    %3915 = vmatpush1.msra.mxu0 0.0
    %3916 = vmatprep.subr.mxu0 0.0
    %3917 = vmatpush1.msra.mxu0 0.0
    %3918 = vmatprep.subr.mxu0 0.0
    %3919 = vmatpush1.msra.mxu0 0.0
    %3920 = vmatprep.subr.mxu0 0.0
    %3921 = vmatpush1.msra.mxu0 0.0
    %3922 = vmatprep.subr.mxu0 0.0
    %3923 = vmatpush1.msra.mxu0 0.0
    %3924 = vmatprep.subr.mxu0 0.0
    %3925 = vmatpush1.msra.mxu0 0.0
    %3926 = vmatprep.subr.mxu0 0.0
    %3927 = vmatpush1.msra.mxu0 0.0
    %3928 = vmatprep.subr.mxu0 0.0
    %3929 = vmatpush1.msra.mxu0 0.0
    %3930 = vmatprep.subr.mxu0 0.0
    %3931 = vmatpush1.msra.mxu0 0.0
    %3932 = vmatprep.subr.mxu0 0.0
    %3933 = vmatpush1.msra.mxu0 0.0
    %3934 = vmatprep.subr.mxu0 0.0
    %3935 = vmatpush1.msra.mxu0 0.0
    %3936 = vmatprep.subr.mxu0 0.0
    %3937 = vmatpush1.msra.mxu0 0.0
    %3938 = vmatprep.subr.mxu0 0.0
    %3939 = vmatpush1.msra.mxu0 0.0
    %3940 = vmatprep.subr.mxu0 0.0
    %3941 = vmatpush1.msra.mxu0 0.0
    %3942 = vmatprep.subr.mxu0 0.0
    %3943 = vmatpush1.msra.mxu0 0.0
    %3944 = vmatprep.subr.mxu0 0.0
    %3945 = vmatpush1.msra.mxu0 0.0
    %3946 = vmatprep.subr.mxu0 0.0
    %3947 = vmatpush1.msra.mxu0 0.0
    %3948 = vmatprep.subr.mxu0 0.0
    %3949 = vmatpush1.msra.mxu0 0.0
    %3950 = vmatprep.subr.mxu0 0.0
    %3951 = vmatpush1.msra.mxu0 0.0
    %3952 = vmatprep.subr.mxu0 0.0
    %3953 = vmatpush1.msra.mxu0 0.0
    %3954 = vmatprep.subr.mxu0 0.0
    %3955 = vmatpush1.msra.mxu0 0.0
    %3956 = vmatprep.subr.mxu0 0.0
    %3957 = vmatpush1.msra.mxu0 0.0
    %3958 = vmatprep.subr.mxu0 0.0
    %3959 = vmatpush1.msra.mxu0 0.0
    %3960 = vmatprep.subr.mxu0 0.0
    %3961 = vmatpush1.msra.mxu0 0.0
    %3962 = vmatprep.subr.mxu0 0.0
    %3963 = vmatpush1.msra.mxu0 0.0
    %3964 = vmatprep.subr.mxu0 0.0
    %3965 = vmatpush1.msra.mxu0 0.0
    %3966 = vmatprep.mubr.f32.mxu0 0.0
    %3967 = vmatmul.mubr.f32.gmra.mrb[0].mxu0 %v3900
    %v3968 = vpop.f32.mrb[0].mxu0
    %v3969 = vadd.f32 %v3898, %v3968
    %v3970 = vpop.f32.mrb[0].mxu0
    %3971 = vdwg.mxu0
    %v3972 = vlaneseq
    %v3973 = vshrl.u32 %v3972, 7
    %v3974 = vsub.s32 0, %v3973
    %v3975 = vrot.slane %v3893, %v3974
    %v3976 = vmul.f32 %v3969, %v3975
    %v3977 = vlaneseq
    %v3978 = vshrl.u32 %v3977, 7
    %v3979 = vsub.s32 0, %v3978
    %v3980 = vrot.slane %v3894, %v3979
    %v3981 = vadd.f32 %v3976, %v3980
    %v3982 = vlaneseq
    %v3983 = vshrl.u32 %v3982, 7
    %v3984 = vsub.s32 0, %v3983
    %v3985 = vrot.slane %v3981, %v3984
    %v3986 = vlaneseq
    %v3987 = vshrl.u32 %v3986, 7
    %v3988 = vsub.s32 1, %v3987
    %v3989 = vrot.slane %v3981, %v3988
    %v3990 = vadd.f32 %v3770, %v3985
    %v3991 = vadd.f32 %v3771, %v3985
    %v3992 = vadd.f32 %v3772, %v3989
    %v3993 = vadd.f32 %v3773, %v3989
    %v3994 = vsub.f32 0.0, %v3990
    %v3995 = vsub.f32 0.0, %v3991
    %v3996 = vsub.f32 0.0, %v3992
    %v3997 = vsub.f32 0.0, %v3993
    %v3998 = vmul.f32 %v3994, 1.442695
    %v3999 = vpow.pop %v3998
    %v4000 = vmul.f32 %v3995, 1.442695
    %v4001 = vpow.pop %v4000
    %v4002 = vmul.f32 %v3996, 1.442695
    %v4003 = vpow.pop %v4002
    %v4004 = vmul.f32 %v3997, 1.442695
    %v4005 = vpow.pop %v4004
    %v4006 = vadd.f32 %v3999, 1.0
    %v4007 = vadd.f32 %v4001, 1.0
    %v4008 = vadd.f32 %v4003, 1.0
    %v4009 = vadd.f32 %v4005, 1.0
    %v4010 = vrcp.pop %v4006
    %v4011 = vrcp.pop %v4007
    %v4012 = vrcp.pop %v4008
    %v4013 = vrcp.pop %v4009
    %v4014 = vsub.f32 %v3517, %v1620
    %v4015 = vsub.f32 %v3518, %v1621
    %v4016 = vsub.f32 %v3519, %v1622
    %v4017 = vsub.f32 %v3520, %v1623
    %v4018 = vmul.f32 %v4010, %v4014
    %v4019 = vmul.f32 %v4011, %v4015
    %v4020 = vmul.f32 %v4012, %v4016
    %v4021 = vmul.f32 %v4013, %v4017
    %v4022 = vadd.f32 %v1620, %v4018
    %v4023 = vadd.f32 %v1621, %v4019
    %v4024 = vadd.f32 %v1622, %v4020
    %v4025 = vadd.f32 %v1623, %v4021
    %v4026 = vmul.f32 %v4022, 2.0
    %v4027 = vmul.f32 %v4023, 2.0
    %v4028 = vmul.f32 %v4024, 2.0
    %v4029 = vmul.f32 %v4025, 2.0
    %4030 = vxpose.xlu0.b32.start [1/16] %v4026, 128
    %4031 = vxpose.xlu0.b32.cont [2/16] %v4027, 128
    %4032 = vxpose.xlu0.b32.cont [3/16] %v4028, 128
    %4033 = vxpose.xlu0.b32.cont [4/16] %v4029, 128
    %4034 = vxpose.xlu0.b32.cont [5/16] 0.0, 128
    %4035 = vxpose.xlu0.b32.cont [6/16] 0.0, 128
    %4036 = vxpose.xlu0.b32.cont [7/16] 0.0, 128
    %4037 = vxpose.xlu0.b32.cont [8/16] 0.0, 128
    %4038 = vxpose.xlu0.b32.cont [9/16] 0.0, 128
    %4039 = vxpose.xlu0.b32.cont [10/16] 0.0, 128
    %4040 = vxpose.xlu0.b32.cont [11/16] 0.0, 128
    %4041 = vxpose.xlu0.b32.cont [12/16] 0.0, 128
    %4042 = vxpose.xlu0.b32.cont [13/16] 0.0, 128
    %4043 = vxpose.xlu0.b32.cont [14/16] 0.0, 128
    %4044 = vxpose.xlu0.b32.cont [15/16] 0.0, 128
    %4045 = vxpose.xlu0.b32.end [16/16] 0.0, 128
    %v4046 = vpop.trf.xlu0
    %v4047 = vpop.trf.xlu0
    %v4048 = vpop.trf.xlu0
    %v4049 = vpop.trf.xlu0
    %v4050 = vpop.trf.xlu0
    %v4051 = vpop.trf.xlu0
    %v4052 = vpop.trf.xlu0
    %v4053 = vpop.trf.xlu0
    %v4054 = vpop.trf.xlu0
    %v4055 = vpop.trf.xlu0
    %v4056 = vpop.trf.xlu0
    %v4057 = vpop.trf.xlu0
    %v4058 = vpop.trf.xlu0
    %v4059 = vpop.trf.xlu0
    %v4060 = vpop.trf.xlu0
    %v4061 = vpop.trf.xlu0
    %v4062 = vld [vmem:[#allocation2 + $0x60] sm:$0xff]
    %v4063 = vld [vmem:[#allocation2 + $0x68] sm:$0xff]
    %v4064 = vld [vmem:[#allocation2 + $0x70] sm:$0xff]
    %v4065 = vld [vmem:[#allocation2 + $0x78] sm:$0xff]
    %4067 = vset.pattern.permute.xlu0 0
    %4068 = vperm.xlu0 %4067, %v4062
    %v4069 = vpop.permute.xlu0 %4068
    %4072 = vset.pattern.permute.xlu0 0
    %4073 = vperm.xlu0 %4072, %v4063
    %v4074 = vpop.permute.xlu0 %4073
    %4077 = vset.pattern.permute.xlu0 0
    %4078 = vperm.xlu0 %4077, %v4064
    %v4079 = vpop.permute.xlu0 %4078
    %4082 = vset.pattern.permute.xlu0 0
    %4083 = vperm.xlu0 %4082, %v4065
    %v4084 = vpop.permute.xlu0 %4083
    %v4086 = vmul.f32 %v174, %v4069
    %v4087 = vmul.f32 %v175, %v4074
    %v4088 = vmul.f32 %v176, %v4079
    %v4089 = vmul.f32 %v177, %v4084
    %4090 = vset.pattern.permute.xlu0 1
    %4091 = vperm.xlu0 %4090, %v4062
    %v4092 = vpop.permute.xlu0 %4091
    %4094 = vset.pattern.permute.xlu0 1
    %4095 = vperm.xlu0 %4094, %v4063
    %v4096 = vpop.permute.xlu0 %4095
    %4098 = vset.pattern.permute.xlu0 1
    %4099 = vperm.xlu0 %4098, %v4064
    %v4100 = vpop.permute.xlu0 %4099
    %4102 = vset.pattern.permute.xlu0 1
    %4103 = vperm.xlu0 %4102, %v4065
    %v4104 = vpop.permute.xlu0 %4103
    %v4106 = vadd.f32 %v4086, %v4092
    %v4107 = vadd.f32 %v4087, %v4096
    %v4108 = vadd.f32 %v4088, %v4100
    %v4109 = vadd.f32 %v4089, %v4104
    %v4110 = vmax.f32 %v4106, 0.0
    %v4111 = vmax.f32 %v4107, 0.0
    %v4112 = vmax.f32 %v4108, 0.0
    %v4113 = vmax.f32 %v4109, 0.0
    %v4114 = vld [vmem:[#allocation2 + $0x80] sm:$0xff]
    %v4115 = vld [vmem:[#allocation2 + $0x88] sm:$0xff]
    %4117 = vset.pattern.permute.xlu0 32
    %4118 = vperm.xlu0 %4117, %v4114
    %v4119 = vpop.permute.xlu0 %4118
    %4122 = vset.pattern.permute.xlu0 32
    %4123 = vperm.xlu0 %4122, %v4115
    %v4124 = vpop.permute.xlu0 %4123
    %v4126 = vsel %vm382, %v4114, 0
    %v4128 = vsel %vm382, %v4115, 0
    %4130 = vmatprep.subr.mxu0 0.0
    %4131 = vmatpush1.msra.mxu0 %v4110
    %4132 = vmatprep.subr.mxu0 0.0
    %4133 = vmatpush1.msra.mxu0 %v4111
    %4134 = vmatprep.subr.mxu0 0.0
    %4135 = vmatpush1.msra.mxu0 %v4112
    %4136 = vmatprep.subr.mxu0 0.0
    %4137 = vmatpush1.msra.mxu0 %v4113
    %4138 = vmatprep.subr.mxu0 0.0
    %4139 = vmatpush1.msra.mxu0 0.0
    %4140 = vmatprep.subr.mxu0 0.0
    %4141 = vmatpush1.msra.mxu0 0.0
    %4142 = vmatprep.subr.mxu0 0.0
    %4143 = vmatpush1.msra.mxu0 0.0
    %4144 = vmatprep.subr.mxu0 0.0
    %4145 = vmatpush1.msra.mxu0 0.0
    %4146 = vmatprep.subr.mxu0 0.0
    %4147 = vmatpush1.msra.mxu0 0.0
    %4148 = vmatprep.subr.mxu0 0.0
    %4149 = vmatpush1.msra.mxu0 0.0
    %4150 = vmatprep.subr.mxu0 0.0
    %4151 = vmatpush1.msra.mxu0 0.0
    %4152 = vmatprep.subr.mxu0 0.0
    %4153 = vmatpush1.msra.mxu0 0.0
    %4154 = vmatprep.subr.mxu0 0.0
    %4155 = vmatpush1.msra.mxu0 0.0
    %4156 = vmatprep.subr.mxu0 0.0
    %4157 = vmatpush1.msra.mxu0 0.0
    %4158 = vmatprep.subr.mxu0 0.0
    %4159 = vmatpush1.msra.mxu0 0.0
    %4160 = vmatprep.subr.mxu0 0.0
    %4161 = vmatpush1.msra.mxu0 0.0
    %4162 = vmatprep.subr.mxu0 0.0
    %4163 = vmatpush1.msra.mxu0 0.0
    %4164 = vmatprep.subr.mxu0 0.0
    %4165 = vmatpush1.msra.mxu0 0.0
    %4166 = vmatprep.subr.mxu0 0.0
    %4167 = vmatpush1.msra.mxu0 0.0
    %4168 = vmatprep.subr.mxu0 0.0
    %4169 = vmatpush1.msra.mxu0 0.0
    %4170 = vmatprep.subr.mxu0 0.0
    %4171 = vmatpush1.msra.mxu0 0.0
    %4172 = vmatprep.subr.mxu0 0.0
    %4173 = vmatpush1.msra.mxu0 0.0
    %4174 = vmatprep.subr.mxu0 0.0
    %4175 = vmatpush1.msra.mxu0 0.0
    %4176 = vmatprep.subr.mxu0 0.0
    %4177 = vmatpush1.msra.mxu0 0.0
    %4178 = vmatprep.subr.mxu0 0.0
    %4179 = vmatpush1.msra.mxu0 0.0
    %4180 = vmatprep.subr.mxu0 0.0
    %4181 = vmatpush1.msra.mxu0 0.0
    %4182 = vmatprep.subr.mxu0 0.0
    %4183 = vmatpush1.msra.mxu0 0.0
    %4184 = vmatprep.subr.mxu0 0.0
    %4185 = vmatpush1.msra.mxu0 0.0
    %4186 = vmatprep.subr.mxu0 0.0
    %4187 = vmatpush1.msra.mxu0 0.0
    %4188 = vmatprep.subr.mxu0 0.0
    %4189 = vmatpush1.msra.mxu0 0.0
    %4190 = vmatprep.subr.mxu0 0.0
    %4191 = vmatpush1.msra.mxu0 0.0
    %4192 = vmatprep.subr.mxu0 0.0
    %4193 = vmatpush1.msra.mxu0 0.0
    %4194 = vmatprep.mubr.f32.mxu0 0.0
    %4195 = vmatmul.mubr.f32.gmra.mrb[0].mxu0 %v4126
    %v4196 = vpop.f32.mrb[0].mxu0
    %v4197 = vadd.f32 %v4119, %v4196
    %v4198 = vpop.f32.mrb[0].mxu0
    %4199 = vmatprep.mubr.f32.mxu0 0.0
    %4200 = vmatmul.mubr.f32.gmra.mrb[0].mxu0 %v4128
    %v4201 = vpop.f32.mrb[0].mxu0
    %v4202 = vadd.f32 %v4124, %v4201
    %v4203 = vpop.f32.mrb[0].mxu0
    %4204 = vdwg.mxu0
    %v4205 = vmax.f32 %v4197, %v4202
    %v4206 = vrot.slane %v4205, 4
    %v4207 = vmax.f32 %v4205, %v4206
    %v4208 = vrot.slane %v4207, 2
    %v4209 = vmax.f32 %v4207, %v4208
    %v4210 = vrot.slane %v4209, 1
    %v4211 = vmax.f32 %v4209, %v4210
    %v4212 = vsub.f32 %v4197, %v4211
    %v4213 = vsub.f32 %v4202, %v4211
    %v4214 = vmul.f32 %v4212, 1.442695
    %v4215 = vpow.pop %v4214
    %v4216 = vmul.f32 %v4213, 1.442695
    %v4217 = vpow.pop %v4216
    %v4218 = vadd.f32 %v4215, %v4217
    %v4219 = vrot.slane %v4218, 4
    %v4220 = vadd.f32 %v4218, %v4219
    %v4221 = vrot.slane %v4220, 2
    %v4222 = vadd.f32 %v4220, %v4221
    %v4223 = vrot.slane %v4222, 1
    %v4224 = vadd.f32 %v4222, %v4223
    %v4225 = vrcp.pop %v4224
    %v4226 = vmul.f32 %v4215, %v4225
    %v4227 = vmul.f32 %v4217, %v4225
    %v4229 = vsel %vm3032, %v4046, 0
    %v4232 = vsel %vm3032, %v4047, 0
    %v4235 = vsel %vm3032, %v4048, 0
    %v4238 = vsel %vm3032, %v4049, 0
    %4240 = vmatprep.subr.mxu0 0.0
    %4241 = vmatpush1.msra.mxu0 %v4226
    %4242 = vmatprep.subr.mxu0 0.0
    %4243 = vmatpush1.msra.mxu0 %v4227
    %4244 = vmatprep.subr.mxu0 0.0
    %4245 = vmatpush1.msra.mxu0 0.0
    %4246 = vmatprep.subr.mxu0 0.0
    %4247 = vmatpush1.msra.mxu0 0.0
    %4248 = vmatprep.subr.mxu0 0.0
    %4249 = vmatpush1.msra.mxu0 0.0
    %4250 = vmatprep.subr.mxu0 0.0
    %4251 = vmatpush1.msra.mxu0 0.0
    %4252 = vmatprep.subr.mxu0 0.0
    %4253 = vmatpush1.msra.mxu0 0.0
    %4254 = vmatprep.subr.mxu0 0.0
    %4255 = vmatpush1.msra.mxu0 0.0
    %4256 = vmatprep.subr.mxu0 0.0
    %4257 = vmatpush1.msra.mxu0 0.0
    %4258 = vmatprep.subr.mxu0 0.0
    %4259 = vmatpush1.msra.mxu0 0.0
    %4260 = vmatprep.subr.mxu0 0.0
    %4261 = vmatpush1.msra.mxu0 0.0
    %4262 = vmatprep.subr.mxu0 0.0
    %4263 = vmatpush1.msra.mxu0 0.0
    %4264 = vmatprep.subr.mxu0 0.0
    %4265 = vmatpush1.msra.mxu0 0.0
    %4266 = vmatprep.subr.mxu0 0.0
    %4267 = vmatpush1.msra.mxu0 0.0
    %4268 = vmatprep.subr.mxu0 0.0
    %4269 = vmatpush1.msra.mxu0 0.0
    %4270 = vmatprep.subr.mxu0 0.0
    %4271 = vmatpush1.msra.mxu0 0.0
    %4272 = vmatprep.subr.mxu0 0.0
    %4273 = vmatpush1.msra.mxu0 0.0
    %4274 = vmatprep.subr.mxu0 0.0
    %4275 = vmatpush1.msra.mxu0 0.0
    %4276 = vmatprep.subr.mxu0 0.0
    %4277 = vmatpush1.msra.mxu0 0.0
    %4278 = vmatprep.subr.mxu0 0.0
    %4279 = vmatpush1.msra.mxu0 0.0
    %4280 = vmatprep.subr.mxu0 0.0
    %4281 = vmatpush1.msra.mxu0 0.0
    %4282 = vmatprep.subr.mxu0 0.0
    %4283 = vmatpush1.msra.mxu0 0.0
    %4284 = vmatprep.subr.mxu0 0.0
    %4285 = vmatpush1.msra.mxu0 0.0
    %4286 = vmatprep.subr.mxu0 0.0
    %4287 = vmatpush1.msra.mxu0 0.0
    %4288 = vmatprep.subr.mxu0 0.0
    %4289 = vmatpush1.msra.mxu0 0.0
    %4290 = vmatprep.subr.mxu0 0.0
    %4291 = vmatpush1.msra.mxu0 0.0
    %4292 = vmatprep.subr.mxu0 0.0
    %4293 = vmatpush1.msra.mxu0 0.0
    %4294 = vmatprep.subr.mxu0 0.0
    %4295 = vmatpush1.msra.mxu0 0.0
    %4296 = vmatprep.subr.mxu0 0.0
    %4297 = vmatpush1.msra.mxu0 0.0
    %4298 = vmatprep.subr.mxu0 0.0
    %4299 = vmatpush1.msra.mxu0 0.0
    %4300 = vmatprep.subr.mxu0 0.0
    %4301 = vmatpush1.msra.mxu0 0.0
    %4302 = vmatprep.subr.mxu0 0.0
    %4303 = vmatpush1.msra.mxu0 0.0
    %4304 = vmatprep.mubr.f32.mxu0 0.0
    %4305 = vmatmul.mubr.f32.gmra.mrb[0].mxu0 %v4229
    %v4306 = vpop.f32.mrb[0].mxu0
    %v4307 = vadd.f32 0.0, %v4306
    %v4308 = vpop.f32.mrb[0].mxu0
    %4309 = vmatprep.mubr.f32.mxu0 0.0
    %4310 = vmatmul.mubr.f32.gmra.mrb[0].mxu0 %v4232
    %v4311 = vpop.f32.mrb[0].mxu0
    %v4312 = vadd.f32 0.0, %v4311
    %v4313 = vpop.f32.mrb[0].mxu0
    %4314 = vmatprep.mubr.f32.mxu0 0.0
    %4315 = vmatmul.mubr.f32.gmra.mrb[0].mxu0 %v4235
    %v4316 = vpop.f32.mrb[0].mxu0
    %v4317 = vadd.f32 0.0, %v4316
    %v4318 = vpop.f32.mrb[0].mxu0
    %4319 = vmatprep.mubr.f32.mxu0 0.0
    %4320 = vmatmul.mubr.f32.gmra.mrb[0].mxu0 %v4238
    %v4321 = vpop.f32.mrb[0].mxu0
    %v4322 = vadd.f32 0.0, %v4321
    %v4323 = vpop.f32.mrb[0].mxu0
    %4324 = vdwg.mxu0
    %4325 = vrot.lane.b32.xlu0 %v4046, 112
    %v4326 = vpop.permute.xlu0 %4325
    %4327 = vrot.lane.b32.xlu0 %v4047, 112
    %v4328 = vpop.permute.xlu0 %4327
    %4329 = vrot.lane.b32.xlu0 %v4048, 112
    %v4330 = vpop.permute.xlu0 %4329
    %4331 = vrot.lane.b32.xlu0 %v4049, 112
    %v4332 = vpop.permute.xlu0 %4331
    %4335 = vrot.lane.b32.xlu0 %v4226, 64
    %v4336 = vpop.permute.xlu0 %4335
    %4337 = vrot.lane.b32.xlu0 %v4227, 64
    %v4338 = vpop.permute.xlu0 %4337
    %v4341 = vsel %vm3032, %v4326, 0
    %v4343 = vsel %vm3032, %v4328, 0
    %v4345 = vsel %vm3032, %v4330, 0
    %v4347 = vsel %vm3032, %v4332, 0
    %4349 = vmatprep.subr.mxu0 0.0
    %4350 = vmatpush1.msra.mxu0 %v4336
    %4351 = vmatprep.subr.mxu0 0.0
    %4352 = vmatpush1.msra.mxu0 %v4338
    %4353 = vmatprep.subr.mxu0 0.0
    %4354 = vmatpush1.msra.mxu0 0.0
    %4355 = vmatprep.subr.mxu0 0.0
    %4356 = vmatpush1.msra.mxu0 0.0
    %4357 = vmatprep.subr.mxu0 0.0
    %4358 = vmatpush1.msra.mxu0 0.0
    %4359 = vmatprep.subr.mxu0 0.0
    %4360 = vmatpush1.msra.mxu0 0.0
    %4361 = vmatprep.subr.mxu0 0.0
    %4362 = vmatpush1.msra.mxu0 0.0
    %4363 = vmatprep.subr.mxu0 0.0
    %4364 = vmatpush1.msra.mxu0 0.0
    %4365 = vmatprep.subr.mxu0 0.0
    %4366 = vmatpush1.msra.mxu0 0.0
    %4367 = vmatprep.subr.mxu0 0.0
    %4368 = vmatpush1.msra.mxu0 0.0
    %4369 = vmatprep.subr.mxu0 0.0
    %4370 = vmatpush1.msra.mxu0 0.0
    %4371 = vmatprep.subr.mxu0 0.0
    %4372 = vmatpush1.msra.mxu0 0.0
    %4373 = vmatprep.subr.mxu0 0.0
    %4374 = vmatpush1.msra.mxu0 0.0
    %4375 = vmatprep.subr.mxu0 0.0
    %4376 = vmatpush1.msra.mxu0 0.0
    %4377 = vmatprep.subr.mxu0 0.0
    %4378 = vmatpush1.msra.mxu0 0.0
    %4379 = vmatprep.subr.mxu0 0.0
    %4380 = vmatpush1.msra.mxu0 0.0
    %4381 = vmatprep.subr.mxu0 0.0
    %4382 = vmatpush1.msra.mxu0 0.0
    %4383 = vmatprep.subr.mxu0 0.0
    %4384 = vmatpush1.msra.mxu0 0.0
    %4385 = vmatprep.subr.mxu0 0.0
    %4386 = vmatpush1.msra.mxu0 0.0
    %4387 = vmatprep.subr.mxu0 0.0
    %4388 = vmatpush1.msra.mxu0 0.0
    %4389 = vmatprep.subr.mxu0 0.0
    %4390 = vmatpush1.msra.mxu0 0.0
    %4391 = vmatprep.subr.mxu0 0.0
    %4392 = vmatpush1.msra.mxu0 0.0
    %4393 = vmatprep.subr.mxu0 0.0
    %4394 = vmatpush1.msra.mxu0 0.0
    %4395 = vmatprep.subr.mxu0 0.0
    %4396 = vmatpush1.msra.mxu0 0.0
    %4397 = vmatprep.subr.mxu0 0.0
    %4398 = vmatpush1.msra.mxu0 0.0
    %4399 = vmatprep.subr.mxu0 0.0
    %4400 = vmatpush1.msra.mxu0 0.0
    %4401 = vmatprep.subr.mxu0 0.0
    %4402 = vmatpush1.msra.mxu0 0.0
    %4403 = vmatprep.subr.mxu0 0.0
    %4404 = vmatpush1.msra.mxu0 0.0
    %4405 = vmatprep.subr.mxu0 0.0
    %4406 = vmatpush1.msra.mxu0 0.0
    %4407 = vmatprep.subr.mxu0 0.0
    %4408 = vmatpush1.msra.mxu0 0.0
    %4409 = vmatprep.subr.mxu0 0.0
    %4410 = vmatpush1.msra.mxu0 0.0
    %4411 = vmatprep.subr.mxu0 0.0
    %4412 = vmatpush1.msra.mxu0 0.0
    %4413 = vmatprep.mubr.f32.mxu0 0.0
    %4414 = vmatmul.mubr.f32.gmra.mrb[0].mxu0 %v4341
    %v4415 = vpop.f32.mrb[0].mxu0
    %v4416 = vadd.f32 0.0, %v4415
    %v4417 = vpop.f32.mrb[0].mxu0
    %4418 = vmatprep.mubr.f32.mxu0 0.0
    %4419 = vmatmul.mubr.f32.gmra.mrb[0].mxu0 %v4343
    %v4420 = vpop.f32.mrb[0].mxu0
    %v4421 = vadd.f32 0.0, %v4420
    %v4422 = vpop.f32.mrb[0].mxu0
    %4423 = vmatprep.mubr.f32.mxu0 0.0
    %4424 = vmatmul.mubr.f32.gmra.mrb[0].mxu0 %v4345
    %v4425 = vpop.f32.mrb[0].mxu0
    %v4426 = vadd.f32 0.0, %v4425
    %v4427 = vpop.f32.mrb[0].mxu0
    %4428 = vmatprep.mubr.f32.mxu0 0.0
    %4429 = vmatmul.mubr.f32.gmra.mrb[0].mxu0 %v4347
    %v4430 = vpop.f32.mrb[0].mxu0
    %v4431 = vadd.f32 0.0, %v4430
    %v4432 = vpop.f32.mrb[0].mxu0
    %4433 = vdwg.mxu0
    %4438 = vrot.lane.b32.xlu0 %v4416, 64
    %v4439 = vpop.permute.xlu0 %4438
    %4440 = vrot.lane.b32.xlu0 %v4421, 64
    %v4441 = vpop.permute.xlu0 %4440
    %4442 = vrot.lane.b32.xlu0 %v4426, 64
    %v4443 = vpop.permute.xlu0 %4442
    %4444 = vrot.lane.b32.xlu0 %v4431, 64
    %v4445 = vpop.permute.xlu0 %4444
    %v4450 = vsel %vm36, %v4307, %v4439
    %v4451 = vsel %vm36, %v4312, %v4441
    %v4452 = vsel %vm36, %v4317, %v4443
    %v4453 = vsel %vm36, %v4322, %v4445
    %v4454 = vadd.f32 %v4450, %v28
    %v4455 = vadd.f32 %v4451, %v29
    %v4456 = vadd.f32 %v4452, %v30
    %v4457 = vadd.f32 %v4453, %v31
    %v4458 = vld [vmem:[#allocation2 + $0x290] sm:$0xff]
    %4460 = vset.pattern.permute.xlu0 32
    %4461 = vperm.xlu0 %4460, %v4458
    %v4462 = vpop.permute.xlu0 %4461
    %v4464 = vsel %vm382, %v4458, 0
    %4466 = vmatprep.subr.mxu0 0.0
    %4467 = vmatpush1.msra.mxu0 %v4454
    %4468 = vmatprep.subr.mxu0 0.0
    %4469 = vmatpush1.msra.mxu0 %v4455
    %4470 = vmatprep.subr.mxu0 0.0
    %4471 = vmatpush1.msra.mxu0 %v4456
    %4472 = vmatprep.subr.mxu0 0.0
    %4473 = vmatpush1.msra.mxu0 %v4457
    %4474 = vmatprep.subr.mxu0 0.0
    %4475 = vmatpush1.msra.mxu0 0.0
    %4476 = vmatprep.subr.mxu0 0.0
    %4477 = vmatpush1.msra.mxu0 0.0
    %4478 = vmatprep.subr.mxu0 0.0
    %4479 = vmatpush1.msra.mxu0 0.0
    %4480 = vmatprep.subr.mxu0 0.0
    %4481 = vmatpush1.msra.mxu0 0.0
    %4482 = vmatprep.subr.mxu0 0.0
    %4483 = vmatpush1.msra.mxu0 0.0
    %4484 = vmatprep.subr.mxu0 0.0
    %4485 = vmatpush1.msra.mxu0 0.0
    %4486 = vmatprep.subr.mxu0 0.0
    %4487 = vmatpush1.msra.mxu0 0.0
    %4488 = vmatprep.subr.mxu0 0.0
    %4489 = vmatpush1.msra.mxu0 0.0
    %4490 = vmatprep.subr.mxu0 0.0
    %4491 = vmatpush1.msra.mxu0 0.0
    %4492 = vmatprep.subr.mxu0 0.0
    %4493 = vmatpush1.msra.mxu0 0.0
    %4494 = vmatprep.subr.mxu0 0.0
    %4495 = vmatpush1.msra.mxu0 0.0
    %4496 = vmatprep.subr.mxu0 0.0
    %4497 = vmatpush1.msra.mxu0 0.0
    %4498 = vmatprep.subr.mxu0 0.0
    %4499 = vmatpush1.msra.mxu0 0.0
    %4500 = vmatprep.subr.mxu0 0.0
    %4501 = vmatpush1.msra.mxu0 0.0
    %4502 = vmatprep.subr.mxu0 0.0
    %4503 = vmatpush1.msra.mxu0 0.0
    %4504 = vmatprep.subr.mxu0 0.0
    %4505 = vmatpush1.msra.mxu0 0.0
    %4506 = vmatprep.subr.mxu0 0.0
    %4507 = vmatpush1.msra.mxu0 0.0
    %4508 = vmatprep.subr.mxu0 0.0
    %4509 = vmatpush1.msra.mxu0 0.0
    %4510 = vmatprep.subr.mxu0 0.0
    %4511 = vmatpush1.msra.mxu0 0.0
    %4512 = vmatprep.subr.mxu0 0.0
    %4513 = vmatpush1.msra.mxu0 0.0
    %4514 = vmatprep.subr.mxu0 0.0
    %4515 = vmatpush1.msra.mxu0 0.0
    %4516 = vmatprep.subr.mxu0 0.0
    %4517 = vmatpush1.msra.mxu0 0.0
    %4518 = vmatprep.subr.mxu0 0.0
    %4519 = vmatpush1.msra.mxu0 0.0
    %4520 = vmatprep.subr.mxu0 0.0
    %4521 = vmatpush1.msra.mxu0 0.0
    %4522 = vmatprep.subr.mxu0 0.0
    %4523 = vmatpush1.msra.mxu0 0.0
    %4524 = vmatprep.subr.mxu0 0.0
    %4525 = vmatpush1.msra.mxu0 0.0
    %4526 = vmatprep.subr.mxu0 0.0
    %4527 = vmatpush1.msra.mxu0 0.0
    %4528 = vmatprep.subr.mxu0 0.0
    %4529 = vmatpush1.msra.mxu0 0.0
    %4530 = vmatprep.mubr.f32.mxu0 0.0
    %4531 = vmatmul.mubr.f32.gmra.mrb[0].mxu0 %v4464
    %v4532 = vpop.f32.mrb[0].mxu0
    %v4533 = vadd.f32 %v4462, %v4532
    %v4534 = vpop.f32.mrb[0].mxu0
    %4535 = vdwg.mxu0
    %4536 = vset.pattern.permute.xlu0 33
    %4537 = vperm.xlu0 %4536, %v4458
    %v4538 = vpop.permute.xlu0 %4537
    %v4540 = vmul.f32 %v4533, %v4538
    %4541 = vset.pattern.permute.xlu0 34
    %4542 = vperm.xlu0 %4541, %v4458
    %v4543 = vpop.permute.xlu0 %4542
    %v4545 = vadd.f32 %v4540, %v4543
    %v4546 = vmax.f32 %v4545, 0.0
    %v4547 = vld [vmem:[#allocation2 + $0x298] sm:$0xff]
    %v4548 = vld [vmem:[#allocation2 + $0x2a0] sm:$0xff]
    %v4549 = vld [vmem:[#allocation2 + $0x2a8] sm:$0xff]
    %v4550 = vld [vmem:[#allocation2 + $0x2b0] sm:$0xff]
    %4552 = vset.pattern.permute.xlu0 8
    %4553 = vperm.xlu0 %4552, %v4547
    %v4554 = vpop.permute.xlu0 %4553
    %4557 = vset.pattern.permute.xlu0 8
    %4558 = vperm.xlu0 %4557, %v4548
    %v4559 = vpop.permute.xlu0 %4558
    %4562 = vset.pattern.permute.xlu0 8
    %4563 = vperm.xlu0 %4562, %v4549
    %v4564 = vpop.permute.xlu0 %4563
    %4567 = vset.pattern.permute.xlu0 8
    %4568 = vperm.xlu0 %4567, %v4550
    %v4569 = vpop.permute.xlu0 %4568
    %v4571 = vsel %vm1891, %v4547, 0
    %v4573 = vsel %vm1891, %v4548, 0
    %v4575 = vsel %vm1891, %v4549, 0
    %v4577 = vsel %vm1891, %v4550, 0
    %4579 = vmatprep.subr.mxu0 0.0
    %4580 = vmatpush1.msra.mxu0 %v4546
    %4581 = vmatprep.subr.mxu0 0.0
    %4582 = vmatpush1.msra.mxu0 0.0
    %4583 = vmatprep.subr.mxu0 0.0
    %4584 = vmatpush1.msra.mxu0 0.0
    %4585 = vmatprep.subr.mxu0 0.0
    %4586 = vmatpush1.msra.mxu0 0.0
    %4587 = vmatprep.subr.mxu0 0.0
    %4588 = vmatpush1.msra.mxu0 0.0
    %4589 = vmatprep.subr.mxu0 0.0
    %4590 = vmatpush1.msra.mxu0 0.0
    %4591 = vmatprep.subr.mxu0 0.0
    %4592 = vmatpush1.msra.mxu0 0.0
    %4593 = vmatprep.subr.mxu0 0.0
    %4594 = vmatpush1.msra.mxu0 0.0
    %4595 = vmatprep.subr.mxu0 0.0
    %4596 = vmatpush1.msra.mxu0 0.0
    %4597 = vmatprep.subr.mxu0 0.0
    %4598 = vmatpush1.msra.mxu0 0.0
    %4599 = vmatprep.subr.mxu0 0.0
    %4600 = vmatpush1.msra.mxu0 0.0
    %4601 = vmatprep.subr.mxu0 0.0
    %4602 = vmatpush1.msra.mxu0 0.0
    %4603 = vmatprep.subr.mxu0 0.0
    %4604 = vmatpush1.msra.mxu0 0.0
    %4605 = vmatprep.subr.mxu0 0.0
    %4606 = vmatpush1.msra.mxu0 0.0
    %4607 = vmatprep.subr.mxu0 0.0
    %4608 = vmatpush1.msra.mxu0 0.0
    %4609 = vmatprep.subr.mxu0 0.0
    %4610 = vmatpush1.msra.mxu0 0.0
    %4611 = vmatprep.subr.mxu0 0.0
    %4612 = vmatpush1.msra.mxu0 0.0
    %4613 = vmatprep.subr.mxu0 0.0
    %4614 = vmatpush1.msra.mxu0 0.0
    %4615 = vmatprep.subr.mxu0 0.0
    %4616 = vmatpush1.msra.mxu0 0.0
    %4617 = vmatprep.subr.mxu0 0.0
    %4618 = vmatpush1.msra.mxu0 0.0
    %4619 = vmatprep.subr.mxu0 0.0
    %4620 = vmatpush1.msra.mxu0 0.0
    %4621 = vmatprep.subr.mxu0 0.0
    %4622 = vmatpush1.msra.mxu0 0.0
    %4623 = vmatprep.subr.mxu0 0.0
    %4624 = vmatpush1.msra.mxu0 0.0
    %4625 = vmatprep.subr.mxu0 0.0
    %4626 = vmatpush1.msra.mxu0 0.0
    %4627 = vmatprep.subr.mxu0 0.0
    %4628 = vmatpush1.msra.mxu0 0.0
    %4629 = vmatprep.subr.mxu0 0.0
    %4630 = vmatpush1.msra.mxu0 0.0
    %4631 = vmatprep.subr.mxu0 0.0
    %4632 = vmatpush1.msra.mxu0 0.0
    %4633 = vmatprep.subr.mxu0 0.0
    %4634 = vmatpush1.msra.mxu0 0.0
    %4635 = vmatprep.subr.mxu0 0.0
    %4636 = vmatpush1.msra.mxu0 0.0
    %4637 = vmatprep.subr.mxu0 0.0
    %4638 = vmatpush1.msra.mxu0 0.0
    %4639 = vmatprep.subr.mxu0 0.0
    %4640 = vmatpush1.msra.mxu0 0.0
    %4641 = vmatprep.subr.mxu0 0.0
    %4642 = vmatpush1.msra.mxu0 0.0
    %4643 = vmatprep.mubr.f32.mxu0 0.0
    %4644 = vmatmul.mubr.f32.gmra.mrb[0].mxu0 %v4571
    %v4645 = vpop.f32.mrb[0].mxu0
    %v4646 = vadd.f32 %v4554, %v4645
    %v4647 = vpop.f32.mrb[0].mxu0
    %4648 = vmatprep.mubr.f32.mxu0 0.0
    %4649 = vmatmul.mubr.f32.gmra.mrb[0].mxu0 %v4573
    %v4650 = vpop.f32.mrb[0].mxu0
    %v4651 = vadd.f32 %v4559, %v4650
    %v4652 = vpop.f32.mrb[0].mxu0
    %4653 = vmatprep.mubr.f32.mxu0 0.0
    %4654 = vmatmul.mubr.f32.gmra.mrb[0].mxu0 %v4575
    %v4655 = vpop.f32.mrb[0].mxu0
    %v4656 = vadd.f32 %v4564, %v4655
    %v4657 = vpop.f32.mrb[0].mxu0
    %4658 = vmatprep.mubr.f32.mxu0 0.0
    %4659 = vmatmul.mubr.f32.gmra.mrb[0].mxu0 %v4577
    %v4660 = vpop.f32.mrb[0].mxu0
    %v4661 = vadd.f32 %v4569, %v4660
    %v4662 = vpop.f32.mrb[0].mxu0
    %4663 = vdwg.mxu0
    %4664 = vset.pattern.permute.xlu0 9
    %4665 = vperm.xlu0 %4664, %v4547
    %v4666 = vpop.permute.xlu0 %4665
    %4668 = vset.pattern.permute.xlu0 9
    %4669 = vperm.xlu0 %4668, %v4548
    %v4670 = vpop.permute.xlu0 %4669
    %4672 = vset.pattern.permute.xlu0 9
    %4673 = vperm.xlu0 %4672, %v4549
    %v4674 = vpop.permute.xlu0 %4673
    %4676 = vset.pattern.permute.xlu0 9
    %4677 = vperm.xlu0 %4676, %v4550
    %v4678 = vpop.permute.xlu0 %4677
    %v4680 = vmul.f32 %v4646, %v4666
    %v4681 = vmul.f32 %v4651, %v4670
    %v4682 = vmul.f32 %v4656, %v4674
    %v4683 = vmul.f32 %v4661, %v4678
    %4684 = vset.pattern.permute.xlu0 10
    %4685 = vperm.xlu0 %4684, %v4547
    %v4686 = vpop.permute.xlu0 %4685
    %4688 = vset.pattern.permute.xlu0 10
    %4689 = vperm.xlu0 %4688, %v4548
    %v4690 = vpop.permute.xlu0 %4689
    %4692 = vset.pattern.permute.xlu0 10
    %4693 = vperm.xlu0 %4692, %v4549
    %v4694 = vpop.permute.xlu0 %4693
    %4696 = vset.pattern.permute.xlu0 10
    %4697 = vperm.xlu0 %4696, %v4550
    %v4698 = vpop.permute.xlu0 %4697
    %v4700 = vadd.f32 %v4680, %v4686
    %v4701 = vadd.f32 %v4681, %v4690
    %v4702 = vadd.f32 %v4682, %v4694
    %v4703 = vadd.f32 %v4683, %v4698
    %v4704 = vsel %vm36, %v4454, 0.0
    %4705 = vadd.xlane.f32.xlu0 %v4704
    %v4706 = vpop.xlane.xlu0 %4705
    %v4707 = vsel %vm36, %v4455, 0.0
    %4708 = vadd.xlane.f32.xlu0 %v4707
    %v4709 = vpop.xlane.xlu0 %4708
    %v4710 = vsel %vm36, %v4456, 0.0
    %4711 = vadd.xlane.f32.xlu0 %v4710
    %v4712 = vpop.xlane.xlu0 %4711
    %v4713 = vsel %vm36, %v4457, 0.0
    %4714 = vadd.xlane.f32.xlu0 %v4713
    %v4715 = vpop.xlane.xlu0 %4714
    %v4716 = vmul.f32 %v4706, %v49
    %v4717 = vmul.f32 %v4709, %v49
    %v4718 = vmul.f32 %v4712, %v49
    %v4719 = vmul.f32 %v4715, %v49
    %4724 = vrot.lane.b32.xlu0 %v4454, 64
    %v4725 = vpop.permute.xlu0 %4724
    %4726 = vrot.lane.b32.xlu0 %v4455, 64
    %v4727 = vpop.permute.xlu0 %4726
    %4728 = vrot.lane.b32.xlu0 %v4456, 64
    %v4729 = vpop.permute.xlu0 %4728
    %4730 = vrot.lane.b32.xlu0 %v4457, 64
    %v4731 = vpop.permute.xlu0 %4730
    %v4736 = vsel %vm36, %v4725, 0.0
    %4737 = vadd.xlane.f32.xlu0 %v4736
    %v4738 = vpop.xlane.xlu0 %4737
    %v4739 = vsel %vm36, %v4727, 0.0
    %4740 = vadd.xlane.f32.xlu0 %v4739
    %v4741 = vpop.xlane.xlu0 %4740
    %v4742 = vsel %vm36, %v4729, 0.0
    %4743 = vadd.xlane.f32.xlu0 %v4742
    %v4744 = vpop.xlane.xlu0 %4743
    %v4745 = vsel %vm36, %v4731, 0.0
    %4746 = vadd.xlane.f32.xlu0 %v4745
    %v4747 = vpop.xlane.xlu0 %4746
    %v4748 = vmul.f32 %v4738, %v49
    %v4749 = vmul.f32 %v4741, %v49
    %v4750 = vmul.f32 %v4744, %v49
    %v4751 = vmul.f32 %v4747, %v49
    %vm4752 = vcmask 7168
    %v4753 = vsel %vm4752, %v4716, %v4748
    %v4754 = vsel %vm4752, %v4717, %v4749
    %v4755 = vsel %vm4752, %v4718, %v4750
    %v4756 = vsel %vm4752, %v4719, %v4751
    %v4757 = vld [vmem:[#allocation2 + $0x2b8] sm:$0xff]
    %4759 = vset.pattern.permute.xlu0 32
    %4760 = vperm.xlu0 %4759, %v4757
    %v4761 = vpop.permute.xlu0 %4760
    %v4763 = vsel %vm382, %v4757, 0
    %4765 = vmatprep.subr.mxu0 0.0
    %4766 = vmatpush1.msra.mxu0 %v4753
    %4767 = vmatprep.subr.mxu0 0.0
    %4768 = vmatpush1.msra.mxu0 %v4754
    %4769 = vmatprep.subr.mxu0 0.0
    %4770 = vmatpush1.msra.mxu0 %v4755
    %4771 = vmatprep.subr.mxu0 0.0
    %4772 = vmatpush1.msra.mxu0 %v4756
    %4773 = vmatprep.subr.mxu0 0.0
    %4774 = vmatpush1.msra.mxu0 0.0
    %4775 = vmatprep.subr.mxu0 0.0
    %4776 = vmatpush1.msra.mxu0 0.0
    %4777 = vmatprep.subr.mxu0 0.0
    %4778 = vmatpush1.msra.mxu0 0.0
    %4779 = vmatprep.subr.mxu0 0.0
    %4780 = vmatpush1.msra.mxu0 0.0
    %4781 = vmatprep.subr.mxu0 0.0
    %4782 = vmatpush1.msra.mxu0 0.0
    %4783 = vmatprep.subr.mxu0 0.0
    %4784 = vmatpush1.msra.mxu0 0.0
    %4785 = vmatprep.subr.mxu0 0.0
    %4786 = vmatpush1.msra.mxu0 0.0
    %4787 = vmatprep.subr.mxu0 0.0
    %4788 = vmatpush1.msra.mxu0 0.0
    %4789 = vmatprep.subr.mxu0 0.0
    %4790 = vmatpush1.msra.mxu0 0.0
    %4791 = vmatprep.subr.mxu0 0.0
    %4792 = vmatpush1.msra.mxu0 0.0
    %4793 = vmatprep.subr.mxu0 0.0
    %4794 = vmatpush1.msra.mxu0 0.0
    %4795 = vmatprep.subr.mxu0 0.0
    %4796 = vmatpush1.msra.mxu0 0.0
    %4797 = vmatprep.subr.mxu0 0.0
    %4798 = vmatpush1.msra.mxu0 0.0
    %4799 = vmatprep.subr.mxu0 0.0
    %4800 = vmatpush1.msra.mxu0 0.0
    %4801 = vmatprep.subr.mxu0 0.0
    %4802 = vmatpush1.msra.mxu0 0.0
    %4803 = vmatprep.subr.mxu0 0.0
    %4804 = vmatpush1.msra.mxu0 0.0
    %4805 = vmatprep.subr.mxu0 0.0
    %4806 = vmatpush1.msra.mxu0 0.0
    %4807 = vmatprep.subr.mxu0 0.0
    %4808 = vmatpush1.msra.mxu0 0.0
    %4809 = vmatprep.subr.mxu0 0.0
    %4810 = vmatpush1.msra.mxu0 0.0
    %4811 = vmatprep.subr.mxu0 0.0
    %4812 = vmatpush1.msra.mxu0 0.0
    %4813 = vmatprep.subr.mxu0 0.0
    %4814 = vmatpush1.msra.mxu0 0.0
    %4815 = vmatprep.subr.mxu0 0.0
    %4816 = vmatpush1.msra.mxu0 0.0
    %4817 = vmatprep.subr.mxu0 0.0
    %4818 = vmatpush1.msra.mxu0 0.0
    %4819 = vmatprep.subr.mxu0 0.0
    %4820 = vmatpush1.msra.mxu0 0.0
    %4821 = vmatprep.subr.mxu0 0.0
    %4822 = vmatpush1.msra.mxu0 0.0
    %4823 = vmatprep.subr.mxu0 0.0
    %4824 = vmatpush1.msra.mxu0 0.0
    %4825 = vmatprep.subr.mxu0 0.0
    %4826 = vmatpush1.msra.mxu0 0.0
    %4827 = vmatprep.subr.mxu0 0.0
    %4828 = vmatpush1.msra.mxu0 0.0
    %4829 = vmatprep.mubr.f32.mxu0 0.0
    %4830 = vmatmul.mubr.f32.gmra.mrb[0].mxu0 %v4763
    %v4831 = vpop.f32.mrb[0].mxu0
    %v4832 = vadd.f32 %v4761, %v4831
    %v4833 = vpop.f32.mrb[0].mxu0
    %4834 = vdwg.mxu0
    %4835 = vset.pattern.permute.xlu0 33
    %4836 = vperm.xlu0 %4835, %v4757
    %v4837 = vpop.permute.xlu0 %4836
    %v4839 = vmul.f32 %v4832, %v4837
    %4840 = vset.pattern.permute.xlu0 34
    %4841 = vperm.xlu0 %4840, %v4757
    %v4842 = vpop.permute.xlu0 %4841
    %v4844 = vadd.f32 %v4839, %v4842
    %v4845 = vmax.f32 %v4844, 0.0
    %v4846 = vld [vmem:[#allocation2 + $0x2c0] sm:$0xff]
    %v4847 = vld [vmem:[#allocation2 + $0x2c8] sm:$0xff]
    %v4848 = vld [vmem:[#allocation2 + $0x2d0] sm:$0xff]
    %v4849 = vld [vmem:[#allocation2 + $0x2d8] sm:$0xff]
    %4851 = vset.pattern.permute.xlu0 8
    %4852 = vperm.xlu0 %4851, %v4846
    %v4853 = vpop.permute.xlu0 %4852
    %4856 = vset.pattern.permute.xlu0 8
    %4857 = vperm.xlu0 %4856, %v4847
    %v4858 = vpop.permute.xlu0 %4857
    %4861 = vset.pattern.permute.xlu0 8
    %4862 = vperm.xlu0 %4861, %v4848
    %v4863 = vpop.permute.xlu0 %4862
    %4866 = vset.pattern.permute.xlu0 8
    %4867 = vperm.xlu0 %4866, %v4849
    %v4868 = vpop.permute.xlu0 %4867
    %v4870 = vsel %vm1891, %v4846, 0
    %v4872 = vsel %vm1891, %v4847, 0
    %v4874 = vsel %vm1891, %v4848, 0
    %v4876 = vsel %vm1891, %v4849, 0
    %4878 = vmatprep.subr.mxu0 0.0
    %4879 = vmatpush1.msra.mxu0 %v4845
    %4880 = vmatprep.subr.mxu0 0.0
    %4881 = vmatpush1.msra.mxu0 0.0
    %4882 = vmatprep.subr.mxu0 0.0
    %4883 = vmatpush1.msra.mxu0 0.0
    %4884 = vmatprep.subr.mxu0 0.0
    %4885 = vmatpush1.msra.mxu0 0.0
    %4886 = vmatprep.subr.mxu0 0.0
    %4887 = vmatpush1.msra.mxu0 0.0
    %4888 = vmatprep.subr.mxu0 0.0
    %4889 = vmatpush1.msra.mxu0 0.0
    %4890 = vmatprep.subr.mxu0 0.0
    %4891 = vmatpush1.msra.mxu0 0.0
    %4892 = vmatprep.subr.mxu0 0.0
    %4893 = vmatpush1.msra.mxu0 0.0
    %4894 = vmatprep.subr.mxu0 0.0
    %4895 = vmatpush1.msra.mxu0 0.0
    %4896 = vmatprep.subr.mxu0 0.0
    %4897 = vmatpush1.msra.mxu0 0.0
    %4898 = vmatprep.subr.mxu0 0.0
    %4899 = vmatpush1.msra.mxu0 0.0
    %4900 = vmatprep.subr.mxu0 0.0
    %4901 = vmatpush1.msra.mxu0 0.0
    %4902 = vmatprep.subr.mxu0 0.0
    %4903 = vmatpush1.msra.mxu0 0.0
    %4904 = vmatprep.subr.mxu0 0.0
    %4905 = vmatpush1.msra.mxu0 0.0
    %4906 = vmatprep.subr.mxu0 0.0
    %4907 = vmatpush1.msra.mxu0 0.0
    %4908 = vmatprep.subr.mxu0 0.0
    %4909 = vmatpush1.msra.mxu0 0.0
    %4910 = vmatprep.subr.mxu0 0.0
    %4911 = vmatpush1.msra.mxu0 0.0
    %4912 = vmatprep.subr.mxu0 0.0
    %4913 = vmatpush1.msra.mxu0 0.0
    %4914 = vmatprep.subr.mxu0 0.0
    %4915 = vmatpush1.msra.mxu0 0.0
    %4916 = vmatprep.subr.mxu0 0.0
    %4917 = vmatpush1.msra.mxu0 0.0
    %4918 = vmatprep.subr.mxu0 0.0
    %4919 = vmatpush1.msra.mxu0 0.0
    %4920 = vmatprep.subr.mxu0 0.0
    %4921 = vmatpush1.msra.mxu0 0.0
    %4922 = vmatprep.subr.mxu0 0.0
    %4923 = vmatpush1.msra.mxu0 0.0
    %4924 = vmatprep.subr.mxu0 0.0
    %4925 = vmatpush1.msra.mxu0 0.0
    %4926 = vmatprep.subr.mxu0 0.0
    %4927 = vmatpush1.msra.mxu0 0.0
    %4928 = vmatprep.subr.mxu0 0.0
    %4929 = vmatpush1.msra.mxu0 0.0
    %4930 = vmatprep.subr.mxu0 0.0
    %4931 = vmatpush1.msra.mxu0 0.0
    %4932 = vmatprep.subr.mxu0 0.0
    %4933 = vmatpush1.msra.mxu0 0.0
    %4934 = vmatprep.subr.mxu0 0.0
    %4935 = vmatpush1.msra.mxu0 0.0
    %4936 = vmatprep.subr.mxu0 0.0
    %4937 = vmatpush1.msra.mxu0 0.0
    %4938 = vmatprep.subr.mxu0 0.0
    %4939 = vmatpush1.msra.mxu0 0.0
    %4940 = vmatprep.subr.mxu0 0.0
    %4941 = vmatpush1.msra.mxu0 0.0
    %4942 = vmatprep.mubr.f32.mxu0 0.0
    %4943 = vmatmul.mubr.f32.gmra.mrb[0].mxu0 %v4870
    %v4944 = vpop.f32.mrb[0].mxu0
    %v4945 = vadd.f32 %v4853, %v4944
    %v4946 = vpop.f32.mrb[0].mxu0
    %4947 = vmatprep.mubr.f32.mxu0 0.0
    %4948 = vmatmul.mubr.f32.gmra.mrb[0].mxu0 %v4872
    %v4949 = vpop.f32.mrb[0].mxu0
    %v4950 = vadd.f32 %v4858, %v4949
    %v4951 = vpop.f32.mrb[0].mxu0
    %4952 = vmatprep.mubr.f32.mxu0 0.0
    %4953 = vmatmul.mubr.f32.gmra.mrb[0].mxu0 %v4874
    %v4954 = vpop.f32.mrb[0].mxu0
    %v4955 = vadd.f32 %v4863, %v4954
    %v4956 = vpop.f32.mrb[0].mxu0
    %4957 = vmatprep.mubr.f32.mxu0 0.0
    %4958 = vmatmul.mubr.f32.gmra.mrb[0].mxu0 %v4876
    %v4959 = vpop.f32.mrb[0].mxu0
    %v4960 = vadd.f32 %v4868, %v4959
    %v4961 = vpop.f32.mrb[0].mxu0
    %4962 = vdwg.mxu0
    %4963 = vset.pattern.permute.xlu0 9
    %4964 = vperm.xlu0 %4963, %v4846
    %v4965 = vpop.permute.xlu0 %4964
    %4967 = vset.pattern.permute.xlu0 9
    %4968 = vperm.xlu0 %4967, %v4847
    %v4969 = vpop.permute.xlu0 %4968
    %4971 = vset.pattern.permute.xlu0 9
    %4972 = vperm.xlu0 %4971, %v4848
    %v4973 = vpop.permute.xlu0 %4972
    %4975 = vset.pattern.permute.xlu0 9
    %4976 = vperm.xlu0 %4975, %v4849
    %v4977 = vpop.permute.xlu0 %4976
    %v4979 = vmul.f32 %v4945, %v4965
    %v4980 = vmul.f32 %v4950, %v4969
    %v4981 = vmul.f32 %v4955, %v4973
    %v4982 = vmul.f32 %v4960, %v4977
    %4983 = vset.pattern.permute.xlu0 10
    %4984 = vperm.xlu0 %4983, %v4846
    %v4985 = vpop.permute.xlu0 %4984
    %4987 = vset.pattern.permute.xlu0 10
    %4988 = vperm.xlu0 %4987, %v4847
    %v4989 = vpop.permute.xlu0 %4988
    %4991 = vset.pattern.permute.xlu0 10
    %4992 = vperm.xlu0 %4991, %v4848
    %v4993 = vpop.permute.xlu0 %4992
    %4995 = vset.pattern.permute.xlu0 10
    %4996 = vperm.xlu0 %4995, %v4849
    %v4997 = vpop.permute.xlu0 %4996
    %v4999 = vadd.f32 %v4979, %v4985
    %v5000 = vadd.f32 %v4980, %v4989
    %v5001 = vadd.f32 %v4981, %v4993
    %v5002 = vadd.f32 %v4982, %v4997
    %5004 = vset.pattern.permute.xlu0 0
    %5005 = vperm.xlu0 %5004, %v4999
    %v5006 = vpop.permute.xlu0 %5005
    %5009 = vset.pattern.permute.xlu0 0
    %5010 = vperm.xlu0 %5009, %v5000
    %v5011 = vpop.permute.xlu0 %5010
    %5014 = vset.pattern.permute.xlu0 0
    %5015 = vperm.xlu0 %5014, %v5001
    %v5016 = vpop.permute.xlu0 %5015
    %5019 = vset.pattern.permute.xlu0 0
    %5020 = vperm.xlu0 %5019, %v5002
    %v5021 = vpop.permute.xlu0 %5020
    %5023 = vset.pattern.permute.xlu0 1
    %5024 = vperm.xlu0 %5023, %v4999
    %v5025 = vpop.permute.xlu0 %5024
    %5027 = vset.pattern.permute.xlu0 1
    %5028 = vperm.xlu0 %5027, %v5000
    %v5029 = vpop.permute.xlu0 %5028
    %5031 = vset.pattern.permute.xlu0 1
    %5032 = vperm.xlu0 %5031, %v5001
    %v5033 = vpop.permute.xlu0 %5032
    %5035 = vset.pattern.permute.xlu0 1
    %5036 = vperm.xlu0 %5035, %v5002
    %v5037 = vpop.permute.xlu0 %5036
    %v5039 = vsel %vm36, %v5006, %v5025
    %v5040 = vsel %vm36, %v5011, %v5029
    %v5041 = vsel %vm36, %v5016, %v5033
    %v5042 = vsel %vm36, %v5021, %v5037
    %v5043 = vadd.f32 %v4700, %v5039
    %v5044 = vadd.f32 %v4701, %v5040
    %v5045 = vadd.f32 %v4702, %v5041
    %v5046 = vadd.f32 %v4703, %v5042
    %v5047 = vsub.f32 0.0, %v5043
    %v5048 = vsub.f32 0.0, %v5044
    %v5049 = vsub.f32 0.0, %v5045
    %v5050 = vsub.f32 0.0, %v5046
    %v5051 = vmul.f32 %v5047, 1.442695
    %v5052 = vpow.pop %v5051
    %v5053 = vmul.f32 %v5048, 1.442695
    %v5054 = vpow.pop %v5053
    %v5055 = vmul.f32 %v5049, 1.442695
    %v5056 = vpow.pop %v5055
    %v5057 = vmul.f32 %v5050, 1.442695
    %v5058 = vpow.pop %v5057
    %v5059 = vadd.f32 %v5052, 1.0
    %v5060 = vadd.f32 %v5054, 1.0
    %v5061 = vadd.f32 %v5056, 1.0
    %v5062 = vadd.f32 %v5058, 1.0
    %v5063 = vrcp.pop %v5059
    %v5064 = vrcp.pop %v5060
    %v5065 = vrcp.pop %v5061
    %v5066 = vrcp.pop %v5062
    %v5067 = vsub.f32 %v4450, %v28
    %v5068 = vsub.f32 %v4451, %v29
    %v5069 = vsub.f32 %v4452, %v30
    %v5070 = vsub.f32 %v4453, %v31
    %v5071 = vmul.f32 %v5063, %v5067
    %v5072 = vmul.f32 %v5064, %v5068
    %v5073 = vmul.f32 %v5065, %v5069
    %v5074 = vmul.f32 %v5066, %v5070
    %v5075 = vadd.f32 %v28, %v5071
    %v5076 = vadd.f32 %v29, %v5072
    %v5077 = vadd.f32 %v30, %v5073
    %v5078 = vadd.f32 %v31, %v5074
    %v5079 = vmul.f32 %v5075, 2.0
    %v5080 = vmul.f32 %v5076, 2.0
    %v5081 = vmul.f32 %v5077, 2.0
    %v5082 = vmul.f32 %v5078, 2.0
    %5083 = vst [vmem:[%s3] sm:$0xff] %v5079
    %5084 = vst [vmem:[%s3 + $0x8] sm:$0xff] %v5080
    %5085 = vst [vmem:[%s3 + $0x10] sm:$0xff] %v5081
    %5086 = vst [vmem:[%s3 + $0x18] sm:$0xff] %v5082
    // Predicated region
    $region18: #{gcgt_forward.1} parent=1 // pred_check
      _
    $region19: #{gcgt_forward.1} parent=1 // pred_check_branch
      %5088 = sbr.rel (0) target = $region21
    $region20: #{gcgt_forward.1} parent=1 // pred_region
      _
    $region21: #{gcgt_forward.1} parent=1 // pred_fallthru
      _
    // Predicated region
    $region22: #{gcgt_forward.1} parent=1 // pred_check
      _
    $region23: #{gcgt_forward.1} parent=1 // pred_check_branch
      %5090 = sbr.rel (0) target = $region25
    $region24: #{gcgt_forward.1} parent=1 // pred_region
      _
    $region25: #{gcgt_forward.1} parent=1 // pred_fallthru
      _
    %5091 = vsyncpa [#allocation3], 1

</llo_original>
